<compile_context>
chip_gen: v7x
topology: tpu7x:2x2x1
jax: 0.10.0
libtpu: 0.0.40
codegen_flags: <defaults>
</compile_context>

<pallas_src>
import jax
import jax.numpy as jnp
from jax.experimental import pallas as pl
from jax.experimental.pallas import tpu as pltpu

EPS = 1e-5
LANE = 128


def _round_up(v, m):
    return (v + m - 1) // m * m


# --------------------------------------------------------------------------------------
# Pass 1: maxpool(k=2) + conv1 (im2col matmul, no bias) + per-tile BN1 partial stats
# --------------------------------------------------------------------------------------
def _pool_conv1_kernel(x_ref, w_ref, y_ref, st_ref):
    # x_ref: (1, F_in, Ci) f32 (full F resident per batch; only DMA'd once per batch)
    # w_ref: (3*Ci, Co) bf16 im2col weight
    # y_ref: (1, TF, Co) f32 pre-BN conv1 output tile
    # st_ref: (1, 1, 2, Co) f32 [sum, sum of squares] over the tile
    f = pl.program_id(1)
    n_f = pl.num_programs(1)
    TF = y_ref.shape[1]
    Ci = x_ref.shape[2]
    F_in = x_ref.shape[1]

    start = pl.multiple_of(f * (2 * TF), 2 * TF)
    xt = x_ref[0, pl.ds(start, 2 * TF), :]                      # raw rows for this tile
    ctr = jnp.max(xt.reshape(TF, 2, Ci), axis=1)                # pooled x[t]      (TF, Ci)

    # pooled halo rows (t-1 of first row / t+1 of last row), zero at global boundaries
    prev = jnp.max(x_ref[0, pl.ds(jnp.maximum(start - 2, 0), 2), :], axis=0, keepdims=True)
    prev = jnp.where(f == 0, jnp.zeros_like(prev), prev)
    nxt = jnp.max(x_ref[0, pl.ds(jnp.minimum(start + 2 * TF, F_in - 2), 2), :],
                  axis=0, keepdims=True)
    nxt = jnp.where(f == n_f - 1, jnp.zeros_like(nxt), nxt)

    row = jax.lax.broadcasted_iota(jnp.int32, (TF, 1), 0)
    lo = jnp.where(row == 0, prev, pltpu.roll(ctr, shift=1, axis=0))        # x[t-1]
    hi = jnp.where(row == TF - 1, nxt, pltpu.roll(ctr, shift=TF - 1, axis=0))  # x[t+1]

    a = jnp.concatenate([lo.astype(jnp.bfloat16),
                         ctr.astype(jnp.bfloat16),
                         hi.astype(jnp.bfloat16)], axis=1)      # im2col (TF, 3*Ci)
    y = jnp.dot(a, w_ref[...], preferred_element_type=jnp.float32)  # (TF, Co) f32

    y_ref[0] = y
    st_ref[0, 0] = jnp.concatenate(
        [jnp.sum(y, axis=0, keepdims=True),
         jnp.sum(y * y, axis=0, keepdims=True)], axis=0)


# --------------------------------------------------------------------------------------
# Pass 2: BN1 affine + ReLU + conv2 (im2col, no bias) + per-tile BN2 partial stats
# --------------------------------------------------------------------------------------
def _bn1_conv2_kernel(y1_ref, s1_ref, t1_ref, w_ref, y2_ref, st_ref):
    f = pl.program_id(1)
    n_f = pl.num_programs(1)
    TF = y2_ref.shape[1]
    F_out = y1_ref.shape[1]

    s1 = s1_ref[...]                                            # (1, Co)
    t1 = t1_ref[...]
    act = lambda v: jnp.maximum(v * s1 + t1, 0.0)               # folded BN1 + ReLU

    start = pl.multiple_of(f * TF, TF)
    ctr = act(y1_ref[0, pl.ds(start, TF), :])                   # h[t]   (TF, Co)
    prev = act(y1_ref[0, pl.ds(jnp.maximum(start - 1, 0), 1), :])
    prev = jnp.where(f == 0, jnp.zeros_like(prev), prev)
    nxt = act(y1_ref[0, pl.ds(jnp.minimum(start + TF, F_out - 1), 1), :])
    nxt = jnp.where(f == n_f - 1, jnp.zeros_like(nxt), nxt)

    row = jax.lax.broadcasted_iota(jnp.int32, (TF, 1), 0)
    lo = jnp.where(row == 0, prev, pltpu.roll(ctr, shift=1, axis=0))
    hi = jnp.where(row == TF - 1, nxt, pltpu.roll(ctr, shift=TF - 1, axis=0))

    a = jnp.concatenate([lo.astype(jnp.bfloat16),
                         ctr.astype(jnp.bfloat16),
                         hi.astype(jnp.bfloat16)], axis=1)      # (TF, 3*Co)
    y = jnp.dot(a, w_ref[...], preferred_element_type=jnp.float32)

    y2_ref[0] = y
    st_ref[0, 0] = jnp.concatenate(
        [jnp.sum(y, axis=0, keepdims=True),
         jnp.sum(y * y, axis=0, keepdims=True)], axis=0)


# --------------------------------------------------------------------------------------
# Pass 3: BN2 affine + FrequencyAwareAttention (per-batch mean -> fc1 -> ReLU -> fc2 ->
#         sigmoid -> channel scale) + ReLU
# --------------------------------------------------------------------------------------
def _bn2_attn_relu_kernel(y2_ref, s2_ref, t2_ref, mg_ref, fc1_ref, fc2_ref, o_ref):
    g = y2_ref[0] * s2_ref[...] + t2_ref[...]                   # BN2 output (TF, Co)
    mg = mg_ref[0].astype(jnp.bfloat16)                         # per-batch mean of g (1, Co)
    h = jnp.maximum(jnp.dot(mg, fc1_ref[...],
                            preferred_element_type=jnp.float32), 0.0)
    att = jax.nn.sigmoid(jnp.dot(h.astype(jnp.bfloat16), fc2_ref[...],
                                 preferred_element_type=jnp.float32))  # (1, Co)
    o_ref[0] = jnp.maximum(g * att, 0.0)


# --------------------------------------------------------------------------------------
# Wrapper
# --------------------------------------------------------------------------------------
def down_forward(x_ncf, params, *, tile_f=128):
    """x_ncf: (B, C_in, F_in) f32 in PyTorch NCF layout -> (B, C_out, F_in//2) f32."""
    B, C_in, F_in = x_ncf.shape
    assert F_in % 2 == 0, "MaxPool1d(kernel_size=2) needs even frequency length"
    F_out = F_in // 2
    C_out = params["w1"].shape[0]
    H = params["fc1"].shape[0]

    Ci = _round_up(C_in, LANE)
    Co = _round_up(C_out, LANE)
    Hp = _round_up(H, LANE)
    TF = tile_f if F_out % tile_f == 0 else F_out
    assert F_out % TF == 0 and TF % 8 == 0
    nF = F_out // TF

    f32, bf16 = jnp.float32, jnp.bfloat16

    # ----- pad to lane-dense channels; weights in im2col layout, bf16 MXU operands -----
    x = jnp.transpose(x_ncf, (0, 2, 1)).astype(f32)                    # (B, F_in, C_in)
    x = jnp.pad(x, ((0, 0), (0, 0), (0, Ci - C_in)))

    def im2col_w(w, ci, co):                                           # torch (O, I, 3)
        wt = jnp.transpose(w, (2, 1, 0))                               # (3, I, O)
        wt = jnp.pad(wt, ((0, 0), (0, ci - wt.shape[1]), (0, co - wt.shape[2])))
        return wt.reshape(3 * ci, co).astype(bf16)

    w1 = im2col_w(params["w1"], Ci, Co)
    w2 = im2col_w(params["w2"], Co, Co)
    fc1 = jnp.pad(jnp.transpose(params["fc1"]), ((0, Co - C_out), (0, Hp - H))).astype(bf16)
    fc2 = jnp.pad(jnp.transpose(params["fc2"]), ((0, Hp - H), (0, Co - C_out))).astype(bf16)
    padc = lambda v: jnp.pad(v.astype(f32), (0, Co - C_out))
    g1, be1 = padc(params["g1"]), padc(params["be1"])
    g2, be2 = padc(params["g2"]), padc(params["be2"])
    # NOTE: conv biases b1/b2 are intentionally dropped: they cancel exactly under
    # training-mode BatchNorm (batch statistics absorb any per-channel additive bias).

    cp = pltpu.CompilerParams(dimension_semantics=("parallel", "parallel"),
                              vmem_limit_bytes=32 * 1024 * 1024)

    # ----- pass 1 -----
    y1, st1 = pl.pallas_call(
        _pool_conv1_kernel,
        grid=(B, nF),
        in_specs=[
            pl.BlockSpec((1, F_in, Ci), lambda b, f: (b, 0, 0)),   # x, resident per batch
            pl.BlockSpec((3 * Ci, Co), lambda b, f: (0, 0)),       # weights stay resident
        ],
        out_specs=(
            pl.BlockSpec((1, TF, Co), lambda b, f: (b, f, 0)),
            pl.BlockSpec((1, 1, 2, Co), lambda b, f: (b, f, 0, 0)),
        ),
        out_shape=(
            jax.ShapeDtypeStruct((B, F_out, Co), f32),
            jax.ShapeDtypeStruct((B, nF, 2, Co), f32),
        ),
        compiler_params=cp,
    )(x, w1)

    def bn_affine(stats, gamma, beta):
        tot = jnp.sum(stats, axis=(0, 1))                       # (2, Co) tiny per-channel
        mean = tot[0] / (B * F_out)
        var = jnp.maximum(tot[1] / (B * F_out) - mean * mean, 0.0)
        s = gamma * jax.lax.rsqrt(var + EPS)
        t = beta - mean * s
        return s.reshape(1, Co), t.reshape(1, Co)

    s1, t1 = bn_affine(st1, g1, be1)

    # ----- pass 2 -----
    y2, st2 = pl.pallas_call(
        _bn1_conv2_kernel,
        grid=(B, nF),
        in_specs=[
            pl.BlockSpec((1, F_out, Co), lambda b, f: (b, 0, 0)),
            pl.BlockSpec((1, Co), lambda b, f: (0, 0)),
            pl.BlockSpec((1, Co), lambda b, f: (0, 0)),
            pl.BlockSpec((3 * Co, Co), lambda b, f: (0, 0)),
        ],
        out_specs=(
            pl.BlockSpec((1, TF, Co), lambda b, f: (b, f, 0)),
            pl.BlockSpec((1, 1, 2, Co), lambda b, f: (b, f, 0, 0)),
        ),
        out_shape=(
            jax.ShapeDtypeStruct((B, F_out, Co), f32),
            jax.ShapeDtypeStruct((B, nF, 2, Co), f32),
        ),
        compiler_params=cp,
    )(y1, s1, t1, w2)

    s2, t2 = bn_affine(st2, g2, be2)
    # per-batch mean over frequency of the BN2 output (feeds the attention MLP)
    mg = (jnp.sum(st2[:, :, 0, :], axis=1) / F_out) * s2.reshape(Co) + t2.reshape(Co)
    mg = mg.reshape(B, 1, Co)

    # ----- pass 3 -----
    out = pl.pallas_call(
        _bn2_attn_relu_kernel,
        grid=(B, nF),
        in_specs=[
            pl.BlockSpec((1, TF, Co), lambda b, f: (b, f, 0)),
            pl.BlockSpec((1, Co), lambda b, f: (0, 0)),
            pl.BlockSpec((1, Co), lambda b, f: (0, 0)),
            pl.BlockSpec((1, 1, Co), lambda b, f: (b, 0, 0)),
            pl.BlockSpec((Co, Hp), lambda b, f: (0, 0)),
            pl.BlockSpec((Hp, Co), lambda b, f: (0, 0)),
        ],
        out_specs=pl.BlockSpec((1, TF, Co), lambda b, f: (b, f, 0)),
        out_shape=jax.ShapeDtypeStruct((B, F_out, Co), f32),
        compiler_params=cp,
    )(y2, s2, t2, mg, fc1, fc2)

    return jnp.transpose(out[:, :, :C_out], (0, 2, 1))          # back to NCF


# --------------------------------------------------------------------------------------
# Pure-JAX reference (PyTorch NCF layout, training-mode BN). Conv/FC operands are cast to
# bf16 to mirror the kernel's MXU operand precision; accumulation stays f32.
# --------------------------------------------------------------------------------------
def _reference_forward(x, p):
    B, C_in, F_in = x.shape
    xp = jnp.max(x.reshape(B, C_in, F_in // 2, 2), axis=-1)

    def conv(v, w, b):
        y = jax.lax.conv_general_dilated(
            v.astype(jnp.bfloat16), w.astype(jnp.bfloat16),
            window_strides=(1,), padding=((1, 1),),
            dimension_numbers=("NCH", "OIH", "NCH"),
            preferred_element_type=jnp.float32)
        return y + b[None, :, None]

    def bn(v, g, be):
        mean = jnp.mean(v, axis=(0, 2), keepdims=True)
        var = jnp.mean((v - mean) ** 2, axis=(0, 2), keepdims=True)
        return (v - mean) * jax.lax.rsqrt(var + EPS) * g[None, :, None] + be[None, :, None]

    h = jnp.maximum(bn(conv(xp, p["w1"], p["b1"]), p["g1"], p["be1"]), 0.0)
    g = bn(conv(h, p["w2"], p["b2"]), p["g2"], p["be2"])
    y = jnp.mean(g, axis=2)
    y = jnp.maximum(jnp.dot(y.astype(jnp.bfloat16), p["fc1"].T.astype(jnp.bfloat16),
                            preferred_element_type=jnp.float32), 0.0)
    att = jax.nn.sigmoid(jnp.dot(y.astype(jnp.bfloat16), p["fc2"].T.astype(jnp.bfloat16),
                                 preferred_element_type=jnp.float32))
    return jnp.maximum(g * att[:, :, None], 0.0)


if __name__ == "__main__":
    # Down(features, 2*features) from ComplexDFTUNet with dft_size=512 -> features=32.
    B, C_in, F_in = 2, 32, 512
    C_out = 64
    H = max(C_out // 8, 8)                         # FrequencyAwareAttention hidden dim

    keys = jax.random.split(jax.random.PRNGKey(0), 11)
    n = lambda k, s, sc=0.3: sc * jax.random.normal(k, s, jnp.float32)
    params = {
        "w1": n(keys[0], (C_out, C_in, 3)),        # Conv1d weight (O, I, K)
        "b1": n(keys[1], (C_out,)),
        "g1": 1.0 + n(keys[2], (C_out,), 0.1),     # BN1 gamma
        "be1": n(keys[3], (C_out,), 0.1),          # BN1 beta
        "w2": n(keys[4], (C_out, C_out, 3)),
        "b2": n(keys[5], (C_out,)),
        "g2": 1.0 + n(keys[6], (C_out,), 0.1),
        "be2": n(keys[7], (C_out,), 0.1),
        "fc1": n(keys[8], (H, C_out)),             # Linear(C_out -> H), no bias
        "fc2": n(keys[9], (C_out, H)),             # Linear(H -> C_out), no bias
    }
    x = jax.random.normal(keys[10], (B, C_in, F_in), jnp.float32)

    out = jax.jit(down_forward)(x, params)
    jax.block_until_ready(out)
    assert out.shape == (B, C_out, F_in // 2), out.shape

    ref = _reference_forward(x, params)
    err = float(jnp.max(jnp.abs(out - ref)))
    assert err < 3e-3, f"kernel/reference mismatch: max abs err = {err}"
    print("KERNEL_OK")
</pallas_src>

<mosaic_0001>
module attributes {stable_mosaic.version = 11 : i64} {
  func.func @_pool_conv1_kernel(%arg0: i32, %arg1: i32, %arg2: memref<1x512x128xf32, #tpu.memory_space<vmem>>, %arg3: memref<384x128xbf16, #tpu.memory_space<vmem>>, %arg4: memref<1x128x128xf32, #tpu.memory_space<vmem>>, %arg5: memref<1x1x2x128xf32, #tpu.memory_space<vmem>>) attributes {dimension_semantics = [#tpu.dimension_semantics<parallel>, #tpu.dimension_semantics<parallel>], iteration_bounds = array<i64: 2, 2>, scalar_prefetch = 0 : i64, scratch_operands = 0 : i64, tpu.core_type = #tpu.core_type<tc>, window_params = [{transform_indices = @transform_0, window_bounds = array<i64: 1, 512, 128>}, {pipeline_mode = #tpu.pipeline_mode<synchronous>, transform_indices = @transform_1, window_bounds = array<i64: 384, 128>}, {transform_indices = @transform_2, window_bounds = array<i64: 1, 128, 128>}, {transform_indices = @transform_3, window_bounds = array<i64: 1, 1, 2, 128>}]} {
    %c256_i32 = arith.constant 256 : i32
    %0 = arith.muli %arg1, %c256_i32 : i32
    %1 = tpu.assume_multiple %0, 256 : i32
    %c0 = arith.constant 0 : index
    %2 = arith.index_cast %1 : i32 to index
    %c0_0 = arith.constant 0 : index
    %3 = vector.load %arg2[%c0, %2, %c0_0] : memref<1x512x128xf32, #tpu.memory_space<vmem>>, vector<1x256x128xf32>
    %4 = vector.shape_cast %3 : vector<1x256x128xf32> to vector<256x128xf32>
    %5 = vector.shape_cast %4 : vector<256x128xf32> to vector<128x2x128xf32>
    %cst = arith.constant dense<0xFF800000> : vector<128x128xf32>
    %6 = vector.multi_reduction <maximumf>, %5, %cst [1] : vector<128x2x128xf32> to vector<128x128xf32>
    %c2_i32 = arith.constant 2 : i32
    %7 = arith.subi %1, %c2_i32 : i32
    %c0_i32 = arith.constant 0 : i32
    %8 = arith.maxsi %7, %c0_i32 : i32
    %c0_1 = arith.constant 0 : index
    %9 = arith.index_cast %8 : i32 to index
    %c0_2 = arith.constant 0 : index
    %10 = vector.load %arg2[%c0_1, %9, %c0_2] : memref<1x512x128xf32, #tpu.memory_space<vmem>>, vector<1x2x128xf32>
    %11 = vector.shape_cast %10 : vector<1x2x128xf32> to vector<2x128xf32>
    %cst_3 = arith.constant dense<0xFF800000> : vector<128xf32>
    %12 = vector.multi_reduction <maximumf>, %11, %cst_3 [0] : vector<2x128xf32> to vector<128xf32>
    %13 = vector.shape_cast %12 : vector<128xf32> to vector<1x128xf32>
    %c0_i32_4 = arith.constant 0 : i32
    %14 = arith.cmpi eq, %arg1, %c0_i32_4 : i32
    %cst_5 = arith.constant 0.000000e+00 : f32
    %15 = vector.broadcast %cst_5 : f32 to vector<1x128xf32>
    %16 = arith.select %14, %15, %13 : vector<1x128xf32>
    %c256_i32_6 = arith.constant 256 : i32
    %17 = arith.addi %1, %c256_i32_6 : i32
    %c510_i32 = arith.constant 510 : i32
    %18 = arith.minsi %17, %c510_i32 : i32
    %c0_7 = arith.constant 0 : index
    %19 = arith.index_cast %18 : i32 to index
    %c0_8 = arith.constant 0 : index
    %20 = vector.load %arg2[%c0_7, %19, %c0_8] : memref<1x512x128xf32, #tpu.memory_space<vmem>>, vector<1x2x128xf32>
    %21 = vector.shape_cast %20 : vector<1x2x128xf32> to vector<2x128xf32>
    %cst_9 = arith.constant dense<0xFF800000> : vector<128xf32>
    %22 = vector.multi_reduction <maximumf>, %21, %cst_9 [0] : vector<2x128xf32> to vector<128xf32>
    %23 = vector.shape_cast %22 : vector<128xf32> to vector<1x128xf32>
    %c1_i32 = arith.constant 1 : i32
    %24 = arith.cmpi eq, %arg1, %c1_i32 : i32
    %cst_10 = arith.constant 0.000000e+00 : f32
    %25 = vector.broadcast %cst_10 : f32 to vector<1x128xf32>
    %26 = arith.select %24, %25, %23 : vector<1x128xf32>
    %27 = tpu.iota {dimensions = array<i32: 0>} : vector<128x1xi32>
    %c0_i32_11 = arith.constant 0 : i32
    %28 = vector.broadcast %c0_i32_11 : i32 to vector<128x1xi32>
    %29 = arith.cmpi eq, %27, %28 : vector<128x1xi32>
    %c1_i32_12 = arith.constant 1 : i32
    %30 = tpu.dynamic_rotate %6 by %c1_i32_12 dim 0 : vector<128x128xf32>, i32 -> vector<128x128xf32>
    %31 = vector.shape_cast %29 : vector<128x1xi1> to vector<128x1xi1>
    %32 = vector.broadcast %31 : vector<128x1xi1> to vector<128x128xi1>
    %33 = vector.shape_cast %16 : vector<1x128xf32> to vector<1x128xf32>
    %34 = vector.broadcast %33 : vector<1x128xf32> to vector<128x128xf32>
    %35 = arith.select %32, %34, %30 : vector<128x128xi1>, vector<128x128xf32>
    %c127_i32 = arith.constant 127 : i32
    %36 = vector.broadcast %c127_i32 : i32 to vector<128x1xi32>
    %37 = arith.cmpi eq, %27, %36 : vector<128x1xi32>
    %c127_i32_13 = arith.constant 127 : i32
    %38 = tpu.dynamic_rotate %6 by %c127_i32_13 dim 0 : vector<128x128xf32>, i32 -> vector<128x128xf32>
    %39 = vector.shape_cast %37 : vector<128x1xi1> to vector<128x1xi1>
    %40 = vector.broadcast %39 : vector<128x1xi1> to vector<128x128xi1>
    %41 = vector.shape_cast %26 : vector<1x128xf32> to vector<1x128xf32>
    %42 = vector.broadcast %41 : vector<1x128xf32> to vector<128x128xf32>
    %43 = arith.select %40, %42, %38 : vector<128x128xi1>, vector<128x128xf32>
    %44 = arith.truncf %35 : vector<128x128xf32> to vector<128x128xbf16>
    %45 = arith.truncf %6 : vector<128x128xf32> to vector<128x128xbf16>
    %46 = arith.truncf %43 : vector<128x128xf32> to vector<128x128xbf16>
    %47 = tpu.concatenate %44, %45, %46 in 1 : vector<128x128xbf16>, vector<128x128xbf16>, vector<128x128xbf16> -> vector<128x384xbf16>
    %c0_14 = arith.constant 0 : index
    %c0_15 = arith.constant 0 : index
    %48 = vector.load %arg3[%c0_14, %c0_15] : memref<384x128xbf16, #tpu.memory_space<vmem>>, vector<384x128xbf16>
    %cst_16 = arith.constant dense<0.000000e+00> : vector<128x128xf32>
    %49 = tpu.matmul %47, %48, %cst_16 {dimension_numbers = #tpu.dot_dimension_numbers<[1], [0], [0], [1], [0, 0, 1, 1], [], []>} : vector<128x384xbf16>, vector<384x128xbf16>, vector<128x128xf32> -> vector<128x128xf32>
    %c0_17 = arith.constant 0 : index
    %c0_18 = arith.constant 0 : index
    %c0_19 = arith.constant 0 : index
    %50 = vector.load %arg4[%c0_17, %c0_18, %c0_19] : memref<1x128x128xf32, #tpu.memory_space<vmem>>, vector<1x128x128xf32>
    %51 = vector.shape_cast %50 : vector<1x128x128xf32> to vector<128x128xf32>
    %52 = vector.shape_cast %49 : vector<128x128xf32> to vector<1x128x128xf32>
    tpu.vector_store %arg4[%c0_17, %c0_18, %c0_19], %52 {strides = array<i32>} : memref<1x128x128xf32, #tpu.memory_space<vmem>>, vector<1x128x128xf32>,
    %cst_20 = arith.constant dense<0.000000e+00> : vector<128xf32>
    %53 = vector.multi_reduction <add>, %49, %cst_20 [0] : vector<128x128xf32> to vector<128xf32>
    %54 = vector.shape_cast %53 : vector<128xf32> to vector<1x128xf32>
    %55 = arith.mulf %49, %49 : vector<128x128xf32>
    %cst_21 = arith.constant dense<0.000000e+00> : vector<128xf32>
    %56 = vector.multi_reduction <add>, %55, %cst_21 [0] : vector<128x128xf32> to vector<128xf32>
    %57 = vector.shape_cast %56 : vector<128xf32> to vector<1x128xf32>
    %58 = tpu.concatenate %54, %57 in 0 : vector<1x128xf32>, vector<1x128xf32> -> vector<2x128xf32>
    %c0_22 = arith.constant 0 : index
    %c0_23 = arith.constant 0 : index
    %c0_24 = arith.constant 0 : index
    %c0_25 = arith.constant 0 : index
    %59 = vector.load %arg5[%c0_22, %c0_23, %c0_24, %c0_25] : memref<1x1x2x128xf32, #tpu.memory_space<vmem>>, vector<1x1x2x128xf32>
    %60 = vector.shape_cast %59 : vector<1x1x2x128xf32> to vector<2x128xf32>
    %61 = vector.shape_cast %58 : vector<2x128xf32> to vector<1x1x2x128xf32>
    tpu.vector_store %arg5[%c0_22, %c0_23, %c0_24, %c0_25], %61 {strides = array<i32>} : memref<1x1x2x128xf32, #tpu.memory_space<vmem>>, vector<1x1x2x128xf32>,
    return
  }
  func.func @transform_0(%arg0: i32, %arg1: i32) -> (i32, i32, i32) {
    %c0_i32 = arith.constant 0 : i32
    %c0_i32_0 = arith.constant 0 : i32
    %c0_i32_1 = arith.constant 0 : i32
    return %arg0, %c0_i32, %c0_i32_0 : i32, i32, i32
  }
  func.func @transform_1(%arg0: i32, %arg1: i32) -> (i32, i32) {
    %c0_i32 = arith.constant 0 : i32
    %c0_i32_0 = arith.constant 0 : i32
    %c0_i32_1 = arith.constant 0 : i32
    return %c0_i32, %c0_i32_0 : i32, i32
  }
  func.func @transform_2(%arg0: i32, %arg1: i32) -> (i32, i32, i32) {
    %c0_i32 = arith.constant 0 : i32
    %c0_i32_0 = arith.constant 0 : i32
    return %arg0, %arg1, %c0_i32 : i32, i32, i32
  }
  func.func @transform_3(%arg0: i32, %arg1: i32) -> (i32, i32, i32, i32) {
    %c0_i32 = arith.constant 0 : i32
    %c0_i32_0 = arith.constant 0 : i32
    %c0_i32_1 = arith.constant 0 : i32
    return %arg0, %arg1, %c0_i32, %c0_i32_0 : i32, i32, i32, i32
  }
}

module attributes {stable_mosaic.version = 11 : i64} {
  func.func @_bn1_conv2_kernel(%arg0: i32, %arg1: i32, %arg2: memref<1x256x128xf32, #tpu.memory_space<vmem>>, %arg3: memref<1x128xf32, #tpu.memory_space<vmem>>, %arg4: memref<1x128xf32, #tpu.memory_space<vmem>>, %arg5: memref<384x128xbf16, #tpu.memory_space<vmem>>, %arg6: memref<1x128x128xf32, #tpu.memory_space<vmem>>, %arg7: memref<1x1x2x128xf32, #tpu.memory_space<vmem>>) attributes {dimension_semantics = [#tpu.dimension_semantics<parallel>, #tpu.dimension_semantics<parallel>], iteration_bounds = array<i64: 2, 2>, scalar_prefetch = 0 : i64, scratch_operands = 0 : i64, tpu.core_type = #tpu.core_type<tc>, window_params = [{transform_indices = @transform_0, window_bounds = array<i64: 1, 256, 128>}, {pipeline_mode = #tpu.pipeline_mode<synchronous>, transform_indices = @transform_1, window_bounds = array<i64: 1, 128>}, {pipeline_mode = #tpu.pipeline_mode<synchronous>, transform_indices = @transform_2, window_bounds = array<i64: 1, 128>}, {pipeline_mode = #tpu.pipeline_mode<synchronous>, transform_indices = @transform_3, window_bounds = array<i64: 384, 128>}, {transform_indices = @transform_4, window_bounds = array<i64: 1, 128, 128>}, {transform_indices = @transform_5, window_bounds = array<i64: 1, 1, 2, 128>}]} {
    %c0 = arith.constant 0 : index
    %c0_0 = arith.constant 0 : index
    %0 = vector.load %arg3[%c0, %c0_0] : memref<1x128xf32, #tpu.memory_space<vmem>>, vector<1x128xf32>
    %c0_1 = arith.constant 0 : index
    %c0_2 = arith.constant 0 : index
    %1 = vector.load %arg4[%c0_1, %c0_2] : memref<1x128xf32, #tpu.memory_space<vmem>>, vector<1x128xf32>
    %c128_i32 = arith.constant 128 : i32
    %2 = arith.muli %arg1, %c128_i32 : i32
    %3 = tpu.assume_multiple %2, 128 : i32
    %c0_3 = arith.constant 0 : index
    %4 = arith.index_cast %3 : i32 to index
    %c0_4 = arith.constant 0 : index
    %5 = vector.load %arg2[%c0_3, %4, %c0_4] : memref<1x256x128xf32, #tpu.memory_space<vmem>>, vector<1x128x128xf32>
    %6 = vector.shape_cast %5 : vector<1x128x128xf32> to vector<128x128xf32>
    %7 = vector.broadcast %0 : vector<1x128xf32> to vector<128x128xf32>
    %8 = arith.mulf %6, %7 : vector<128x128xf32>
    %9 = vector.broadcast %1 : vector<1x128xf32> to vector<128x128xf32>
    %10 = arith.addf %8, %9 : vector<128x128xf32>
    %cst = arith.constant 0.000000e+00 : f32
    %11 = vector.broadcast %cst : f32 to vector<128x128xf32>
    %12 = arith.maximumf %10, %11 : vector<128x128xf32>
    %c1_i32 = arith.constant 1 : i32
    %13 = arith.subi %3, %c1_i32 : i32
    %c0_i32 = arith.constant 0 : i32
    %14 = arith.maxsi %13, %c0_i32 : i32
    %c0_5 = arith.constant 0 : index
    %15 = arith.index_cast %14 : i32 to index
    %c0_6 = arith.constant 0 : index
    %16 = vector.load %arg2[%c0_5, %15, %c0_6] : memref<1x256x128xf32, #tpu.memory_space<vmem>>, vector<1x1x128xf32>
    %17 = vector.shape_cast %16 : vector<1x1x128xf32> to vector<1x128xf32>
    %18 = arith.mulf %17, %0 : vector<1x128xf32>
    %19 = arith.addf %18, %1 : vector<1x128xf32>
    %cst_7 = arith.constant 0.000000e+00 : f32
    %20 = vector.broadcast %cst_7 : f32 to vector<1x128xf32>
    %21 = arith.maximumf %19, %20 : vector<1x128xf32>
    %c0_i32_8 = arith.constant 0 : i32
    %22 = arith.cmpi eq, %arg1, %c0_i32_8 : i32
    %cst_9 = arith.constant 0.000000e+00 : f32
    %23 = vector.broadcast %cst_9 : f32 to vector<1x128xf32>
    %24 = arith.select %22, %23, %21 : vector<1x128xf32>
    %c128_i32_10 = arith.constant 128 : i32
    %25 = arith.addi %3, %c128_i32_10 : i32
    %c255_i32 = arith.constant 255 : i32
    %26 = arith.minsi %25, %c255_i32 : i32
    %c0_11 = arith.constant 0 : index
    %27 = arith.index_cast %26 : i32 to index
    %c0_12 = arith.constant 0 : index
    %28 = vector.load %arg2[%c0_11, %27, %c0_12] : memref<1x256x128xf32, #tpu.memory_space<vmem>>, vector<1x1x128xf32>
    %29 = vector.shape_cast %28 : vector<1x1x128xf32> to vector<1x128xf32>
    %30 = arith.mulf %29, %0 : vector<1x128xf32>
    %31 = arith.addf %30, %1 : vector<1x128xf32>
    %cst_13 = arith.constant 0.000000e+00 : f32
    %32 = vector.broadcast %cst_13 : f32 to vector<1x128xf32>
    %33 = arith.maximumf %31, %32 : vector<1x128xf32>
    %c1_i32_14 = arith.constant 1 : i32
    %34 = arith.cmpi eq, %arg1, %c1_i32_14 : i32
    %cst_15 = arith.constant 0.000000e+00 : f32
    %35 = vector.broadcast %cst_15 : f32 to vector<1x128xf32>
    %36 = arith.select %34, %35, %33 : vector<1x128xf32>
    %37 = tpu.iota {dimensions = array<i32: 0>} : vector<128x1xi32>
    %c0_i32_16 = arith.constant 0 : i32
    %38 = vector.broadcast %c0_i32_16 : i32 to vector<128x1xi32>
    %39 = arith.cmpi eq, %37, %38 : vector<128x1xi32>
    %c1_i32_17 = arith.constant 1 : i32
    %40 = tpu.dynamic_rotate %12 by %c1_i32_17 dim 0 : vector<128x128xf32>, i32 -> vector<128x128xf32>
    %41 = vector.shape_cast %39 : vector<128x1xi1> to vector<128x1xi1>
    %42 = vector.broadcast %41 : vector<128x1xi1> to vector<128x128xi1>
    %43 = vector.shape_cast %24 : vector<1x128xf32> to vector<1x128xf32>
    %44 = vector.broadcast %43 : vector<1x128xf32> to vector<128x128xf32>
    %45 = arith.select %42, %44, %40 : vector<128x128xi1>, vector<128x128xf32>
    %c127_i32 = arith.constant 127 : i32
    %46 = vector.broadcast %c127_i32 : i32 to vector<128x1xi32>
    %47 = arith.cmpi eq, %37, %46 : vector<128x1xi32>
    %c127_i32_18 = arith.constant 127 : i32
    %48 = tpu.dynamic_rotate %12 by %c127_i32_18 dim 0 : vector<128x128xf32>, i32 -> vector<128x128xf32>
    %49 = vector.shape_cast %47 : vector<128x1xi1> to vector<128x1xi1>
    %50 = vector.broadcast %49 : vector<128x1xi1> to vector<128x128xi1>
    %51 = vector.shape_cast %36 : vector<1x128xf32> to vector<1x128xf32>
    %52 = vector.broadcast %51 : vector<1x128xf32> to vector<128x128xf32>
    %53 = arith.select %50, %52, %48 : vector<128x128xi1>, vector<128x128xf32>
    %54 = arith.truncf %45 : vector<128x128xf32> to vector<128x128xbf16>
    %55 = arith.truncf %12 : vector<128x128xf32> to vector<128x128xbf16>
    %56 = arith.truncf %53 : vector<128x128xf32> to vector<128x128xbf16>
    %57 = tpu.concatenate %54, %55, %56 in 1 : vector<128x128xbf16>, vector<128x128xbf16>, vector<128x128xbf16> -> vector<128x384xbf16>
    %c0_19 = arith.constant 0 : index
    %c0_20 = arith.constant 0 : index
    %58 = vector.load %arg5[%c0_19, %c0_20] : memref<384x128xbf16, #tpu.memory_space<vmem>>, vector<384x128xbf16>
    %cst_21 = arith.constant dense<0.000000e+00> : vector<128x128xf32>
    %59 = tpu.matmul %57, %58, %cst_21 {dimension_numbers = #tpu.dot_dimension_numbers<[1], [0], [0], [1], [0, 0, 1, 1], [], []>} : vector<128x384xbf16>, vector<384x128xbf16>, vector<128x128xf32> -> vector<128x128xf32>
    %c0_22 = arith.constant 0 : index
    %c0_23 = arith.constant 0 : index
    %c0_24 = arith.constant 0 : index
    %60 = vector.load %arg6[%c0_22, %c0_23, %c0_24] : memref<1x128x128xf32, #tpu.memory_space<vmem>>, vector<1x128x128xf32>
    %61 = vector.shape_cast %60 : vector<1x128x128xf32> to vector<128x128xf32>
    %62 = vector.shape_cast %59 : vector<128x128xf32> to vector<1x128x128xf32>
    tpu.vector_store %arg6[%c0_22, %c0_23, %c0_24], %62 {strides = array<i32>} : memref<1x128x128xf32, #tpu.memory_space<vmem>>, vector<1x128x128xf32>,
    %cst_25 = arith.constant dense<0.000000e+00> : vector<128xf32>
    %63 = vector.multi_reduction <add>, %59, %cst_25 [0] : vector<128x128xf32> to vector<128xf32>
    %64 = vector.shape_cast %63 : vector<128xf32> to vector<1x128xf32>
    %65 = arith.mulf %59, %59 : vector<128x128xf32>
    %cst_26 = arith.constant dense<0.000000e+00> : vector<128xf32>
    %66 = vector.multi_reduction <add>, %65, %cst_26 [0] : vector<128x128xf32> to vector<128xf32>
    %67 = vector.shape_cast %66 : vector<128xf32> to vector<1x128xf32>
    %68 = tpu.concatenate %64, %67 in 0 : vector<1x128xf32>, vector<1x128xf32> -> vector<2x128xf32>
    %c0_27 = arith.constant 0 : index
    %c0_28 = arith.constant 0 : index
    %c0_29 = arith.constant 0 : index
    %c0_30 = arith.constant 0 : index
    %69 = vector.load %arg7[%c0_27, %c0_28, %c0_29, %c0_30] : memref<1x1x2x128xf32, #tpu.memory_space<vmem>>, vector<1x1x2x128xf32>
    %70 = vector.shape_cast %69 : vector<1x1x2x128xf32> to vector<2x128xf32>
    %71 = vector.shape_cast %68 : vector<2x128xf32> to vector<1x1x2x128xf32>
    tpu.vector_store %arg7[%c0_27, %c0_28, %c0_29, %c0_30], %71 {strides = array<i32>} : memref<1x1x2x128xf32, #tpu.memory_space<vmem>>, vector<1x1x2x128xf32>,
    return
  }
  func.func @transform_0(%arg0: i32, %arg1: i32) -> (i32, i32, i32) {
    %c0_i32 = arith.constant 0 : i32
    %c0_i32_0 = arith.constant 0 : i32
    %c0_i32_1 = arith.constant 0 : i32
    return %arg0, %c0_i32, %c0_i32_0 : i32, i32, i32
  }
  func.func @transform_1(%arg0: i32, %arg1: i32) -> (i32, i32) {
    %c0_i32 = arith.constant 0 : i32
    %c0_i32_0 = arith.constant 0 : i32
    %c0_i32_1 = arith.constant 0 : i32
    return %c0_i32, %c0_i32_0 : i32, i32
  }
  func.func @transform_2(%arg0: i32, %arg1: i32) -> (i32, i32) {
    %c0_i32 = arith.constant 0 : i32
    %c0_i32_0 = arith.constant 0 : i32
    %c0_i32_1 = arith.constant 0 : i32
    return %c0_i32, %c0_i32_0 : i32, i32
  }
  func.func @transform_3(%arg0: i32, %arg1: i32) -> (i32, i32) {
    %c0_i32 = arith.constant 0 : i32
    %c0_i32_0 = arith.constant 0 : i32
    %c0_i32_1 = arith.constant 0 : i32
    return %c0_i32, %c0_i32_0 : i32, i32
  }
  func.func @transform_4(%arg0: i32, %arg1: i32) -> (i32, i32, i32) {
    %c0_i32 = arith.constant 0 : i32
    %c0_i32_0 = arith.constant 0 : i32
    return %arg0, %arg1, %c0_i32 : i32, i32, i32
  }
  func.func @transform_5(%arg0: i32, %arg1: i32) -> (i32, i32, i32, i32) {
    %c0_i32 = arith.constant 0 : i32
    %c0_i32_0 = arith.constant 0 : i32
    %c0_i32_1 = arith.constant 0 : i32
    return %arg0, %arg1, %c0_i32, %c0_i32_0 : i32, i32, i32, i32
  }
}

module attributes {stable_mosaic.version = 11 : i64} {
  func.func @_bn2_attn_relu_kernel(%arg0: i32, %arg1: i32, %arg2: memref<1x128x128xf32, #tpu.memory_space<vmem>>, %arg3: memref<1x128xf32, #tpu.memory_space<vmem>>, %arg4: memref<1x128xf32, #tpu.memory_space<vmem>>, %arg5: memref<1x1x128xf32, #tpu.memory_space<vmem>>, %arg6: memref<128x128xbf16, #tpu.memory_space<vmem>>, %arg7: memref<128x128xbf16, #tpu.memory_space<vmem>>, %arg8: memref<1x128x128xf32, #tpu.memory_space<vmem>>) attributes {dimension_semantics = [#tpu.dimension_semantics<parallel>, #tpu.dimension_semantics<parallel>], iteration_bounds = array<i64: 2, 2>, scalar_prefetch = 0 : i64, scratch_operands = 0 : i64, tpu.core_type = #tpu.core_type<tc>, window_params = [{transform_indices = @transform_0, window_bounds = array<i64: 1, 128, 128>}, {pipeline_mode = #tpu.pipeline_mode<synchronous>, transform_indices = @transform_1, window_bounds = array<i64: 1, 128>}, {pipeline_mode = #tpu.pipeline_mode<synchronous>, transform_indices = @transform_2, window_bounds = array<i64: 1, 128>}, {transform_indices = @transform_3, window_bounds = array<i64: 1, 1, 128>}, {pipeline_mode = #tpu.pipeline_mode<synchronous>, transform_indices = @transform_4, window_bounds = array<i64: 128, 128>}, {pipeline_mode = #tpu.pipeline_mode<synchronous>, transform_indices = @transform_5, window_bounds = array<i64: 128, 128>}, {transform_indices = @transform_6, window_bounds = array<i64: 1, 128, 128>}]} {
    %c0 = arith.constant 0 : index
    %c0_0 = arith.constant 0 : index
    %c0_1 = arith.constant 0 : index
    %0 = vector.load %arg2[%c0, %c0_0, %c0_1] : memref<1x128x128xf32, #tpu.memory_space<vmem>>, vector<1x128x128xf32>
    %1 = vector.shape_cast %0 : vector<1x128x128xf32> to vector<128x128xf32>
    %c0_2 = arith.constant 0 : index
    %c0_3 = arith.constant 0 : index
    %2 = vector.load %arg3[%c0_2, %c0_3] : memref<1x128xf32, #tpu.memory_space<vmem>>, vector<1x128xf32>
    %3 = vector.broadcast %2 : vector<1x128xf32> to vector<128x128xf32>
    %4 = arith.mulf %1, %3 : vector<128x128xf32>
    %c0_4 = arith.constant 0 : index
    %c0_5 = arith.constant 0 : index
    %5 = vector.load %arg4[%c0_4, %c0_5] : memref<1x128xf32, #tpu.memory_space<vmem>>, vector<1x128xf32>
    %6 = vector.broadcast %5 : vector<1x128xf32> to vector<128x128xf32>
    %7 = arith.addf %4, %6 : vector<128x128xf32>
    %c0_6 = arith.constant 0 : index
    %c0_7 = arith.constant 0 : index
    %c0_8 = arith.constant 0 : index
    %8 = vector.load %arg5[%c0_6, %c0_7, %c0_8] : memref<1x1x128xf32, #tpu.memory_space<vmem>>, vector<1x1x128xf32>
    %9 = vector.shape_cast %8 : vector<1x1x128xf32> to vector<1x128xf32>
    %10 = arith.truncf %9 : vector<1x128xf32> to vector<1x128xbf16>
    %c0_9 = arith.constant 0 : index
    %c0_10 = arith.constant 0 : index
    %11 = vector.load %arg6[%c0_9, %c0_10] : memref<128x128xbf16, #tpu.memory_space<vmem>>, vector<128x128xbf16>
    %cst = arith.constant dense<0.000000e+00> : vector<1x128xf32>
    %12 = tpu.matmul %10, %11, %cst {dimension_numbers = #tpu.dot_dimension_numbers<[1], [0], [0], [1], [0, 0, 1, 1], [], []>} : vector<1x128xbf16>, vector<128x128xbf16>, vector<1x128xf32> -> vector<1x128xf32>
    %cst_11 = arith.constant 0.000000e+00 : f32
    %13 = vector.broadcast %cst_11 : f32 to vector<1x128xf32>
    %14 = arith.maximumf %12, %13 : vector<1x128xf32>
    %15 = arith.truncf %14 : vector<1x128xf32> to vector<1x128xbf16>
    %c0_12 = arith.constant 0 : index
    %c0_13 = arith.constant 0 : index
    %16 = vector.load %arg7[%c0_12, %c0_13] : memref<128x128xbf16, #tpu.memory_space<vmem>>, vector<128x128xbf16>
    %cst_14 = arith.constant dense<0.000000e+00> : vector<1x128xf32>
    %17 = tpu.matmul %15, %16, %cst_14 {dimension_numbers = #tpu.dot_dimension_numbers<[1], [0], [0], [1], [0, 0, 1, 1], [], []>} : vector<1x128xbf16>, vector<128x128xbf16>, vector<1x128xf32> -> vector<1x128xf32>
    %18 = arith.negf %17 : vector<1x128xf32>
    %19 = math.exp %18 : vector<1x128xf32>
    %cst_15 = arith.constant 1.000000e+00 : f32
    %20 = vector.broadcast %cst_15 : f32 to vector<1x128xf32>
    %21 = arith.addf %20, %19 : vector<1x128xf32>
    %22 = arith.divf %20, %21 : vector<1x128xf32>
    %23 = vector.broadcast %22 : vector<1x128xf32> to vector<128x128xf32>
    %24 = arith.mulf %7, %23 : vector<128x128xf32>
    %cst_16 = arith.constant 0.000000e+00 : f32
    %25 = vector.broadcast %cst_16 : f32 to vector<128x128xf32>
    %26 = arith.maximumf %24, %25 : vector<128x128xf32>
    %c0_17 = arith.constant 0 : index
    %c0_18 = arith.constant 0 : index
    %c0_19 = arith.constant 0 : index
    %27 = vector.load %arg8[%c0_17, %c0_18, %c0_19] : memref<1x128x128xf32, #tpu.memory_space<vmem>>, vector<1x128x128xf32>
    %28 = vector.shape_cast %27 : vector<1x128x128xf32> to vector<128x128xf32>
    %29 = vector.shape_cast %26 : vector<128x128xf32> to vector<1x128x128xf32>
    tpu.vector_store %arg8[%c0_17, %c0_18, %c0_19], %29 {strides = array<i32>} : memref<1x128x128xf32, #tpu.memory_space<vmem>>, vector<1x128x128xf32>,
    return
  }
  func.func @transform_0(%arg0: i32, %arg1: i32) -> (i32, i32, i32) {
    %c0_i32 = arith.constant 0 : i32
    %c0_i32_0 = arith.constant 0 : i32
    return %arg0, %arg1, %c0_i32 : i32, i32, i32
  }
  func.func @transform_1(%arg0: i32, %arg1: i32) -> (i32, i32) {
    %c0_i32 = arith.constant 0 : i32
    %c0_i32_0 = arith.constant 0 : i32
    %c0_i32_1 = arith.constant 0 : i32
    return %c0_i32, %c0_i32_0 : i32, i32
  }
  func.func @transform_2(%arg0: i32, %arg1: i32) -> (i32, i32) {
    %c0_i32 = arith.constant 0 : i32
    %c0_i32_0 = arith.constant 0 : i32
    %c0_i32_1 = arith.constant 0 : i32
    return %c0_i32, %c0_i32_0 : i32, i32
  }
  func.func @transform_3(%arg0: i32, %arg1: i32) -> (i32, i32, i32) {
    %c0_i32 = arith.constant 0 : i32
    %c0_i32_0 = arith.constant 0 : i32
    %c0_i32_1 = arith.constant 0 : i32
    return %arg0, %c0_i32, %c0_i32_0 : i32, i32, i32
  }
  func.func @transform_4(%arg0: i32, %arg1: i32) -> (i32, i32) {
    %c0_i32 = arith.constant 0 : i32
    %c0_i32_0 = arith.constant 0 : i32
    %c0_i32_1 = arith.constant 0 : i32
    return %c0_i32, %c0_i32_0 : i32, i32
  }
  func.func @transform_5(%arg0: i32, %arg1: i32) -> (i32, i32) {
    %c0_i32 = arith.constant 0 : i32
    %c0_i32_0 = arith.constant 0 : i32
    %c0_i32_1 = arith.constant 0 : i32
    return %c0_i32, %c0_i32_0 : i32, i32
  }
  func.func @transform_6(%arg0: i32, %arg1: i32) -> (i32, i32, i32) {
    %c0_i32 = arith.constant 0 : i32
    %c0_i32_0 = arith.constant 0 : i32
    return %arg0, %arg1, %c0_i32 : i32, i32, i32
  }
}

</mosaic_0001>

<llo_original>
// kernel: down_forward.5
$region0: #{down_forward.5}
  #allocation0 [shape = 'u32[]', space=smem, size = 0x4, offset = 0x4, fixed_abs, tag = 'smem constant byte address 0x4 - core index']
  #allocation1 [shape = 'u32[144,128]{1,0:T(1,128)}', space=vmem, size = 0x12000, scoped, tag = 'internal scratch']
  %s0 = inlined_call_operand.vmem [shape: f32[2,256,128], index: 0, kind: input, shape index: {}]
  %s1 = inlined_call_operand.vmem [shape: f32[1,128], index: 1, kind: input, shape index: {}]
  %s2 = inlined_call_operand.vmem [shape: f32[1,128], index: 2, kind: input, shape index: {}]
  %s3 = inlined_call_operand.vmem [shape: f32[2,1,128], index: 3, kind: input, shape index: {}]
  %s4 = inlined_call_operand.vmem [shape: bf16[128,128], index: 4, kind: input, shape index: {}]
  %s5 = inlined_call_operand.vmem [shape: bf16[128,128], index: 5, kind: input, shape index: {}]
  %s6 = inlined_call_operand.vmem [shape: f32[2,256,128], index: 6, kind: output, shape index: {}]
  %s7 = sld [smem:[#allocation0]]
  $region57: #{down_forward.5} parent=0
    _
  %s9 = ssub.s32 1, %s7
  %s10 = scalar_select 0, %s9, %s7
  loop: start=0, step=1, limit=6
  $region2: #{down_forward.5} parent=0 // loop_pre_header
    _
  $region3: #{down_forward.5} parent=0 // loop_header
    %s12 = sphi 0, %s16
    %p13 = scmp.ge.s32.totalorder %s12, 6
    %s19 = sphi 0, %s31
    %s20 = sphi 0, %s27
    %s21 = sphi 0, %s19
    %s22 = sphi 0, %s20
    %s23 = sphi 0, %s21
    %s24 = sphi 0, %s22
    %s36 = sphi 0, %s38
    %s39 = sphi 0, %s36
    %s40 = sphi 0, %s39
    %s56 = sphi 0, %s40
    %s60 = sphi 0, %s60
    %s62 = sphi 0, %s60
    %s63 = sphi 0, %s62
    %s77 = sphi 0, %s63
    %s81 = sphi 0, %s81
    %s83 = sphi 0, %s81
    %s84 = sphi 0, %s83
    %s98 = sphi 0, %s84
    %s104 = sphi 0, %s106
    %s107 = sphi 0, %s104
    %s108 = sphi 0, %s107
    %s124 = sphi 0, %s108
    %s128 = sphi 0, %s128
    %s130 = sphi 0, %s128
    %s131 = sphi 0, %s130
    %s145 = sphi 0, %s131
    %s149 = sphi 0, %s149
    %s151 = sphi 0, %s149
    %s152 = sphi 0, %s151
    %s166 = sphi 0, %s152
    %s174 = sphi 0, %s176
    %s177 = sphi 0, %s174
    %s178 = sphi 0, %s177
    %s194 = sphi 0, %s178
  $region4: #{down_forward.5} parent=0 // loop_header_branch
    %15 = sbr.rel (%p13) target = $region8
  $region5: #{down_forward.5} parent=0 // loop_body
    %s17 = ssub.s32 %s12, 1
    %s18 = ssub.s32 %s12, 2
    %s25 = sadd.s32 1, %s20
    %p26 = scmp.ge.s32.totalorder %s25, 2
    %s27 = scalar_select %p26, 0, %s25
    %s28 = sadd.s32 1, %s19
    %s29 = scalar_select %p26, %s28, %s19
    %p30 = scmp.ge.s32.totalorder %s29, 2
    %s31 = scalar_select %p30, 0, %s29
    %s32 = ssub.s32 %s19, %s31
    %s33 = ssub.s32 %s20, %s27
    %s34 = sor.u32 %s32, %s33
    %p35 = scmp.eq.s32.totalorder %s34, 0
    %s37 = sadd.s32 %s36, 1
    %s38 = scalar_select %p35, %s36, %s37
    %p41 = pneg %p35
    %p42 = scmp.eq.s32.totalorder %s12, 3
    %p43 = por %p41, %p42
    %p44 = scmp.ne.s32.totalorder %s36, %s39
    %p45 = scmp.eq.s32.totalorder %s12, 0
    %p46 = por %p44, %p45
    %p47 = scmp.ne.s32.totalorder %s36, %s39
    %p48 = scmp.eq.s32.totalorder %s17, 3
    %p49 = por %p47, %p48
    %p50 = scmp.ne.s32.totalorder %s39, %s40
    %p51 = scmp.eq.s32.totalorder %s17, 0
    %p52 = por %p50, %p51
    %p53 = scmp.ne.s32.totalorder %s39, %s40
    %p54 = scmp.eq.s32.totalorder %s18, 3
    %p55 = por %p53, %p54
    %p57 = scmp.ne.s32.totalorder %s40, %s56
    %p58 = scmp.eq.s32.totalorder %s18, 0
    %p59 = por %p57, %p58
    %s61 = sadd.s32 %s60, 1
    %p64 = scmp.eq.s32.totalorder %s12, 3
    %p65 = scmp.ne.s32.totalorder %s60, %s62
    %p66 = scmp.eq.s32.totalorder %s12, 0
    %p67 = por %p65, %p66
    %p68 = scmp.ne.s32.totalorder %s60, %s62
    %p69 = scmp.eq.s32.totalorder %s17, 3
    %p70 = por %p68, %p69
    %p71 = scmp.ne.s32.totalorder %s62, %s63
    %p72 = scmp.eq.s32.totalorder %s17, 0
    %p73 = por %p71, %p72
    %p74 = scmp.ne.s32.totalorder %s62, %s63
    %p75 = scmp.eq.s32.totalorder %s18, 3
    %p76 = por %p74, %p75
    %p78 = scmp.ne.s32.totalorder %s63, %s77
    %p79 = scmp.eq.s32.totalorder %s18, 0
    %p80 = por %p78, %p79
    %s82 = sadd.s32 %s81, 1
    %p85 = scmp.eq.s32.totalorder %s12, 3
    %p86 = scmp.ne.s32.totalorder %s81, %s83
    %p87 = scmp.eq.s32.totalorder %s12, 0
    %p88 = por %p86, %p87
    %p89 = scmp.ne.s32.totalorder %s81, %s83
    %p90 = scmp.eq.s32.totalorder %s17, 3
    %p91 = por %p89, %p90
    %p92 = scmp.ne.s32.totalorder %s83, %s84
    %p93 = scmp.eq.s32.totalorder %s17, 0
    %p94 = por %p92, %p93
    %p95 = scmp.ne.s32.totalorder %s83, %s84
    %p96 = scmp.eq.s32.totalorder %s18, 3
    %p97 = por %p95, %p96
    %p99 = scmp.ne.s32.totalorder %s84, %s98
    %p100 = scmp.eq.s32.totalorder %s18, 0
    %p101 = por %p99, %p100
    %s102 = ssub.s32 %s19, %s31
    %p103 = scmp.eq.s32.totalorder %s102, 0
    %s105 = sadd.s32 %s104, 1
    %s106 = scalar_select %p103, %s104, %s105
    %p109 = pneg %p103
    %p110 = scmp.eq.s32.totalorder %s12, 3
    %p111 = por %p109, %p110
    %p112 = scmp.ne.s32.totalorder %s104, %s107
    %p113 = scmp.eq.s32.totalorder %s12, 0
    %p114 = por %p112, %p113
    %p115 = scmp.ne.s32.totalorder %s104, %s107
    %p116 = scmp.eq.s32.totalorder %s17, 3
    %p117 = por %p115, %p116
    %p118 = scmp.ne.s32.totalorder %s107, %s108
    %p119 = scmp.eq.s32.totalorder %s17, 0
    %p120 = por %p118, %p119
    %p121 = scmp.ne.s32.totalorder %s107, %s108
    %p122 = scmp.eq.s32.totalorder %s18, 3
    %p123 = por %p121, %p122
    %p125 = scmp.ne.s32.totalorder %s108, %s124
    %p126 = scmp.eq.s32.totalorder %s18, 0
    %p127 = por %p125, %p126
    %s129 = sadd.s32 %s128, 1
    %p132 = scmp.eq.s32.totalorder %s12, 3
    %p133 = scmp.ne.s32.totalorder %s128, %s130
    %p134 = scmp.eq.s32.totalorder %s12, 0
    %p135 = por %p133, %p134
    %p136 = scmp.ne.s32.totalorder %s128, %s130
    %p137 = scmp.eq.s32.totalorder %s17, 3
    %p138 = por %p136, %p137
    %p139 = scmp.ne.s32.totalorder %s130, %s131
    %p140 = scmp.eq.s32.totalorder %s17, 0
    %p141 = por %p139, %p140
    %p142 = scmp.ne.s32.totalorder %s130, %s131
    %p143 = scmp.eq.s32.totalorder %s18, 3
    %p144 = por %p142, %p143
    %p146 = scmp.ne.s32.totalorder %s131, %s145
    %p147 = scmp.eq.s32.totalorder %s18, 0
    %p148 = por %p146, %p147
    %s150 = sadd.s32 %s149, 1
    %p153 = scmp.eq.s32.totalorder %s12, 3
    %p154 = scmp.ne.s32.totalorder %s149, %s151
    %p155 = scmp.eq.s32.totalorder %s12, 0
    %p156 = por %p154, %p155
    %p157 = scmp.ne.s32.totalorder %s149, %s151
    %p158 = scmp.eq.s32.totalorder %s17, 3
    %p159 = por %p157, %p158
    %p160 = scmp.ne.s32.totalorder %s151, %s152
    %p161 = scmp.eq.s32.totalorder %s17, 0
    %p162 = por %p160, %p161
    %p163 = scmp.ne.s32.totalorder %s151, %s152
    %p164 = scmp.eq.s32.totalorder %s18, 3
    %p165 = por %p163, %p164
    %p167 = scmp.ne.s32.totalorder %s152, %s166
    %p168 = scmp.eq.s32.totalorder %s18, 0
    %p169 = por %p167, %p168
    %s170 = ssub.s32 %s19, %s31
    %s171 = ssub.s32 %s20, %s27
    %s172 = sor.u32 %s170, %s171
    %p173 = scmp.eq.s32.totalorder %s172, 0
    %s175 = sadd.s32 %s174, 1
    %s176 = scalar_select %p173, %s174, %s175
    %p179 = pneg %p173
    %p180 = scmp.eq.s32.totalorder %s12, 3
    %p181 = por %p179, %p180
    %p182 = scmp.ne.s32.totalorder %s174, %s177
    %p183 = scmp.eq.s32.totalorder %s12, 0
    %p184 = por %p182, %p183
    %p185 = scmp.ne.s32.totalorder %s174, %s177
    %p186 = scmp.eq.s32.totalorder %s17, 3
    %p187 = por %p185, %p186
    %p188 = scmp.ne.s32.totalorder %s177, %s178
    %p189 = scmp.eq.s32.totalorder %s17, 0
    %p190 = por %p188, %p189
    %p191 = scmp.ne.s32.totalorder %s177, %s178
    %p192 = scmp.eq.s32.totalorder %s18, 3
    %p193 = por %p191, %p192
    %p195 = scmp.ne.s32.totalorder %s178, %s194
    %p196 = scmp.eq.s32.totalorder %s18, 0
    %p197 = por %p195, %p196
    %p198 = scmp.le.s32.totalorder 1, %s12
    %p199 = scmp.lt.s32.totalorder %s12, 5
    %p200 = pnand %p198, %p199
    %p201 = pneg %p200
    // Predicated region
    $region9: #{down_forward.5} parent=5 // pred_check
      _
    $region10: #{down_forward.5} parent=5 // pred_check_branch
      %203 = sbr.rel (%p200) target = $region12
    $region11: #{down_forward.5} parent=5 // pred_region
      %s204 = ssub.s32 %s12, 1
      // Predicated region
      $region13: #{down_forward.5} parent=11 // pred_check
        %p205 = pneg %p73
      $region14: #{down_forward.5} parent=11 // pred_check_branch
        %207 = sbr.rel (%p205) target = $region16
      $region15: #{down_forward.5} parent=11 // pred_region
        _
      $region16: #{down_forward.5} parent=11 // pred_fallthru
        _
      // Predicated region
      $region17: #{down_forward.5} parent=11 // pred_check
        %p208 = pneg %p94
      $region18: #{down_forward.5} parent=11 // pred_check_branch
        %210 = sbr.rel (%p208) target = $region20
      $region19: #{down_forward.5} parent=11 // pred_region
        _
      $region20: #{down_forward.5} parent=11 // pred_fallthru
        _
      // Predicated region
      $region21: #{down_forward.5} parent=11 // pred_check
        %p211 = pneg %p141
      $region22: #{down_forward.5} parent=11 // pred_check_branch
        %213 = sbr.rel (%p211) target = $region24
      $region23: #{down_forward.5} parent=11 // pred_region
        _
      $region24: #{down_forward.5} parent=11 // pred_fallthru
        _
      // Predicated region
      $region25: #{down_forward.5} parent=11 // pred_check
        %p214 = pneg %p162
      $region26: #{down_forward.5} parent=11 // pred_check_branch
        %216 = sbr.rel (%p214) target = $region28
      $region27: #{down_forward.5} parent=11 // pred_region
        _
      $region28: #{down_forward.5} parent=11 // pred_fallthru
        _
    $region12: #{down_forward.5} parent=5 // pred_fallthru
      _
    %p217 = scmp.lt.s32.totalorder %s12, 4
    // Predicated region
    $region29: #{down_forward.5} parent=5 // pred_check
      %p218 = pneg %p217
    $region30: #{down_forward.5} parent=5 // pred_check_branch
      %220 = sbr.rel (%p218) target = $region32
    $region31: #{down_forward.5} parent=5 // pred_region
      // Predicated region
      $region33: #{down_forward.5} parent=31 // pred_check
        %p221 = pneg %p46
      $region34: #{down_forward.5} parent=31 // pred_check_branch
        %223 = sbr.rel (%p221) target = $region36
      $region35: #{down_forward.5} parent=31 // pred_region
        %s224 = smul.u32 16, %s20
        %p225 = scmp.lt.s32.totalorder %s19, 1
        %s226 = scalar_select %p225, %s19, 1
        %p227 = scmp.lt.s32.totalorder %s224, 31
        %s228 = scalar_select %p227, %s224, 31
        %s229 = smul.addr %s226, 32
        %s230 = sadd.s32 %s228, %s229
        %s231 = smul.addr %s230, 8
        %s232 = scalar_lea.vmem %s0, %s231
        %s233 = smul.u32 16, %s20
      $region36: #{down_forward.5} parent=31 // pred_fallthru
        _
      // Predicated region
      $region37: #{down_forward.5} parent=31 // pred_check
        %p234 = pneg %p114
      $region38: #{down_forward.5} parent=31 // pred_check_branch
        %236 = sbr.rel (%p234) target = $region40
      $region39: #{down_forward.5} parent=31 // pred_region
        %p237 = scmp.lt.s32.totalorder %s19, 1
        %s238 = scalar_select %p237, %s19, 1
        %s239 = scalar_lea.vmem %s3, %s238
      $region40: #{down_forward.5} parent=31 // pred_fallthru
        _
    $region32: #{down_forward.5} parent=5 // pred_fallthru
      _
    %p240 = scmp.le.s32.totalorder 1, %s12
    %p241 = scmp.lt.s32.totalorder %s12, 5
    %p242 = pnand %p240, %p241
    %p243 = pneg %p242
    // Predicated region
    $region41: #{down_forward.5} parent=5 // pred_check
      _
    $region42: #{down_forward.5} parent=5 // pred_check_branch
      %245 = sbr.rel (%p242) target = $region44
    $region43: #{down_forward.5} parent=5 // pred_region
      %s246 = ssub.s32 %s12, 1
      %s247 = smul.u32 16, %s22
      %p248 = scmp.lt.s32.totalorder %s21, 1
      %s249 = scalar_select %p248, %s21, 1
      %p250 = scmp.lt.s32.totalorder %s247, 31
      %s251 = scalar_select %p250, %s247, 31
      %s252 = smul.addr %s249, 32
      %s253 = sadd.s32 %s251, %s252
      %s254 = smul.addr %s253, 8
      %s255 = scalar_lea.vmem %s0, %s254
      %p256 = pneg %p52
      %p257 = pneg %p49
      %p258 = pneg %p73
      %p259 = pneg %p70
      %p260 = pneg %p94
      %p261 = pneg %p91
      %p262 = scmp.lt.s32.totalorder %s21, 1
      %s263 = scalar_select %p262, %s21, 1
      %s264 = scalar_lea.vmem %s3, %s263
      %p265 = pneg %p120
      %p266 = pneg %p117
      %p267 = pneg %p141
      %p268 = pneg %p138
      %p269 = pneg %p162
      %p270 = pneg %p159
      %p271 = pneg %p190
      %p272 = pneg %p187
      %s273 = smul.u32 16, %s22
      %p274 = scmp.lt.s32.totalorder %s21, 1
      %s275 = scalar_select %p274, %s21, 1
      %p276 = scmp.lt.s32.totalorder %s273, 31
      %s277 = scalar_select %p276, %s273, 31
      %s278 = smul.addr %s275, 32
      %s279 = sadd.s32 %s277, %s278
      %s280 = smul.addr %s279, 8
      %s281 = scalar_lea.vmem %s6, %s280
      %s282 = smul.u32 16, %s22
      %p283 = scmp.lt.s32.totalorder %s21, 1
      %s284 = scalar_select %p283, %s21, 1
      %p285 = scmp.lt.s32.totalorder %s282, 31
      %s286 = scalar_select %p285, %s282, 31
      %s287 = smul.addr %s284, 32
      %s288 = sadd.s32 %s286, %s287
      %s289 = smul.addr %s288, 8
      %s290 = scalar_lea.vmem %s0, %s289
      %s291 = smul.u32 16, %s22
      %p292 = scmp.lt.s32.totalorder %s21, 1
      %s293 = scalar_select %p292, %s21, 1
      %s294 = scalar_lea.vmem %s3, %s293
      %s295 = smul.u32 16, %s22
      %p296 = scmp.lt.s32.totalorder %s21, 1
      %s297 = scalar_select %p296, %s21, 1
      %p298 = scmp.lt.s32.totalorder %s295, 31
      %s299 = scalar_select %p298, %s295, 31
      %s300 = smul.addr %s297, 32
      %s301 = sadd.s32 %s299, %s300
      %s302 = smul.addr %s301, 8
      %s303 = scalar_lea.vmem %s6, %s302
      %s304 = smul.u32 16, %s22
      %v306 = vld [vmem:[%s290] sm:$0xff]
      %v307 = vld [vmem:[%s290 + $0x8] sm:$0xff]
      %v308 = vld [vmem:[%s290 + $0x10] sm:$0xff]
      %v309 = vld [vmem:[%s290 + $0x18] sm:$0xff]
      %v310 = vld [vmem:[%s290 + $0x20] sm:$0xff]
      %v311 = vld [vmem:[%s290 + $0x28] sm:$0xff]
      %v312 = vld [vmem:[%s290 + $0x30] sm:$0xff]
      %v313 = vld [vmem:[%s290 + $0x38] sm:$0xff]
      %v314 = vld [vmem:[%s290 + $0x40] sm:$0xff]
      %v315 = vld [vmem:[%s290 + $0x48] sm:$0xff]
      %v316 = vld [vmem:[%s290 + $0x50] sm:$0xff]
      %v317 = vld [vmem:[%s290 + $0x58] sm:$0xff]
      %v318 = vld [vmem:[%s290 + $0x60] sm:$0xff]
      %v319 = vld [vmem:[%s290 + $0x68] sm:$0xff]
      %v320 = vld [vmem:[%s290 + $0x70] sm:$0xff]
      %v321 = vld [vmem:[%s290 + $0x78] sm:$0xff]
      %v322 = vld [vmem:[%s1] sm:$0x1]
      %v324 = vlaneseq
      %v325 = vshrl.u32 %v324, 7
      %v326 = vsub.s32 0, %v325
      %v327 = vrot.slane %v322, %v326
      %v329 = vmul.f32 %v306, %v327
      %v330 = vmul.f32 %v307, %v327
      %v331 = vmul.f32 %v308, %v327
      %v332 = vmul.f32 %v309, %v327
      %v333 = vmul.f32 %v310, %v327
      %v334 = vmul.f32 %v311, %v327
      %v335 = vmul.f32 %v312, %v327
      %v336 = vmul.f32 %v313, %v327
      %v337 = vmul.f32 %v314, %v327
      %v338 = vmul.f32 %v315, %v327
      %v339 = vmul.f32 %v316, %v327
      %v340 = vmul.f32 %v317, %v327
      %v341 = vmul.f32 %v318, %v327
      %v342 = vmul.f32 %v319, %v327
      %v343 = vmul.f32 %v320, %v327
      %v344 = vmul.f32 %v321, %v327
      %v345 = vld [vmem:[%s2] sm:$0x1]
      %v347 = vlaneseq
      %v348 = vshrl.u32 %v347, 7
      %v349 = vsub.s32 0, %v348
      %v350 = vrot.slane %v345, %v349
      %v352 = vadd.f32 %v329, %v350
      %v353 = vadd.f32 %v330, %v350
      %v354 = vadd.f32 %v331, %v350
      %v355 = vadd.f32 %v332, %v350
      %v356 = vadd.f32 %v333, %v350
      %v357 = vadd.f32 %v334, %v350
      %v358 = vadd.f32 %v335, %v350
      %v359 = vadd.f32 %v336, %v350
      %v360 = vadd.f32 %v337, %v350
      %v361 = vadd.f32 %v338, %v350
      %v362 = vadd.f32 %v339, %v350
      %v363 = vadd.f32 %v340, %v350
      %v364 = vadd.f32 %v341, %v350
      %v365 = vadd.f32 %v342, %v350
      %v366 = vadd.f32 %v343, %v350
      %v367 = vadd.f32 %v344, %v350
      %v368 = vld [vmem:[%s294] sm:$0x1]
      %v369 = vpack.c.bf16 %v368, %v368
      %v370 = vld [vmem:[%s4] sm:$0xf]
      %v371 = vld [vmem:[%s4 + $0x4] sm:$0xf]
      %v372 = vld [vmem:[%s4 + $0x8] sm:$0xf]
      %v373 = vld [vmem:[%s4 + $0xc] sm:$0xf]
      %v374 = vld [vmem:[%s4 + $0x10] sm:$0xf]
      %v375 = vld [vmem:[%s4 + $0x14] sm:$0xf]
      %v376 = vld [vmem:[%s4 + $0x18] sm:$0xf]
      %v377 = vld [vmem:[%s4 + $0x1c] sm:$0xf]
      %v378 = vld [vmem:[%s4 + $0x20] sm:$0xf]
      %v379 = vld [vmem:[%s4 + $0x24] sm:$0xf]
      %v380 = vld [vmem:[%s4 + $0x28] sm:$0xf]
      %v381 = vld [vmem:[%s4 + $0x2c] sm:$0xf]
      %v382 = vld [vmem:[%s4 + $0x30] sm:$0xf]
      %v383 = vld [vmem:[%s4 + $0x34] sm:$0xf]
      %v384 = vld [vmem:[%s4 + $0x38] sm:$0xf]
      %v385 = vld [vmem:[%s4 + $0x3c] sm:$0xf]
      %v402 = vunpack.c.l.b16 %v370
      %v403 = vunpack.c.l.b16 %v371
      %v404 = vunpack.c.l.b16 %v372
      %v405 = vunpack.c.l.b16 %v373
      %v406 = vunpack.c.l.b16 %v374
      %v407 = vunpack.c.l.b16 %v375
      %v408 = vunpack.c.l.b16 %v376
      %v409 = vunpack.c.l.b16 %v377
      %v410 = vunpack.c.l.b16 %v378
      %v411 = vunpack.c.l.b16 %v379
      %v412 = vunpack.c.l.b16 %v380
      %v413 = vunpack.c.l.b16 %v381
      %v414 = vunpack.c.l.b16 %v382
      %v415 = vunpack.c.l.b16 %v383
      %v416 = vunpack.c.l.b16 %v384
      %v417 = vunpack.c.l.b16 %v385
      %v418 = vpack.c.b16 %v403, %v402
      %v419 = vpack.c.b16 %v405, %v404
      %v420 = vpack.c.b16 %v407, %v406
      %v421 = vpack.c.b16 %v409, %v408
      %v422 = vpack.c.b16 %v411, %v410
      %v423 = vpack.c.b16 %v413, %v412
      %v424 = vpack.c.b16 %v415, %v414
      %v425 = vpack.c.b16 %v417, %v416
      %434 = vmatprep.subr.bf16.mxu0 0
      %435 = vmatpush1.bf16.msra.mxu0 %v418
      %436 = vmatprep.subr.bf16.mxu0 0
      %437 = vmatpush1.bf16.msra.mxu0 %v419
      %438 = vmatprep.subr.bf16.mxu0 0
      %439 = vmatpush1.bf16.msra.mxu0 %v420
      %440 = vmatprep.subr.bf16.mxu0 0
      %441 = vmatpush1.bf16.msra.mxu0 %v421
      %442 = vmatprep.subr.bf16.mxu0 0
      %443 = vmatpush1.bf16.msra.mxu0 %v422
      %444 = vmatprep.subr.bf16.mxu0 0
      %445 = vmatpush1.bf16.msra.mxu0 %v423
      %446 = vmatprep.subr.bf16.mxu0 0
      %447 = vmatpush1.bf16.msra.mxu0 %v424
      %448 = vmatprep.subr.bf16.mxu0 0
      %449 = vmatpush1.bf16.msra.mxu0 %v425
      %450 = vmatprep.subr.bf16.mxu0 0
      %451 = vmatpush1.bf16.msra.mxu0 0
      %452 = vmatprep.subr.bf16.mxu0 0
      %453 = vmatpush1.bf16.msra.mxu0 0
      %454 = vmatprep.subr.bf16.mxu0 0
      %455 = vmatpush1.bf16.msra.mxu0 0
      %456 = vmatprep.subr.bf16.mxu0 0
      %457 = vmatpush1.bf16.msra.mxu0 0
      %458 = vmatprep.subr.bf16.mxu0 0
      %459 = vmatpush1.bf16.msra.mxu0 0
      %460 = vmatprep.subr.bf16.mxu0 0
      %461 = vmatpush1.bf16.msra.mxu0 0
      %462 = vmatprep.subr.bf16.mxu0 0
      %463 = vmatpush1.bf16.msra.mxu0 0
      %464 = vmatprep.subr.bf16.mxu0 0
      %465 = vmatpush1.bf16.msra.mxu0 0
      %466 = vmatprep.mubr.bf16.mxu0 0
      %467 = vmatmul.mubr.bf16.gmra.mrb[0].mxu0 %v369
      %v468 = vpop.f32.mrb[0].mxu0
      %v469 = vadd.f32 0.0, %v468
      %v470 = vpop.f32.mrb[0].mxu0
      %v471 = vpop.f32.mrb[0].mxu0
      %v472 = vpop.f32.mrb[0].mxu0
      %473 = vdwg.mxu0
      %v474 = vmax.f32 %v469, 0.0
      %v475 = vpack.c.bf16 %v474, %v474
      %v476 = vld [vmem:[%s5] sm:$0xf]
      %v477 = vld [vmem:[%s5 + $0x4] sm:$0xf]
      %v478 = vld [vmem:[%s5 + $0x8] sm:$0xf]
      %v479 = vld [vmem:[%s5 + $0xc] sm:$0xf]
      %v480 = vld [vmem:[%s5 + $0x10] sm:$0xf]
      %v481 = vld [vmem:[%s5 + $0x14] sm:$0xf]
      %v482 = vld [vmem:[%s5 + $0x18] sm:$0xf]
      %v483 = vld [vmem:[%s5 + $0x1c] sm:$0xf]
      %v484 = vld [vmem:[%s5 + $0x20] sm:$0xf]
      %v485 = vld [vmem:[%s5 + $0x24] sm:$0xf]
      %v486 = vld [vmem:[%s5 + $0x28] sm:$0xf]
      %v487 = vld [vmem:[%s5 + $0x2c] sm:$0xf]
      %v488 = vld [vmem:[%s5 + $0x30] sm:$0xf]
      %v489 = vld [vmem:[%s5 + $0x34] sm:$0xf]
      %v490 = vld [vmem:[%s5 + $0x38] sm:$0xf]
      %v491 = vld [vmem:[%s5 + $0x3c] sm:$0xf]
      %v508 = vunpack.c.l.b16 %v476
      %v509 = vunpack.c.l.b16 %v477
      %v510 = vunpack.c.l.b16 %v478
      %v511 = vunpack.c.l.b16 %v479
      %v512 = vunpack.c.l.b16 %v480
      %v513 = vunpack.c.l.b16 %v481
      %v514 = vunpack.c.l.b16 %v482
      %v515 = vunpack.c.l.b16 %v483
      %v516 = vunpack.c.l.b16 %v484
      %v517 = vunpack.c.l.b16 %v485
      %v518 = vunpack.c.l.b16 %v486
      %v519 = vunpack.c.l.b16 %v487
      %v520 = vunpack.c.l.b16 %v488
      %v521 = vunpack.c.l.b16 %v489
      %v522 = vunpack.c.l.b16 %v490
      %v523 = vunpack.c.l.b16 %v491
      %v524 = vpack.c.b16 %v509, %v508
      %v525 = vpack.c.b16 %v511, %v510
      %v526 = vpack.c.b16 %v513, %v512
      %v527 = vpack.c.b16 %v515, %v514
      %v528 = vpack.c.b16 %v517, %v516
      %v529 = vpack.c.b16 %v519, %v518
      %v530 = vpack.c.b16 %v521, %v520
      %v531 = vpack.c.b16 %v523, %v522
      %540 = vmatprep.subr.bf16.mxu0 0
      %541 = vmatpush1.bf16.msra.mxu0 %v524
      %542 = vmatprep.subr.bf16.mxu0 0
      %543 = vmatpush1.bf16.msra.mxu0 %v525
      %544 = vmatprep.subr.bf16.mxu0 0
      %545 = vmatpush1.bf16.msra.mxu0 %v526
      %546 = vmatprep.subr.bf16.mxu0 0
      %547 = vmatpush1.bf16.msra.mxu0 %v527
      %548 = vmatprep.subr.bf16.mxu0 0
      %549 = vmatpush1.bf16.msra.mxu0 %v528
      %550 = vmatprep.subr.bf16.mxu0 0
      %551 = vmatpush1.bf16.msra.mxu0 %v529
      %552 = vmatprep.subr.bf16.mxu0 0
      %553 = vmatpush1.bf16.msra.mxu0 %v530
      %554 = vmatprep.subr.bf16.mxu0 0
      %555 = vmatpush1.bf16.msra.mxu0 %v531
      %556 = vmatprep.subr.bf16.mxu0 0
      %557 = vmatpush1.bf16.msra.mxu0 0
      %558 = vmatprep.subr.bf16.mxu0 0
      %559 = vmatpush1.bf16.msra.mxu0 0
      %560 = vmatprep.subr.bf16.mxu0 0
      %561 = vmatpush1.bf16.msra.mxu0 0
      %562 = vmatprep.subr.bf16.mxu0 0
      %563 = vmatpush1.bf16.msra.mxu0 0
      %564 = vmatprep.subr.bf16.mxu0 0
      %565 = vmatpush1.bf16.msra.mxu0 0
      %566 = vmatprep.subr.bf16.mxu0 0
      %567 = vmatpush1.bf16.msra.mxu0 0
      %568 = vmatprep.subr.bf16.mxu0 0
      %569 = vmatpush1.bf16.msra.mxu0 0
      %570 = vmatprep.subr.bf16.mxu0 0
      %571 = vmatpush1.bf16.msra.mxu0 0
      %572 = vmatprep.mubr.bf16.mxu0 0
      %573 = vmatmul.mubr.bf16.gmra.mrb[0].mxu0 %v475
      %v574 = vpop.f32.mrb[0].mxu0
      %v575 = vadd.f32 0.0, %v574
      %v576 = vpop.f32.mrb[0].mxu0
      %v577 = vpop.f32.mrb[0].mxu0
      %v578 = vpop.f32.mrb[0].mxu0
      %579 = vdwg.mxu0
      %v580 = vxor.u32 %v575, 2147483648
      %v581 = vmul.f32 %v580, 1.442695
      %v582 = vpow.pop %v581
      %v583 = vadd.f32 %v582, 1.0
      %v584 = vrcp.pop %v583
      %v585 = vmul.f32 1.0, %v584
      %v586 = vlaneseq
      %v587 = vshrl.u32 %v586, 7
      %v588 = vsub.s32 0, %v587
      %v589 = vrot.slane %v585, %v588
      %v590 = vmul.f32 %v352, %v589
      %v591 = vmul.f32 %v353, %v589
      %v592 = vmul.f32 %v354, %v589
      %v593 = vmul.f32 %v355, %v589
      %v594 = vmul.f32 %v356, %v589
      %v595 = vmul.f32 %v357, %v589
      %v596 = vmul.f32 %v358, %v589
      %v597 = vmul.f32 %v359, %v589
      %v598 = vmul.f32 %v360, %v589
      %v599 = vmul.f32 %v361, %v589
      %v600 = vmul.f32 %v362, %v589
      %v601 = vmul.f32 %v363, %v589
      %v602 = vmul.f32 %v364, %v589
      %v603 = vmul.f32 %v365, %v589
      %v604 = vmul.f32 %v366, %v589
      %v605 = vmul.f32 %v367, %v589
      %v606 = vmax.f32 %v590, 0.0
      %v607 = vmax.f32 %v591, 0.0
      %v608 = vmax.f32 %v592, 0.0
      %v609 = vmax.f32 %v593, 0.0
      %v610 = vmax.f32 %v594, 0.0
      %v611 = vmax.f32 %v595, 0.0
      %v612 = vmax.f32 %v596, 0.0
      %v613 = vmax.f32 %v597, 0.0
      %v614 = vmax.f32 %v598, 0.0
      %v615 = vmax.f32 %v599, 0.0
      %v616 = vmax.f32 %v600, 0.0
      %v617 = vmax.f32 %v601, 0.0
      %v618 = vmax.f32 %v602, 0.0
      %v619 = vmax.f32 %v603, 0.0
      %v620 = vmax.f32 %v604, 0.0
      %v621 = vmax.f32 %v605, 0.0
      %622 = vst [vmem:[%s303] sm:$0xff] %v606
      %623 = vst [vmem:[%s303 + $0x8] sm:$0xff] %v607
      %624 = vst [vmem:[%s303 + $0x10] sm:$0xff] %v608
      %625 = vst [vmem:[%s303 + $0x18] sm:$0xff] %v609
      %626 = vst [vmem:[%s303 + $0x20] sm:$0xff] %v610
      %627 = vst [vmem:[%s303 + $0x28] sm:$0xff] %v611
      %628 = vst [vmem:[%s303 + $0x30] sm:$0xff] %v612
      %629 = vst [vmem:[%s303 + $0x38] sm:$0xff] %v613
      %630 = vst [vmem:[%s303 + $0x40] sm:$0xff] %v614
      %631 = vst [vmem:[%s303 + $0x48] sm:$0xff] %v615
      %632 = vst [vmem:[%s303 + $0x50] sm:$0xff] %v616
      %633 = vst [vmem:[%s303 + $0x58] sm:$0xff] %v617
      %634 = vst [vmem:[%s303 + $0x60] sm:$0xff] %v618
      %635 = vst [vmem:[%s303 + $0x68] sm:$0xff] %v619
      %636 = vst [vmem:[%s303 + $0x70] sm:$0xff] %v620
      %637 = vst [vmem:[%s303 + $0x78] sm:$0xff] %v621
      %s638 = smul.u32 16, %s22
      %p639 = scmp.lt.s32.totalorder %s21, 1
      %s640 = scalar_select %p639, %s21, 1
      %p641 = scmp.lt.s32.totalorder %s638, 31
      %s642 = scalar_select %p641, %s638, 31
      %s643 = smul.addr %s640, 32
      %s644 = sadd.s32 %s642, %s643
      %s645 = smul.addr %s644, 8
      %s646 = scalar_lea.vmem %s6, %s645
      // Predicated region
      $region45: #{down_forward.5} parent=43 // pred_check
        %p647 = pneg %p187
      $region46: #{down_forward.5} parent=43 // pred_check_branch
        %649 = sbr.rel (%p647) target = $region48
      $region47: #{down_forward.5} parent=43 // pred_region
        %s650 = smul.u32 16, %s22
      $region48: #{down_forward.5} parent=43 // pred_fallthru
        _
    $region44: #{down_forward.5} parent=5 // pred_fallthru
      _
    %p651 = scmp.le.s32.totalorder 2, %s12
    // Predicated region
    $region49: #{down_forward.5} parent=5 // pred_check
      %p652 = pneg %p651
    $region50: #{down_forward.5} parent=5 // pred_check_branch
      %654 = sbr.rel (%p652) target = $region52
    $region51: #{down_forward.5} parent=5 // pred_region
      %s655 = ssub.s32 %s12, 2
      // Predicated region
      $region53: #{down_forward.5} parent=51 // pred_check
        %p656 = pneg %p193
      $region54: #{down_forward.5} parent=51 // pred_check_branch
        %658 = sbr.rel (%p656) target = $region56
      $region55: #{down_forward.5} parent=51 // pred_region
        %s659 = smul.u32 16, %s24
        %p660 = scmp.lt.s32.totalorder %s23, 1
        %s661 = scalar_select %p660, %s23, 1
        %p662 = scmp.lt.s32.totalorder %s659, 31
        %s663 = scalar_select %p662, %s659, 31
        %s664 = smul.addr %s661, 32
        %s665 = sadd.s32 %s663, %s664
        %s666 = smul.addr %s665, 8
        %s667 = scalar_lea.vmem %s6, %s666
      $region56: #{down_forward.5} parent=51 // pred_fallthru
        _
    $region52: #{down_forward.5} parent=5 // pred_fallthru
      _
  $region6: #{down_forward.5} parent=0 // loop_footer
    %s16 = sadd.s32 1, %s12
  $region7: #{down_forward.5} parent=0 // loop_footer_branch
    %11 = sbr.rel target = $region3
  $region8: #{down_forward.5} parent=0 // loop_exit
    _

// kernel: down_forward.4
$region0: #{down_forward.4}
  #allocation0 [shape = 'u32[]', space=smem, size = 0x4, offset = 0x4, fixed_abs, tag = 'smem constant byte address 0x4 - core index']
  #allocation1 [shape = 'u32[144,128]{1,0:T(1,128)}', space=vmem, size = 0x12000, scoped, tag = 'internal scratch']
  %s0 = inlined_call_operand.vmem [shape: f32[2,256,128], index: 0, kind: input, shape index: {}]
  %s1 = inlined_call_operand.vmem [shape: f32[1,128], index: 1, kind: input, shape index: {}]
  %s2 = inlined_call_operand.vmem [shape: f32[1,128], index: 2, kind: input, shape index: {}]
  %s3 = inlined_call_operand.vmem [shape: bf16[384,128], index: 3, kind: input, shape index: {}]
  %s4 = inlined_call_operand.vmem [shape: f32[2,256,128], index: 4, kind: output, shape index: {0}]
  %s5 = inlined_call_operand.vmem [shape: f32[2,2,2,128], index: 5, kind: output, shape index: {1}]
  %6 = xla_tuple %s4, %s5
  %s7 = sld [smem:[#allocation0]]
  $region57: #{down_forward.4} parent=0
    _
  %s9 = ssub.s32 1, %s7
  %s10 = scalar_select 0, %s9, %s7
  loop: start=0, step=1, limit=6
  $region2: #{down_forward.4} parent=0 // loop_pre_header
    _
  $region3: #{down_forward.4} parent=0 // loop_header
    %s12 = sphi 0, %s16
    %p13 = scmp.ge.s32.totalorder %s12, 6
    %s19 = sphi 0, %s31
    %s20 = sphi 0, %s27
    %s21 = sphi 0, %s19
    %s22 = sphi 0, %s20
    %s23 = sphi 0, %s21
    %s24 = sphi 0, %s22
    %s34 = sphi 0, %s36
    %s37 = sphi 0, %s34
    %s38 = sphi 0, %s37
    %s54 = sphi 0, %s38
    %s58 = sphi 0, %s58
    %s60 = sphi 0, %s58
    %s61 = sphi 0, %s60
    %s75 = sphi 0, %s61
    %s79 = sphi 0, %s79
    %s81 = sphi 0, %s79
    %s82 = sphi 0, %s81
    %s96 = sphi 0, %s82
    %s100 = sphi 0, %s100
    %s102 = sphi 0, %s100
    %s103 = sphi 0, %s102
    %s117 = sphi 0, %s103
    %s125 = sphi 0, %s127
    %s128 = sphi 0, %s125
    %s129 = sphi 0, %s128
    %s145 = sphi 0, %s129
    %s153 = sphi 0, %s155
    %s156 = sphi 0, %s153
    %s157 = sphi 0, %s156
    %s173 = sphi 0, %s157
  $region4: #{down_forward.4} parent=0 // loop_header_branch
    %15 = sbr.rel (%p13) target = $region8
  $region5: #{down_forward.4} parent=0 // loop_body
    %s17 = ssub.s32 %s12, 1
    %s18 = ssub.s32 %s12, 2
    %s25 = sadd.s32 1, %s20
    %p26 = scmp.ge.s32.totalorder %s25, 2
    %s27 = scalar_select %p26, 0, %s25
    %s28 = sadd.s32 1, %s19
    %s29 = scalar_select %p26, %s28, %s19
    %p30 = scmp.ge.s32.totalorder %s29, 2
    %s31 = scalar_select %p30, 0, %s29
    %s32 = ssub.s32 %s19, %s31
    %p33 = scmp.eq.s32.totalorder %s32, 0
    %s35 = sadd.s32 %s34, 1
    %s36 = scalar_select %p33, %s34, %s35
    %p39 = pneg %p33
    %p40 = scmp.eq.s32.totalorder %s12, 3
    %p41 = por %p39, %p40
    %p42 = scmp.ne.s32.totalorder %s34, %s37
    %p43 = scmp.eq.s32.totalorder %s12, 0
    %p44 = por %p42, %p43
    %p45 = scmp.ne.s32.totalorder %s34, %s37
    %p46 = scmp.eq.s32.totalorder %s17, 3
    %p47 = por %p45, %p46
    %p48 = scmp.ne.s32.totalorder %s37, %s38
    %p49 = scmp.eq.s32.totalorder %s17, 0
    %p50 = por %p48, %p49
    %p51 = scmp.ne.s32.totalorder %s37, %s38
    %p52 = scmp.eq.s32.totalorder %s18, 3
    %p53 = por %p51, %p52
    %p55 = scmp.ne.s32.totalorder %s38, %s54
    %p56 = scmp.eq.s32.totalorder %s18, 0
    %p57 = por %p55, %p56
    %s59 = sadd.s32 %s58, 1
    %p62 = scmp.eq.s32.totalorder %s12, 3
    %p63 = scmp.ne.s32.totalorder %s58, %s60
    %p64 = scmp.eq.s32.totalorder %s12, 0
    %p65 = por %p63, %p64
    %p66 = scmp.ne.s32.totalorder %s58, %s60
    %p67 = scmp.eq.s32.totalorder %s17, 3
    %p68 = por %p66, %p67
    %p69 = scmp.ne.s32.totalorder %s60, %s61
    %p70 = scmp.eq.s32.totalorder %s17, 0
    %p71 = por %p69, %p70
    %p72 = scmp.ne.s32.totalorder %s60, %s61
    %p73 = scmp.eq.s32.totalorder %s18, 3
    %p74 = por %p72, %p73
    %p76 = scmp.ne.s32.totalorder %s61, %s75
    %p77 = scmp.eq.s32.totalorder %s18, 0
    %p78 = por %p76, %p77
    %s80 = sadd.s32 %s79, 1
    %p83 = scmp.eq.s32.totalorder %s12, 3
    %p84 = scmp.ne.s32.totalorder %s79, %s81
    %p85 = scmp.eq.s32.totalorder %s12, 0
    %p86 = por %p84, %p85
    %p87 = scmp.ne.s32.totalorder %s79, %s81
    %p88 = scmp.eq.s32.totalorder %s17, 3
    %p89 = por %p87, %p88
    %p90 = scmp.ne.s32.totalorder %s81, %s82
    %p91 = scmp.eq.s32.totalorder %s17, 0
    %p92 = por %p90, %p91
    %p93 = scmp.ne.s32.totalorder %s81, %s82
    %p94 = scmp.eq.s32.totalorder %s18, 3
    %p95 = por %p93, %p94
    %p97 = scmp.ne.s32.totalorder %s82, %s96
    %p98 = scmp.eq.s32.totalorder %s18, 0
    %p99 = por %p97, %p98
    %s101 = sadd.s32 %s100, 1
    %p104 = scmp.eq.s32.totalorder %s12, 3
    %p105 = scmp.ne.s32.totalorder %s100, %s102
    %p106 = scmp.eq.s32.totalorder %s12, 0
    %p107 = por %p105, %p106
    %p108 = scmp.ne.s32.totalorder %s100, %s102
    %p109 = scmp.eq.s32.totalorder %s17, 3
    %p110 = por %p108, %p109
    %p111 = scmp.ne.s32.totalorder %s102, %s103
    %p112 = scmp.eq.s32.totalorder %s17, 0
    %p113 = por %p111, %p112
    %p114 = scmp.ne.s32.totalorder %s102, %s103
    %p115 = scmp.eq.s32.totalorder %s18, 3
    %p116 = por %p114, %p115
    %p118 = scmp.ne.s32.totalorder %s103, %s117
    %p119 = scmp.eq.s32.totalorder %s18, 0
    %p120 = por %p118, %p119
    %s121 = ssub.s32 %s19, %s31
    %s122 = ssub.s32 %s20, %s27
    %s123 = sor.u32 %s121, %s122
    %p124 = scmp.eq.s32.totalorder %s123, 0
    %s126 = sadd.s32 %s125, 1
    %s127 = scalar_select %p124, %s125, %s126
    %p130 = pneg %p124
    %p131 = scmp.eq.s32.totalorder %s12, 3
    %p132 = por %p130, %p131
    %p133 = scmp.ne.s32.totalorder %s125, %s128
    %p134 = scmp.eq.s32.totalorder %s12, 0
    %p135 = por %p133, %p134
    %p136 = scmp.ne.s32.totalorder %s125, %s128
    %p137 = scmp.eq.s32.totalorder %s17, 3
    %p138 = por %p136, %p137
    %p139 = scmp.ne.s32.totalorder %s128, %s129
    %p140 = scmp.eq.s32.totalorder %s17, 0
    %p141 = por %p139, %p140
    %p142 = scmp.ne.s32.totalorder %s128, %s129
    %p143 = scmp.eq.s32.totalorder %s18, 3
    %p144 = por %p142, %p143
    %p146 = scmp.ne.s32.totalorder %s129, %s145
    %p147 = scmp.eq.s32.totalorder %s18, 0
    %p148 = por %p146, %p147
    %s149 = ssub.s32 %s19, %s31
    %s150 = ssub.s32 %s20, %s27
    %s151 = sor.u32 %s149, %s150
    %p152 = scmp.eq.s32.totalorder %s151, 0
    %s154 = sadd.s32 %s153, 1
    %s155 = scalar_select %p152, %s153, %s154
    %p158 = pneg %p152
    %p159 = scmp.eq.s32.totalorder %s12, 3
    %p160 = por %p158, %p159
    %p161 = scmp.ne.s32.totalorder %s153, %s156
    %p162 = scmp.eq.s32.totalorder %s12, 0
    %p163 = por %p161, %p162
    %p164 = scmp.ne.s32.totalorder %s153, %s156
    %p165 = scmp.eq.s32.totalorder %s17, 3
    %p166 = por %p164, %p165
    %p167 = scmp.ne.s32.totalorder %s156, %s157
    %p168 = scmp.eq.s32.totalorder %s17, 0
    %p169 = por %p167, %p168
    %p170 = scmp.ne.s32.totalorder %s156, %s157
    %p171 = scmp.eq.s32.totalorder %s18, 3
    %p172 = por %p170, %p171
    %p174 = scmp.ne.s32.totalorder %s157, %s173
    %p175 = scmp.eq.s32.totalorder %s18, 0
    %p176 = por %p174, %p175
    %p177 = scmp.le.s32.totalorder 1, %s12
    %p178 = scmp.lt.s32.totalorder %s12, 5
    %p179 = pnand %p177, %p178
    %p180 = pneg %p179
    // Predicated region
    $region9: #{down_forward.4} parent=5 // pred_check
      _
    $region10: #{down_forward.4} parent=5 // pred_check_branch
      %182 = sbr.rel (%p179) target = $region12
    $region11: #{down_forward.4} parent=5 // pred_region
      %s183 = ssub.s32 %s12, 1
      // Predicated region
      $region13: #{down_forward.4} parent=11 // pred_check
        %p184 = pneg %p71
      $region14: #{down_forward.4} parent=11 // pred_check_branch
        %186 = sbr.rel (%p184) target = $region16
      $region15: #{down_forward.4} parent=11 // pred_region
        _
      $region16: #{down_forward.4} parent=11 // pred_fallthru
        _
      // Predicated region
      $region17: #{down_forward.4} parent=11 // pred_check
        %p187 = pneg %p92
      $region18: #{down_forward.4} parent=11 // pred_check_branch
        %189 = sbr.rel (%p187) target = $region20
      $region19: #{down_forward.4} parent=11 // pred_region
        _
      $region20: #{down_forward.4} parent=11 // pred_fallthru
        _
      // Predicated region
      $region21: #{down_forward.4} parent=11 // pred_check
        %p190 = pneg %p113
      $region22: #{down_forward.4} parent=11 // pred_check_branch
        %192 = sbr.rel (%p190) target = $region24
      $region23: #{down_forward.4} parent=11 // pred_region
        _
      $region24: #{down_forward.4} parent=11 // pred_fallthru
        _
    $region12: #{down_forward.4} parent=5 // pred_fallthru
      _
    %p193 = scmp.lt.s32.totalorder %s12, 4
    // Predicated region
    $region25: #{down_forward.4} parent=5 // pred_check
      %p194 = pneg %p193
    $region26: #{down_forward.4} parent=5 // pred_check_branch
      %196 = sbr.rel (%p194) target = $region28
    $region27: #{down_forward.4} parent=5 // pred_region
      // Predicated region
      $region29: #{down_forward.4} parent=27 // pred_check
        %p197 = pneg %p44
      $region30: #{down_forward.4} parent=27 // pred_check_branch
        %199 = sbr.rel (%p197) target = $region32
      $region31: #{down_forward.4} parent=27 // pred_region
        %p200 = scmp.lt.s32.totalorder %s19, 1
        %s201 = scalar_select %p200, %s19, 1
        %s202 = smul.addr %s201, 32
        %s203 = smul.addr %s202, 8
        %s204 = scalar_lea.vmem %s0, %s203
      $region32: #{down_forward.4} parent=27 // pred_fallthru
        _
    $region28: #{down_forward.4} parent=5 // pred_fallthru
      _
    %p205 = scmp.le.s32.totalorder 1, %s12
    %p206 = scmp.lt.s32.totalorder %s12, 5
    %p207 = pnand %p205, %p206
    %p208 = pneg %p207
    // Predicated region
    $region33: #{down_forward.4} parent=5 // pred_check
      _
    $region34: #{down_forward.4} parent=5 // pred_check_branch
      %210 = sbr.rel (%p207) target = $region36
    $region35: #{down_forward.4} parent=5 // pred_region
      %s211 = ssub.s32 %s12, 1
      %p212 = scmp.lt.s32.totalorder %s21, 1
      %s213 = scalar_select %p212, %s21, 1
      %s214 = smul.addr %s213, 32
      %s215 = smul.addr %s214, 8
      %s216 = scalar_lea.vmem %s0, %s215
      %p217 = pneg %p50
      %p218 = pneg %p47
      %p219 = pneg %p71
      %p220 = pneg %p68
      %p221 = pneg %p92
      %p222 = pneg %p89
      %p223 = pneg %p113
      %p224 = pneg %p110
      %p225 = pneg %p141
      %p226 = pneg %p138
      %s227 = smul.u32 16, %s22
      %p228 = scmp.lt.s32.totalorder %s21, 1
      %s229 = scalar_select %p228, %s21, 1
      %p230 = scmp.lt.s32.totalorder %s227, 31
      %s231 = scalar_select %p230, %s227, 31
      %s232 = smul.addr %s229, 32
      %s233 = sadd.s32 %s231, %s232
      %s234 = smul.addr %s233, 8
      %s235 = scalar_lea.vmem %s4, %s234
      %p236 = pneg %p169
      %p237 = pneg %p166
      %p238 = scmp.lt.s32.totalorder %s21, 1
      %s239 = scalar_select %p238, %s21, 1
      %p240 = scmp.lt.s32.totalorder %s22, 1
      %s241 = scalar_select %p240, %s22, 1
      %s242 = smul.addr %s239, 2
      %s243 = sadd.s32 %s241, %s242
      %s244 = smul.addr %s243, 2
      %s245 = scalar_lea.vmem %s5, %s244
      %p246 = scmp.lt.s32.totalorder %s21, 1
      %s247 = scalar_select %p246, %s21, 1
      %s248 = smul.addr %s247, 32
      %s249 = smul.addr %s248, 8
      %s250 = scalar_lea.vmem %s0, %s249
      %s251 = smul.u32 16, %s22
      %p252 = scmp.lt.s32.totalorder %s21, 1
      %s253 = scalar_select %p252, %s21, 1
      %p254 = scmp.lt.s32.totalorder %s251, 31
      %s255 = scalar_select %p254, %s251, 31
      %s256 = smul.addr %s253, 32
      %s257 = sadd.s32 %s255, %s256
      %s258 = smul.addr %s257, 8
      %s259 = scalar_lea.vmem %s4, %s258
      %s260 = smul.u32 16, %s22
      %p261 = scmp.lt.s32.totalorder %s21, 1
      %s262 = scalar_select %p261, %s21, 1
      %p263 = scmp.lt.s32.totalorder %s22, 1
      %s264 = scalar_select %p263, %s22, 1
      %s265 = smul.addr %s262, 2
      %s266 = sadd.s32 %s264, %s265
      %s267 = smul.addr %s266, 2
      %s268 = scalar_lea.vmem %s5, %s267
      %v270 = vld [vmem:[%s1] sm:$0x1]
      %v271 = vld [vmem:[%s2] sm:$0x1]
      %s272 = smul.u32 %s22, 128
      %s273 = scalar_lea.vmem %s250, %s272
      %v274 = vld [vmem:[%s273] sm:$0xff]
      %v275 = vld [vmem:[%s273 + $0x8] sm:$0xff]
      %v276 = vld [vmem:[%s273 + $0x10] sm:$0xff]
      %v277 = vld [vmem:[%s273 + $0x18] sm:$0xff]
      %v278 = vld [vmem:[%s273 + $0x20] sm:$0xff]
      %v279 = vld [vmem:[%s273 + $0x28] sm:$0xff]
      %v280 = vld [vmem:[%s273 + $0x30] sm:$0xff]
      %v281 = vld [vmem:[%s273 + $0x38] sm:$0xff]
      %v282 = vld [vmem:[%s273 + $0x40] sm:$0xff]
      %v283 = vld [vmem:[%s273 + $0x48] sm:$0xff]
      %v284 = vld [vmem:[%s273 + $0x50] sm:$0xff]
      %v285 = vld [vmem:[%s273 + $0x58] sm:$0xff]
      %v286 = vld [vmem:[%s273 + $0x60] sm:$0xff]
      %v287 = vld [vmem:[%s273 + $0x68] sm:$0xff]
      %v288 = vld [vmem:[%s273 + $0x70] sm:$0xff]
      %v289 = vld [vmem:[%s273 + $0x78] sm:$0xff]
      %v291 = vlaneseq
      %v292 = vshrl.u32 %v291, 7
      %v293 = vsub.s32 0, %v292
      %v294 = vrot.slane %v270, %v293
      %v296 = vmul.f32 %v274, %v294
      %v297 = vmul.f32 %v275, %v294
      %v298 = vmul.f32 %v276, %v294
      %v299 = vmul.f32 %v277, %v294
      %v300 = vmul.f32 %v278, %v294
      %v301 = vmul.f32 %v279, %v294
      %v302 = vmul.f32 %v280, %v294
      %v303 = vmul.f32 %v281, %v294
      %v304 = vmul.f32 %v282, %v294
      %v305 = vmul.f32 %v283, %v294
      %v306 = vmul.f32 %v284, %v294
      %v307 = vmul.f32 %v285, %v294
      %v308 = vmul.f32 %v286, %v294
      %v309 = vmul.f32 %v287, %v294
      %v310 = vmul.f32 %v288, %v294
      %v311 = vmul.f32 %v289, %v294
      %v313 = vlaneseq
      %v314 = vshrl.u32 %v313, 7
      %v315 = vsub.s32 0, %v314
      %v316 = vrot.slane %v271, %v315
      %v318 = vadd.f32 %v296, %v316
      %v319 = vadd.f32 %v297, %v316
      %v320 = vadd.f32 %v298, %v316
      %v321 = vadd.f32 %v299, %v316
      %v322 = vadd.f32 %v300, %v316
      %v323 = vadd.f32 %v301, %v316
      %v324 = vadd.f32 %v302, %v316
      %v325 = vadd.f32 %v303, %v316
      %v326 = vadd.f32 %v304, %v316
      %v327 = vadd.f32 %v305, %v316
      %v328 = vadd.f32 %v306, %v316
      %v329 = vadd.f32 %v307, %v316
      %v330 = vadd.f32 %v308, %v316
      %v331 = vadd.f32 %v309, %v316
      %v332 = vadd.f32 %v310, %v316
      %v333 = vadd.f32 %v311, %v316
      %v334 = vmax.f32 %v318, 0.0
      %v335 = vmax.f32 %v319, 0.0
      %v336 = vmax.f32 %v320, 0.0
      %v337 = vmax.f32 %v321, 0.0
      %v338 = vmax.f32 %v322, 0.0
      %v339 = vmax.f32 %v323, 0.0
      %v340 = vmax.f32 %v324, 0.0
      %v341 = vmax.f32 %v325, 0.0
      %v342 = vmax.f32 %v326, 0.0
      %v343 = vmax.f32 %v327, 0.0
      %v344 = vmax.f32 %v328, 0.0
      %v345 = vmax.f32 %v329, 0.0
      %v346 = vmax.f32 %v330, 0.0
      %v347 = vmax.f32 %v331, 0.0
      %v348 = vmax.f32 %v332, 0.0
      %v349 = vmax.f32 %v333, 0.0
      %s350 = ssub.s32 %s272, 1
      %p351 = scmp.gt.s32.totalorder %s350, 0
      %s352 = scalar_select %p351, %s350, 0
      %s353 = scalar_lea.vmem %s250, %s352
      %v354 = vld [vmem:[%s353] sm:$0x1]
      %v355 = vmul.f32 %v354, %v270
      %v356 = vadd.f32 %v355, %v271
      %v357 = vmax.f32 %v356, 0.0
      %p358 = scmp.eq.s32.totalorder %s22, 0
      %s359 = scalar_select %p358, 1, 0
      %v360 = vstv %s359
      %vm361 = vcmp.eq.s32.totalorder %v360, 1
      %v362 = vsel %vm361, 0.0, %v357
      %s363 = sadd.s32 %s272, 128
      %p364 = scmp.lt.s32.totalorder %s363, 255
      %s365 = scalar_select %p364, %s363, 255
      %s366 = scalar_lea.vmem %s250, %s365
      %v367 = vld [vmem:[%s366] sm:$0x1]
      %v368 = vmul.f32 %v367, %v270
      %v369 = vadd.f32 %v368, %v271
      %v370 = vmax.f32 %v369, 0.0
      %p371 = scmp.eq.s32.totalorder %s22, 1
      %s372 = scalar_select %p371, 1, 0
      %v373 = vstv %s372
      %vm374 = vcmp.eq.s32.totalorder %v373, 1
      %v375 = vsel %vm374, 0.0, %v370
      %v376 = vlaneseq
      %v377 = vshrl.u32 %v376, 7
      %v378 = vadd.s32 %v377, 8
      %v379 = vadd.s32 %v377, 16
      %v380 = vadd.s32 %v377, 24
      %v381 = vadd.s32 %v377, 32
      %v382 = vadd.s32 %v377, 40
      %v383 = vadd.s32 %v377, 48
      %v384 = vadd.s32 %v377, 56
      %v385 = vadd.s32 %v377, 64
      %v386 = vadd.s32 %v377, 72
      %v387 = vadd.s32 %v377, 80
      %v388 = vadd.s32 %v377, 88
      %v389 = vadd.s32 %v377, 96
      %v390 = vadd.s32 %v377, 104
      %v391 = vadd.s32 %v377, 112
      %v392 = vadd.s32 %v377, 120
      %vm393 = vcmp.eq.s32.totalorder %v377, 0
      %vm394 = vcmp.eq.s32.totalorder %v378, 0
      %vm395 = vcmp.eq.s32.totalorder %v379, 0
      %vm396 = vcmp.eq.s32.totalorder %v380, 0
      %vm397 = vcmp.eq.s32.totalorder %v381, 0
      %vm398 = vcmp.eq.s32.totalorder %v382, 0
      %vm399 = vcmp.eq.s32.totalorder %v383, 0
      %vm400 = vcmp.eq.s32.totalorder %v384, 0
      %vm401 = vcmp.eq.s32.totalorder %v385, 0
      %vm402 = vcmp.eq.s32.totalorder %v386, 0
      %vm403 = vcmp.eq.s32.totalorder %v387, 0
      %vm404 = vcmp.eq.s32.totalorder %v388, 0
      %vm405 = vcmp.eq.s32.totalorder %v389, 0
      %vm406 = vcmp.eq.s32.totalorder %v390, 0
      %vm407 = vcmp.eq.s32.totalorder %v391, 0
      %vm408 = vcmp.eq.s32.totalorder %v392, 0
      %v409 = vrot.slane %v334, 7
      %v410 = vrot.slane %v335, 7
      %v411 = vrot.slane %v336, 7
      %v412 = vrot.slane %v337, 7
      %v413 = vrot.slane %v338, 7
      %v414 = vrot.slane %v339, 7
      %v415 = vrot.slane %v340, 7
      %v416 = vrot.slane %v341, 7
      %v417 = vrot.slane %v342, 7
      %v418 = vrot.slane %v343, 7
      %v419 = vrot.slane %v344, 7
      %v420 = vrot.slane %v345, 7
      %v421 = vrot.slane %v346, 7
      %v422 = vrot.slane %v347, 7
      %v423 = vrot.slane %v348, 7
      %v424 = vrot.slane %v349, 7
      %vm425 = vcmp.lt.s32.totalorder %v377, 1
      %v426 = vsel %vm425, %v423, %v424
      %v427 = vsel %vm425, %v422, %v423
      %v428 = vsel %vm425, %v421, %v422
      %v429 = vsel %vm425, %v420, %v421
      %v430 = vsel %vm425, %v419, %v420
      %v431 = vsel %vm425, %v418, %v419
      %v432 = vsel %vm425, %v417, %v418
      %v433 = vsel %vm425, %v416, %v417
      %v434 = vsel %vm425, %v415, %v416
      %v435 = vsel %vm425, %v414, %v415
      %v436 = vsel %vm425, %v413, %v414
      %v437 = vsel %vm425, %v412, %v413
      %v438 = vsel %vm425, %v411, %v412
      %v439 = vsel %vm425, %v410, %v411
      %v440 = vsel %vm425, %v409, %v410
      %v441 = vsel %vm425, %v424, %v409
      %v442 = vsel %vm393, 1, 0
      %v443 = vsel %vm394, 1, 0
      %v444 = vsel %vm395, 1, 0
      %v445 = vsel %vm396, 1, 0
      %v446 = vsel %vm397, 1, 0
      %v447 = vsel %vm398, 1, 0
      %v448 = vsel %vm399, 1, 0
      %v449 = vsel %vm400, 1, 0
      %v450 = vsel %vm401, 1, 0
      %v451 = vsel %vm402, 1, 0
      %v452 = vsel %vm403, 1, 0
      %v453 = vsel %vm404, 1, 0
      %v454 = vsel %vm405, 1, 0
      %v455 = vsel %vm406, 1, 0
      %v456 = vsel %vm407, 1, 0
      %v457 = vsel %vm408, 1, 0
      %vm458 = vcmp.eq.s32.totalorder %v442, 1
      %vm459 = vcmp.eq.s32.totalorder %v443, 1
      %vm460 = vcmp.eq.s32.totalorder %v444, 1
      %vm461 = vcmp.eq.s32.totalorder %v445, 1
      %vm462 = vcmp.eq.s32.totalorder %v446, 1
      %vm463 = vcmp.eq.s32.totalorder %v447, 1
      %vm464 = vcmp.eq.s32.totalorder %v448, 1
      %vm465 = vcmp.eq.s32.totalorder %v449, 1
      %vm466 = vcmp.eq.s32.totalorder %v450, 1
      %vm467 = vcmp.eq.s32.totalorder %v451, 1
      %vm468 = vcmp.eq.s32.totalorder %v452, 1
      %vm469 = vcmp.eq.s32.totalorder %v453, 1
      %vm470 = vcmp.eq.s32.totalorder %v454, 1
      %vm471 = vcmp.eq.s32.totalorder %v455, 1
      %vm472 = vcmp.eq.s32.totalorder %v456, 1
      %vm473 = vcmp.eq.s32.totalorder %v457, 1
      %v474 = vlaneseq
      %v475 = vshrl.u32 %v474, 7
      %v476 = vsub.s32 0, %v475
      %v477 = vrot.slane %v362, %v476
      %v478 = vsel %vm458, %v477, %v441
      %v479 = vsel %vm459, %v477, %v440
      %v480 = vsel %vm460, %v477, %v439
      %v481 = vsel %vm461, %v477, %v438
      %v482 = vsel %vm462, %v477, %v437
      %v483 = vsel %vm463, %v477, %v436
      %v484 = vsel %vm464, %v477, %v435
      %v485 = vsel %vm465, %v477, %v434
      %v486 = vsel %vm466, %v477, %v433
      %v487 = vsel %vm467, %v477, %v432
      %v488 = vsel %vm468, %v477, %v431
      %v489 = vsel %vm469, %v477, %v430
      %v490 = vsel %vm470, %v477, %v429
      %v491 = vsel %vm471, %v477, %v428
      %v492 = vsel %vm472, %v477, %v427
      %v493 = vsel %vm473, %v477, %v426
      %vm494 = vcmp.eq.s32.totalorder %v377, 127
      %vm495 = vcmp.eq.s32.totalorder %v378, 127
      %vm496 = vcmp.eq.s32.totalorder %v379, 127
      %vm497 = vcmp.eq.s32.totalorder %v380, 127
      %vm498 = vcmp.eq.s32.totalorder %v381, 127
      %vm499 = vcmp.eq.s32.totalorder %v382, 127
      %vm500 = vcmp.eq.s32.totalorder %v383, 127
      %vm501 = vcmp.eq.s32.totalorder %v384, 127
      %vm502 = vcmp.eq.s32.totalorder %v385, 127
      %vm503 = vcmp.eq.s32.totalorder %v386, 127
      %vm504 = vcmp.eq.s32.totalorder %v387, 127
      %vm505 = vcmp.eq.s32.totalorder %v388, 127
      %vm506 = vcmp.eq.s32.totalorder %v389, 127
      %vm507 = vcmp.eq.s32.totalorder %v390, 127
      %vm508 = vcmp.eq.s32.totalorder %v391, 127
      %vm509 = vcmp.eq.s32.totalorder %v392, 127
      %v510 = vrot.slane %v334, 1
      %v511 = vrot.slane %v335, 1
      %v512 = vrot.slane %v336, 1
      %v513 = vrot.slane %v337, 1
      %v514 = vrot.slane %v338, 1
      %v515 = vrot.slane %v339, 1
      %v516 = vrot.slane %v340, 1
      %v517 = vrot.slane %v341, 1
      %v518 = vrot.slane %v342, 1
      %v519 = vrot.slane %v343, 1
      %v520 = vrot.slane %v344, 1
      %v521 = vrot.slane %v345, 1
      %v522 = vrot.slane %v346, 1
      %v523 = vrot.slane %v347, 1
      %v524 = vrot.slane %v348, 1
      %v525 = vrot.slane %v349, 1
      %vm526 = vcmp.lt.s32.totalorder %v377, 7
      %v527 = vsel %vm526, %v524, %v525
      %v528 = vsel %vm526, %v523, %v524
      %v529 = vsel %vm526, %v522, %v523
      %v530 = vsel %vm526, %v521, %v522
      %v531 = vsel %vm526, %v520, %v521
      %v532 = vsel %vm526, %v519, %v520
      %v533 = vsel %vm526, %v518, %v519
      %v534 = vsel %vm526, %v517, %v518
      %v535 = vsel %vm526, %v516, %v517
      %v536 = vsel %vm526, %v515, %v516
      %v537 = vsel %vm526, %v514, %v515
      %v538 = vsel %vm526, %v513, %v514
      %v539 = vsel %vm526, %v512, %v513
      %v540 = vsel %vm526, %v511, %v512
      %v541 = vsel %vm526, %v510, %v511
      %v542 = vsel %vm526, %v525, %v510
      %v543 = vsel %vm494, 1, 0
      %v544 = vsel %vm495, 1, 0
      %v545 = vsel %vm496, 1, 0
      %v546 = vsel %vm497, 1, 0
      %v547 = vsel %vm498, 1, 0
      %v548 = vsel %vm499, 1, 0
      %v549 = vsel %vm500, 1, 0
      %v550 = vsel %vm501, 1, 0
      %v551 = vsel %vm502, 1, 0
      %v552 = vsel %vm503, 1, 0
      %v553 = vsel %vm504, 1, 0
      %v554 = vsel %vm505, 1, 0
      %v555 = vsel %vm506, 1, 0
      %v556 = vsel %vm507, 1, 0
      %v557 = vsel %vm508, 1, 0
      %v558 = vsel %vm509, 1, 0
      %vm559 = vcmp.eq.s32.totalorder %v543, 1
      %vm560 = vcmp.eq.s32.totalorder %v544, 1
      %vm561 = vcmp.eq.s32.totalorder %v545, 1
      %vm562 = vcmp.eq.s32.totalorder %v546, 1
      %vm563 = vcmp.eq.s32.totalorder %v547, 1
      %vm564 = vcmp.eq.s32.totalorder %v548, 1
      %vm565 = vcmp.eq.s32.totalorder %v549, 1
      %vm566 = vcmp.eq.s32.totalorder %v550, 1
      %vm567 = vcmp.eq.s32.totalorder %v551, 1
      %vm568 = vcmp.eq.s32.totalorder %v552, 1
      %vm569 = vcmp.eq.s32.totalorder %v553, 1
      %vm570 = vcmp.eq.s32.totalorder %v554, 1
      %vm571 = vcmp.eq.s32.totalorder %v555, 1
      %vm572 = vcmp.eq.s32.totalorder %v556, 1
      %vm573 = vcmp.eq.s32.totalorder %v557, 1
      %vm574 = vcmp.eq.s32.totalorder %v558, 1
      %v575 = vlaneseq
      %v576 = vshrl.u32 %v575, 7
      %v577 = vsub.s32 0, %v576
      %v578 = vrot.slane %v375, %v577
      %v579 = vsel %vm559, %v578, %v541
      %v580 = vsel %vm560, %v578, %v540
      %v581 = vsel %vm561, %v578, %v539
      %v582 = vsel %vm562, %v578, %v538
      %v583 = vsel %vm563, %v578, %v537
      %v584 = vsel %vm564, %v578, %v536
      %v585 = vsel %vm565, %v578, %v535
      %v586 = vsel %vm566, %v578, %v534
      %v587 = vsel %vm567, %v578, %v533
      %v588 = vsel %vm568, %v578, %v532
      %v589 = vsel %vm569, %v578, %v531
      %v590 = vsel %vm570, %v578, %v530
      %v591 = vsel %vm571, %v578, %v529
      %v592 = vsel %vm572, %v578, %v528
      %v593 = vsel %vm573, %v578, %v527
      %v594 = vsel %vm574, %v578, %v542
      %v595 = vpack.c.bf16 %v479, %v478
      %v596 = vpack.c.bf16 %v481, %v480
      %v597 = vpack.c.bf16 %v483, %v482
      %v598 = vpack.c.bf16 %v485, %v484
      %v599 = vpack.c.bf16 %v487, %v486
      %v600 = vpack.c.bf16 %v489, %v488
      %v601 = vpack.c.bf16 %v491, %v490
      %v602 = vpack.c.bf16 %v493, %v492
      %v603 = vpack.c.bf16 %v335, %v334
      %v604 = vpack.c.bf16 %v337, %v336
      %v605 = vpack.c.bf16 %v339, %v338
      %v606 = vpack.c.bf16 %v341, %v340
      %v607 = vpack.c.bf16 %v343, %v342
      %v608 = vpack.c.bf16 %v345, %v344
      %v609 = vpack.c.bf16 %v347, %v346
      %v610 = vpack.c.bf16 %v349, %v348
      %v611 = vpack.c.bf16 %v580, %v579
      %v612 = vpack.c.bf16 %v582, %v581
      %v613 = vpack.c.bf16 %v584, %v583
      %v614 = vpack.c.bf16 %v586, %v585
      %v615 = vpack.c.bf16 %v588, %v587
      %v616 = vpack.c.bf16 %v590, %v589
      %v617 = vpack.c.bf16 %v592, %v591
      %v618 = vpack.c.bf16 %v594, %v593
      %v619 = vld [vmem:[%s3] sm:$0xf]
      %v620 = vld [vmem:[%s3 + $0x4] sm:$0xf]
      %v621 = vld [vmem:[%s3 + $0x8] sm:$0xf]
      %v622 = vld [vmem:[%s3 + $0xc] sm:$0xf]
      %v623 = vld [vmem:[%s3 + $0x10] sm:$0xf]
      %v624 = vld [vmem:[%s3 + $0x14] sm:$0xf]
      %v625 = vld [vmem:[%s3 + $0x18] sm:$0xf]
      %v626 = vld [vmem:[%s3 + $0x1c] sm:$0xf]
      %v627 = vld [vmem:[%s3 + $0x20] sm:$0xf]
      %v628 = vld [vmem:[%s3 + $0x24] sm:$0xf]
      %v629 = vld [vmem:[%s3 + $0x28] sm:$0xf]
      %v630 = vld [vmem:[%s3 + $0x2c] sm:$0xf]
      %v631 = vld [vmem:[%s3 + $0x30] sm:$0xf]
      %v632 = vld [vmem:[%s3 + $0x34] sm:$0xf]
      %v633 = vld [vmem:[%s3 + $0x38] sm:$0xf]
      %v634 = vld [vmem:[%s3 + $0x3c] sm:$0xf]
      %v635 = vld [vmem:[%s3 + $0x40] sm:$0xf]
      %v636 = vld [vmem:[%s3 + $0x44] sm:$0xf]
      %v637 = vld [vmem:[%s3 + $0x48] sm:$0xf]
      %v638 = vld [vmem:[%s3 + $0x4c] sm:$0xf]
      %v639 = vld [vmem:[%s3 + $0x50] sm:$0xf]
      %v640 = vld [vmem:[%s3 + $0x54] sm:$0xf]
      %v641 = vld [vmem:[%s3 + $0x58] sm:$0xf]
      %v642 = vld [vmem:[%s3 + $0x5c] sm:$0xf]
      %v643 = vld [vmem:[%s3 + $0x60] sm:$0xf]
      %v644 = vld [vmem:[%s3 + $0x64] sm:$0xf]
      %v645 = vld [vmem:[%s3 + $0x68] sm:$0xf]
      %v646 = vld [vmem:[%s3 + $0x6c] sm:$0xf]
      %v647 = vld [vmem:[%s3 + $0x70] sm:$0xf]
      %v648 = vld [vmem:[%s3 + $0x74] sm:$0xf]
      %v649 = vld [vmem:[%s3 + $0x78] sm:$0xf]
      %v650 = vld [vmem:[%s3 + $0x7c] sm:$0xf]
      %v651 = vld [vmem:[%s3 + $0x80] sm:$0xf]
      %v652 = vld [vmem:[%s3 + $0x84] sm:$0xf]
      %v653 = vld [vmem:[%s3 + $0x88] sm:$0xf]
      %v654 = vld [vmem:[%s3 + $0x8c] sm:$0xf]
      %v655 = vld [vmem:[%s3 + $0x90] sm:$0xf]
      %v656 = vld [vmem:[%s3 + $0x94] sm:$0xf]
      %v657 = vld [vmem:[%s3 + $0x98] sm:$0xf]
      %v658 = vld [vmem:[%s3 + $0x9c] sm:$0xf]
      %v659 = vld [vmem:[%s3 + $0xa0] sm:$0xf]
      %v660 = vld [vmem:[%s3 + $0xa4] sm:$0xf]
      %v661 = vld [vmem:[%s3 + $0xa8] sm:$0xf]
      %v662 = vld [vmem:[%s3 + $0xac] sm:$0xf]
      %v663 = vld [vmem:[%s3 + $0xb0] sm:$0xf]
      %v664 = vld [vmem:[%s3 + $0xb4] sm:$0xf]
      %v665 = vld [vmem:[%s3 + $0xb8] sm:$0xf]
      %v666 = vld [vmem:[%s3 + $0xbc] sm:$0xf]
      %v715 = vunpack.c.l.b16 %v619
      %v716 = vunpack.c.l.b16 %v620
      %v717 = vunpack.c.l.b16 %v621
      %v718 = vunpack.c.l.b16 %v622
      %v719 = vunpack.c.l.b16 %v623
      %v720 = vunpack.c.l.b16 %v624
      %v721 = vunpack.c.l.b16 %v625
      %v722 = vunpack.c.l.b16 %v626
      %v723 = vunpack.c.l.b16 %v627
      %v724 = vunpack.c.l.b16 %v628
      %v725 = vunpack.c.l.b16 %v629
      %v726 = vunpack.c.l.b16 %v630
      %v727 = vunpack.c.l.b16 %v631
      %v728 = vunpack.c.l.b16 %v632
      %v729 = vunpack.c.l.b16 %v633
      %v730 = vunpack.c.l.b16 %v634
      %v731 = vunpack.c.l.b16 %v635
      %v732 = vunpack.c.l.b16 %v636
      %v733 = vunpack.c.l.b16 %v637
      %v734 = vunpack.c.l.b16 %v638
      %v735 = vunpack.c.l.b16 %v639
      %v736 = vunpack.c.l.b16 %v640
      %v737 = vunpack.c.l.b16 %v641
      %v738 = vunpack.c.l.b16 %v642
      %v739 = vunpack.c.l.b16 %v643
      %v740 = vunpack.c.l.b16 %v644
      %v741 = vunpack.c.l.b16 %v645
      %v742 = vunpack.c.l.b16 %v646
      %v743 = vunpack.c.l.b16 %v647
      %v744 = vunpack.c.l.b16 %v648
      %v745 = vunpack.c.l.b16 %v649
      %v746 = vunpack.c.l.b16 %v650
      %v747 = vunpack.c.l.b16 %v651
      %v748 = vunpack.c.l.b16 %v652
      %v749 = vunpack.c.l.b16 %v653
      %v750 = vunpack.c.l.b16 %v654
      %v751 = vunpack.c.l.b16 %v655
      %v752 = vunpack.c.l.b16 %v656
      %v753 = vunpack.c.l.b16 %v657
      %v754 = vunpack.c.l.b16 %v658
      %v755 = vunpack.c.l.b16 %v659
      %v756 = vunpack.c.l.b16 %v660
      %v757 = vunpack.c.l.b16 %v661
      %v758 = vunpack.c.l.b16 %v662
      %v759 = vunpack.c.l.b16 %v663
      %v760 = vunpack.c.l.b16 %v664
      %v761 = vunpack.c.l.b16 %v665
      %v762 = vunpack.c.l.b16 %v666
      %v763 = vpack.c.b16 %v716, %v715
      %v764 = vpack.c.b16 %v718, %v717
      %v765 = vpack.c.b16 %v720, %v719
      %v766 = vpack.c.b16 %v722, %v721
      %v767 = vpack.c.b16 %v724, %v723
      %v768 = vpack.c.b16 %v726, %v725
      %v769 = vpack.c.b16 %v728, %v727
      %v770 = vpack.c.b16 %v730, %v729
      %v771 = vpack.c.b16 %v732, %v731
      %v772 = vpack.c.b16 %v734, %v733
      %v773 = vpack.c.b16 %v736, %v735
      %v774 = vpack.c.b16 %v738, %v737
      %v775 = vpack.c.b16 %v740, %v739
      %v776 = vpack.c.b16 %v742, %v741
      %v777 = vpack.c.b16 %v744, %v743
      %v778 = vpack.c.b16 %v746, %v745
      %v779 = vpack.c.b16 %v748, %v747
      %v780 = vpack.c.b16 %v750, %v749
      %v781 = vpack.c.b16 %v752, %v751
      %v782 = vpack.c.b16 %v754, %v753
      %v783 = vpack.c.b16 %v756, %v755
      %v784 = vpack.c.b16 %v758, %v757
      %v785 = vpack.c.b16 %v760, %v759
      %v786 = vpack.c.b16 %v762, %v761
      %811 = vmatprep.subr.bf16.mxu0 0
      %812 = vmatpush1.bf16.msra.mxu0 %v763
      %813 = vmatprep.subr.bf16.mxu0 0
      %814 = vmatpush1.bf16.msra.mxu0 %v764
      %815 = vmatprep.subr.bf16.mxu0 0
      %816 = vmatpush1.bf16.msra.mxu0 %v765
      %817 = vmatprep.subr.bf16.mxu0 0
      %818 = vmatpush1.bf16.msra.mxu0 %v766
      %819 = vmatprep.subr.bf16.mxu0 0
      %820 = vmatpush1.bf16.msra.mxu0 %v767
      %821 = vmatprep.subr.bf16.mxu0 0
      %822 = vmatpush1.bf16.msra.mxu0 %v768
      %823 = vmatprep.subr.bf16.mxu0 0
      %824 = vmatpush1.bf16.msra.mxu0 %v769
      %825 = vmatprep.subr.bf16.mxu0 0
      %826 = vmatpush1.bf16.msra.mxu0 %v770
      %827 = vmatprep.subr.bf16.mxu0 0
      %828 = vmatpush1.bf16.msra.mxu0 %v771
      %829 = vmatprep.subr.bf16.mxu0 0
      %830 = vmatpush1.bf16.msra.mxu0 %v772
      %831 = vmatprep.subr.bf16.mxu0 0
      %832 = vmatpush1.bf16.msra.mxu0 %v773
      %833 = vmatprep.subr.bf16.mxu0 0
      %834 = vmatpush1.bf16.msra.mxu0 %v774
      %835 = vmatprep.subr.bf16.mxu0 0
      %836 = vmatpush1.bf16.msra.mxu0 %v775
      %837 = vmatprep.subr.bf16.mxu0 0
      %838 = vmatpush1.bf16.msra.mxu0 %v776
      %839 = vmatprep.subr.bf16.mxu0 0
      %840 = vmatpush1.bf16.msra.mxu0 %v777
      %841 = vmatprep.subr.bf16.mxu0 0
      %842 = vmatpush1.bf16.msra.mxu0 %v778
      %843 = vmatprep.mubr.bf16.mxu0 %v603
      %844 = vmatmul.mubr.bf16.gmra.mrb[0].mxu0 %v595
      %v845 = vpop.f32.mrb[0].mxu0
      %v846 = vadd.f32 0.0, %v845
      %v847 = vpop.f32.mrb[0].mxu0
      %v848 = vpop.f32.mrb[0].mxu0
      %v849 = vadd.f32 0.0, %v848
      %v850 = vpop.f32.mrb[0].mxu0
      %851 = vmatprep.mubr.bf16.mxu0 %v604
      %852 = vmatmul.mubr.bf16.gmra.mrb[0].mxu0 %v596
      %v853 = vpop.f32.mrb[0].mxu0
      %v854 = vadd.f32 0.0, %v853
      %v855 = vpop.f32.mrb[0].mxu0
      %v856 = vpop.f32.mrb[0].mxu0
      %v857 = vadd.f32 0.0, %v856
      %v858 = vpop.f32.mrb[0].mxu0
      %859 = vmatprep.mubr.bf16.mxu0 %v605
      %860 = vmatmul.mubr.bf16.gmra.mrb[0].mxu0 %v597
      %v861 = vpop.f32.mrb[0].mxu0
      %v862 = vadd.f32 0.0, %v861
      %v863 = vpop.f32.mrb[0].mxu0
      %v864 = vpop.f32.mrb[0].mxu0
      %v865 = vadd.f32 0.0, %v864
      %v866 = vpop.f32.mrb[0].mxu0
      %867 = vmatprep.mubr.bf16.mxu0 %v606
      %868 = vmatmul.mubr.bf16.gmra.mrb[0].mxu0 %v598
      %v869 = vpop.f32.mrb[0].mxu0
      %v870 = vadd.f32 0.0, %v869
      %v871 = vpop.f32.mrb[0].mxu0
      %v872 = vpop.f32.mrb[0].mxu0
      %v873 = vadd.f32 0.0, %v872
      %v874 = vpop.f32.mrb[0].mxu0
      %875 = vmatprep.mubr.bf16.mxu0 %v607
      %876 = vmatmul.mubr.bf16.gmra.mrb[0].mxu0 %v599
      %v877 = vpop.f32.mrb[0].mxu0
      %v878 = vadd.f32 0.0, %v877
      %v879 = vpop.f32.mrb[0].mxu0
      %v880 = vpop.f32.mrb[0].mxu0
      %v881 = vadd.f32 0.0, %v880
      %v882 = vpop.f32.mrb[0].mxu0
      %883 = vmatprep.mubr.bf16.mxu0 %v608
      %884 = vmatmul.mubr.bf16.gmra.mrb[0].mxu0 %v600
      %v885 = vpop.f32.mrb[0].mxu0
      %v886 = vadd.f32 0.0, %v885
      %v887 = vpop.f32.mrb[0].mxu0
      %v888 = vpop.f32.mrb[0].mxu0
      %v889 = vadd.f32 0.0, %v888
      %v890 = vpop.f32.mrb[0].mxu0
      %891 = vmatprep.mubr.bf16.mxu0 %v609
      %892 = vmatmul.mubr.bf16.gmra.mrb[0].mxu0 %v601
      %v893 = vpop.f32.mrb[0].mxu0
      %v894 = vadd.f32 0.0, %v893
      %v895 = vpop.f32.mrb[0].mxu0
      %v896 = vpop.f32.mrb[0].mxu0
      %v897 = vadd.f32 0.0, %v896
      %v898 = vpop.f32.mrb[0].mxu0
      %899 = vmatprep.mubr.bf16.mxu0 %v610
      %900 = vmatmul.mubr.bf16.gmra.mrb[0].mxu0 %v602
      %v901 = vpop.f32.mrb[0].mxu0
      %v902 = vadd.f32 0.0, %v901
      %v903 = vpop.f32.mrb[0].mxu0
      %v904 = vpop.f32.mrb[0].mxu0
      %v905 = vadd.f32 0.0, %v904
      %v906 = vpop.f32.mrb[0].mxu0
      %907 = vdwg.mxu0
      %908 = vmatprep.subr.bf16.mxu0 0
      %909 = vmatpush1.bf16.msra.mxu0 %v779
      %910 = vmatprep.subr.bf16.mxu0 0
      %911 = vmatpush1.bf16.msra.mxu0 %v780
      %912 = vmatprep.subr.bf16.mxu0 0
      %913 = vmatpush1.bf16.msra.mxu0 %v781
      %914 = vmatprep.subr.bf16.mxu0 0
      %915 = vmatpush1.bf16.msra.mxu0 %v782
      %916 = vmatprep.subr.bf16.mxu0 0
      %917 = vmatpush1.bf16.msra.mxu0 %v783
      %918 = vmatprep.subr.bf16.mxu0 0
      %919 = vmatpush1.bf16.msra.mxu0 %v784
      %920 = vmatprep.subr.bf16.mxu0 0
      %921 = vmatpush1.bf16.msra.mxu0 %v785
      %922 = vmatprep.subr.bf16.mxu0 0
      %923 = vmatpush1.bf16.msra.mxu0 %v786
      %924 = vmatprep.subr.bf16.mxu0 0
      %925 = vmatpush1.bf16.msra.mxu0 0
      %926 = vmatprep.subr.bf16.mxu0 0
      %927 = vmatpush1.bf16.msra.mxu0 0
      %928 = vmatprep.subr.bf16.mxu0 0
      %929 = vmatpush1.bf16.msra.mxu0 0
      %930 = vmatprep.subr.bf16.mxu0 0
      %931 = vmatpush1.bf16.msra.mxu0 0
      %932 = vmatprep.subr.bf16.mxu0 0
      %933 = vmatpush1.bf16.msra.mxu0 0
      %934 = vmatprep.subr.bf16.mxu0 0
      %935 = vmatpush1.bf16.msra.mxu0 0
      %936 = vmatprep.subr.bf16.mxu0 0
      %937 = vmatpush1.bf16.msra.mxu0 0
      %938 = vmatprep.subr.bf16.mxu0 0
      %939 = vmatpush1.bf16.msra.mxu0 0
      %940 = vmatprep.mubr.bf16.mxu0 0
      %941 = vmatmul.mubr.bf16.gmra.mrb[0].mxu0 %v611
      %v942 = vpop.f32.mrb[0].mxu0
      %v943 = vadd.f32 %v846, %v942
      %v944 = vpop.f32.mrb[0].mxu0
      %v945 = vpop.f32.mrb[0].mxu0
      %v946 = vadd.f32 %v849, %v945
      %v947 = vpop.f32.mrb[0].mxu0
      %948 = vmatprep.mubr.bf16.mxu0 0
      %949 = vmatmul.mubr.bf16.gmra.mrb[0].mxu0 %v612
      %v950 = vpop.f32.mrb[0].mxu0
      %v951 = vadd.f32 %v854, %v950
      %v952 = vpop.f32.mrb[0].mxu0
      %v953 = vpop.f32.mrb[0].mxu0
      %v954 = vadd.f32 %v857, %v953
      %v955 = vpop.f32.mrb[0].mxu0
      %956 = vmatprep.mubr.bf16.mxu0 0
      %957 = vmatmul.mubr.bf16.gmra.mrb[0].mxu0 %v613
      %v958 = vpop.f32.mrb[0].mxu0
      %v959 = vadd.f32 %v862, %v958
      %v960 = vpop.f32.mrb[0].mxu0
      %v961 = vpop.f32.mrb[0].mxu0
      %v962 = vadd.f32 %v865, %v961
      %v963 = vpop.f32.mrb[0].mxu0
      %964 = vmatprep.mubr.bf16.mxu0 0
      %965 = vmatmul.mubr.bf16.gmra.mrb[0].mxu0 %v614
      %v966 = vpop.f32.mrb[0].mxu0
      %v967 = vadd.f32 %v870, %v966
      %v968 = vpop.f32.mrb[0].mxu0
      %v969 = vpop.f32.mrb[0].mxu0
      %v970 = vadd.f32 %v873, %v969
      %v971 = vpop.f32.mrb[0].mxu0
      %972 = vmatprep.mubr.bf16.mxu0 0
      %973 = vmatmul.mubr.bf16.gmra.mrb[0].mxu0 %v615
      %v974 = vpop.f32.mrb[0].mxu0
      %v975 = vadd.f32 %v878, %v974
      %v976 = vpop.f32.mrb[0].mxu0
      %v977 = vpop.f32.mrb[0].mxu0
      %v978 = vadd.f32 %v881, %v977
      %v979 = vpop.f32.mrb[0].mxu0
      %980 = vmatprep.mubr.bf16.mxu0 0
      %981 = vmatmul.mubr.bf16.gmra.mrb[0].mxu0 %v616
      %v982 = vpop.f32.mrb[0].mxu0
      %v983 = vadd.f32 %v886, %v982
      %v984 = vpop.f32.mrb[0].mxu0
      %v985 = vpop.f32.mrb[0].mxu0
      %v986 = vadd.f32 %v889, %v985
      %v987 = vpop.f32.mrb[0].mxu0
      %988 = vmatprep.mubr.bf16.mxu0 0
      %989 = vmatmul.mubr.bf16.gmra.mrb[0].mxu0 %v617
      %v990 = vpop.f32.mrb[0].mxu0
      %v991 = vadd.f32 %v894, %v990
      %v992 = vpop.f32.mrb[0].mxu0
      %v993 = vpop.f32.mrb[0].mxu0
      %v994 = vadd.f32 %v897, %v993
      %v995 = vpop.f32.mrb[0].mxu0
      %996 = vmatprep.mubr.bf16.mxu0 0
      %997 = vmatmul.mubr.bf16.gmra.mrb[0].mxu0 %v618
      %v998 = vpop.f32.mrb[0].mxu0
      %v999 = vadd.f32 %v902, %v998
      %v1000 = vpop.f32.mrb[0].mxu0
      %v1001 = vpop.f32.mrb[0].mxu0
      %v1002 = vadd.f32 %v905, %v1001
      %v1003 = vpop.f32.mrb[0].mxu0
      %1004 = vdwg.mxu0
      %1005 = vst [vmem:[%s259] sm:$0xff] %v943
      %1006 = vst [vmem:[%s259 + $0x8] sm:$0xff] %v946
      %1007 = vst [vmem:[%s259 + $0x10] sm:$0xff] %v951
      %1008 = vst [vmem:[%s259 + $0x18] sm:$0xff] %v954
      %1009 = vst [vmem:[%s259 + $0x20] sm:$0xff] %v959
      %1010 = vst [vmem:[%s259 + $0x28] sm:$0xff] %v962
      %1011 = vst [vmem:[%s259 + $0x30] sm:$0xff] %v967
      %1012 = vst [vmem:[%s259 + $0x38] sm:$0xff] %v970
      %1013 = vst [vmem:[%s259 + $0x40] sm:$0xff] %v975
      %1014 = vst [vmem:[%s259 + $0x48] sm:$0xff] %v978
      %1015 = vst [vmem:[%s259 + $0x50] sm:$0xff] %v983
      %1016 = vst [vmem:[%s259 + $0x58] sm:$0xff] %v986
      %1017 = vst [vmem:[%s259 + $0x60] sm:$0xff] %v991
      %1018 = vst [vmem:[%s259 + $0x68] sm:$0xff] %v994
      %1019 = vst [vmem:[%s259 + $0x70] sm:$0xff] %v999
      %1020 = vst [vmem:[%s259 + $0x78] sm:$0xff] %v1002
      %v1021 = vadd.f32 %v943, %v946
      %v1022 = vadd.f32 %v1021, %v951
      %v1023 = vadd.f32 %v1022, %v954
      %v1024 = vadd.f32 %v1023, %v959
      %v1025 = vadd.f32 %v1024, %v962
      %v1026 = vadd.f32 %v1025, %v967
      %v1027 = vadd.f32 %v1026, %v970
      %v1028 = vadd.f32 %v1027, %v975
      %v1029 = vadd.f32 %v1028, %v978
      %v1030 = vadd.f32 %v1029, %v983
      %v1031 = vadd.f32 %v1030, %v986
      %v1032 = vadd.f32 %v1031, %v991
      %v1033 = vadd.f32 %v1032, %v994
      %v1034 = vadd.f32 %v1033, %v999
      %v1035 = vadd.f32 %v1034, %v1002
      %v1036 = vrot.slane %v1035, 4
      %v1037 = vadd.f32 %v1035, %v1036
      %v1038 = vrot.slane %v1037, 2
      %v1039 = vadd.f32 %v1037, %v1038
      %v1040 = vrot.slane %v1039, 1
      %v1041 = vadd.f32 %v1039, %v1040
      %v1042 = vmul.f32 %v943, %v943
      %v1043 = vmul.f32 %v946, %v946
      %v1044 = vmul.f32 %v951, %v951
      %v1045 = vmul.f32 %v954, %v954
      %v1046 = vmul.f32 %v959, %v959
      %v1047 = vmul.f32 %v962, %v962
      %v1048 = vmul.f32 %v967, %v967
      %v1049 = vmul.f32 %v970, %v970
      %v1050 = vmul.f32 %v975, %v975
      %v1051 = vmul.f32 %v978, %v978
      %v1052 = vmul.f32 %v983, %v983
      %v1053 = vmul.f32 %v986, %v986
      %v1054 = vmul.f32 %v991, %v991
      %v1055 = vmul.f32 %v994, %v994
      %v1056 = vmul.f32 %v999, %v999
      %v1057 = vmul.f32 %v1002, %v1002
      %v1058 = vadd.f32 %v1042, %v1043
      %v1059 = vadd.f32 %v1058, %v1044
      %v1060 = vadd.f32 %v1059, %v1045
      %v1061 = vadd.f32 %v1060, %v1046
      %v1062 = vadd.f32 %v1061, %v1047
      %v1063 = vadd.f32 %v1062, %v1048
      %v1064 = vadd.f32 %v1063, %v1049
      %v1065 = vadd.f32 %v1064, %v1050
      %v1066 = vadd.f32 %v1065, %v1051
      %v1067 = vadd.f32 %v1066, %v1052
      %v1068 = vadd.f32 %v1067, %v1053
      %v1069 = vadd.f32 %v1068, %v1054
      %v1070 = vadd.f32 %v1069, %v1055
      %v1071 = vadd.f32 %v1070, %v1056
      %v1072 = vadd.f32 %v1071, %v1057
      %v1073 = vrot.slane %v1072, 4
      %v1074 = vadd.f32 %v1072, %v1073
      %v1075 = vrot.slane %v1074, 2
      %v1076 = vadd.f32 %v1074, %v1075
      %v1077 = vrot.slane %v1076, 1
      %v1078 = vadd.f32 %v1076, %v1077
      %vm1079 = vcmask 1040384
      %v1080 = vsel %vm1079, %v1041, %v1078
      %1081 = vst [vmem:[%s268] sm:$0x3] %v1080
      %s1082 = smul.u32 16, %s22
      %p1083 = scmp.lt.s32.totalorder %s21, 1
      %s1084 = scalar_select %p1083, %s21, 1
      %p1085 = scmp.lt.s32.totalorder %s1082, 31
      %s1086 = scalar_select %p1085, %s1082, 31
      %s1087 = smul.addr %s1084, 32
      %s1088 = sadd.s32 %s1086, %s1087
      %s1089 = smul.addr %s1088, 8
      %s1090 = scalar_lea.vmem %s4, %s1089
      %p1091 = scmp.lt.s32.totalorder %s21, 1
      %s1092 = scalar_select %p1091, %s21, 1
      %p1093 = scmp.lt.s32.totalorder %s22, 1
      %s1094 = scalar_select %p1093, %s22, 1
      %s1095 = smul.addr %s1092, 2
      %s1096 = sadd.s32 %s1094, %s1095
      %s1097 = smul.addr %s1096, 2
      %s1098 = scalar_lea.vmem %s5, %s1097
      // Predicated region
      $region37: #{down_forward.4} parent=35 // pred_check
        %p1099 = pneg %p138
      $region38: #{down_forward.4} parent=35 // pred_check_branch
        %1101 = sbr.rel (%p1099) target = $region40
      $region39: #{down_forward.4} parent=35 // pred_region
        %s1102 = smul.u32 16, %s22
      $region40: #{down_forward.4} parent=35 // pred_fallthru
        _
      // Predicated region
      $region41: #{down_forward.4} parent=35 // pred_check
        %p1103 = pneg %p166
      $region42: #{down_forward.4} parent=35 // pred_check_branch
        %1105 = sbr.rel (%p1103) target = $region44
      $region43: #{down_forward.4} parent=35 // pred_region
        _
      $region44: #{down_forward.4} parent=35 // pred_fallthru
        _
    $region36: #{down_forward.4} parent=5 // pred_fallthru
      _
    %p1106 = scmp.le.s32.totalorder 2, %s12
    // Predicated region
    $region45: #{down_forward.4} parent=5 // pred_check
      %p1107 = pneg %p1106
    $region46: #{down_forward.4} parent=5 // pred_check_branch
      %1109 = sbr.rel (%p1107) target = $region48
    $region47: #{down_forward.4} parent=5 // pred_region
      %s1110 = ssub.s32 %s12, 2
      // Predicated region
      $region49: #{down_forward.4} parent=47 // pred_check
        %p1111 = pneg %p144
      $region50: #{down_forward.4} parent=47 // pred_check_branch
        %1113 = sbr.rel (%p1111) target = $region52
      $region51: #{down_forward.4} parent=47 // pred_region
        %s1114 = smul.u32 16, %s24
        %p1115 = scmp.lt.s32.totalorder %s23, 1
        %s1116 = scalar_select %p1115, %s23, 1
        %p1117 = scmp.lt.s32.totalorder %s1114, 31
        %s1118 = scalar_select %p1117, %s1114, 31
        %s1119 = smul.addr %s1116, 32
        %s1120 = sadd.s32 %s1118, %s1119
        %s1121 = smul.addr %s1120, 8
        %s1122 = scalar_lea.vmem %s4, %s1121
      $region52: #{down_forward.4} parent=47 // pred_fallthru
        _
      // Predicated region
      $region53: #{down_forward.4} parent=47 // pred_check
        %p1123 = pneg %p172
      $region54: #{down_forward.4} parent=47 // pred_check_branch
        %1125 = sbr.rel (%p1123) target = $region56
      $region55: #{down_forward.4} parent=47 // pred_region
        %p1126 = scmp.lt.s32.totalorder %s23, 1
        %s1127 = scalar_select %p1126, %s23, 1
        %p1128 = scmp.lt.s32.totalorder %s24, 1
        %s1129 = scalar_select %p1128, %s24, 1
        %s1130 = smul.addr %s1127, 2
        %s1131 = sadd.s32 %s1129, %s1130
        %s1132 = smul.addr %s1131, 2
        %s1133 = scalar_lea.vmem %s5, %s1132
      $region56: #{down_forward.4} parent=47 // pred_fallthru
        _
    $region48: #{down_forward.4} parent=5 // pred_fallthru
      _
  $region6: #{down_forward.4} parent=0 // loop_footer
    %s16 = sadd.s32 1, %s12
  $region7: #{down_forward.4} parent=0 // loop_footer_branch
    %11 = sbr.rel target = $region3
  $region8: #{down_forward.4} parent=0 // loop_exit
    _

// kernel: down_forward.3
$region0: #{down_forward.3}
  #allocation0 [shape = 'u32[]', space=smem, size = 0x4, offset = 0x4, fixed_abs, tag = 'smem constant byte address 0x4 - core index']
  #allocation1 [shape = 'u32[144,128]{1,0:T(1,128)}', space=vmem, size = 0x12000, scoped, tag = 'internal scratch']
  %s0 = inlined_call_operand.vmem [shape: f32[2,512,128], index: 0, kind: input, shape index: {}]
  %s1 = inlined_call_operand.vmem [shape: bf16[384,128], index: 1, kind: input, shape index: {}]
  %s2 = inlined_call_operand.vmem [shape: f32[2,256,128], index: 2, kind: output, shape index: {0}]
  %s3 = inlined_call_operand.vmem [shape: f32[2,2,2,128], index: 3, kind: output, shape index: {1}]
  %4 = xla_tuple %s2, %s3
  %s5 = sld [smem:[#allocation0]]
  $region49: #{down_forward.3} parent=0
    _
  %s7 = ssub.s32 1, %s5
  %s8 = scalar_select 0, %s7, %s5
  loop: start=0, step=1, limit=6
  $region2: #{down_forward.3} parent=0 // loop_pre_header
    _
  $region3: #{down_forward.3} parent=0 // loop_header
    %s10 = sphi 0, %s14
    %p11 = scmp.ge.s32.totalorder %s10, 6
    %s17 = sphi 0, %s29
    %s18 = sphi 0, %s25
    %s19 = sphi 0, %s17
    %s20 = sphi 0, %s18
    %s21 = sphi 0, %s19
    %s22 = sphi 0, %s20
    %s32 = sphi 0, %s34
    %s35 = sphi 0, %s32
    %s36 = sphi 0, %s35
    %s52 = sphi 0, %s36
    %s56 = sphi 0, %s56
    %s58 = sphi 0, %s56
    %s59 = sphi 0, %s58
    %s73 = sphi 0, %s59
    %s81 = sphi 0, %s83
    %s84 = sphi 0, %s81
    %s85 = sphi 0, %s84
    %s101 = sphi 0, %s85
    %s109 = sphi 0, %s111
    %s112 = sphi 0, %s109
    %s113 = sphi 0, %s112
    %s129 = sphi 0, %s113
  $region4: #{down_forward.3} parent=0 // loop_header_branch
    %13 = sbr.rel (%p11) target = $region8
  $region5: #{down_forward.3} parent=0 // loop_body
    %s15 = ssub.s32 %s10, 1
    %s16 = ssub.s32 %s10, 2
    %s23 = sadd.s32 1, %s18
    %p24 = scmp.ge.s32.totalorder %s23, 2
    %s25 = scalar_select %p24, 0, %s23
    %s26 = sadd.s32 1, %s17
    %s27 = scalar_select %p24, %s26, %s17
    %p28 = scmp.ge.s32.totalorder %s27, 2
    %s29 = scalar_select %p28, 0, %s27
    %s30 = ssub.s32 %s17, %s29
    %p31 = scmp.eq.s32.totalorder %s30, 0
    %s33 = sadd.s32 %s32, 1
    %s34 = scalar_select %p31, %s32, %s33
    %p37 = pneg %p31
    %p38 = scmp.eq.s32.totalorder %s10, 3
    %p39 = por %p37, %p38
    %p40 = scmp.ne.s32.totalorder %s32, %s35
    %p41 = scmp.eq.s32.totalorder %s10, 0
    %p42 = por %p40, %p41
    %p43 = scmp.ne.s32.totalorder %s32, %s35
    %p44 = scmp.eq.s32.totalorder %s15, 3
    %p45 = por %p43, %p44
    %p46 = scmp.ne.s32.totalorder %s35, %s36
    %p47 = scmp.eq.s32.totalorder %s15, 0
    %p48 = por %p46, %p47
    %p49 = scmp.ne.s32.totalorder %s35, %s36
    %p50 = scmp.eq.s32.totalorder %s16, 3
    %p51 = por %p49, %p50
    %p53 = scmp.ne.s32.totalorder %s36, %s52
    %p54 = scmp.eq.s32.totalorder %s16, 0
    %p55 = por %p53, %p54
    %s57 = sadd.s32 %s56, 1
    %p60 = scmp.eq.s32.totalorder %s10, 3
    %p61 = scmp.ne.s32.totalorder %s56, %s58
    %p62 = scmp.eq.s32.totalorder %s10, 0
    %p63 = por %p61, %p62
    %p64 = scmp.ne.s32.totalorder %s56, %s58
    %p65 = scmp.eq.s32.totalorder %s15, 3
    %p66 = por %p64, %p65
    %p67 = scmp.ne.s32.totalorder %s58, %s59
    %p68 = scmp.eq.s32.totalorder %s15, 0
    %p69 = por %p67, %p68
    %p70 = scmp.ne.s32.totalorder %s58, %s59
    %p71 = scmp.eq.s32.totalorder %s16, 3
    %p72 = por %p70, %p71
    %p74 = scmp.ne.s32.totalorder %s59, %s73
    %p75 = scmp.eq.s32.totalorder %s16, 0
    %p76 = por %p74, %p75
    %s77 = ssub.s32 %s17, %s29
    %s78 = ssub.s32 %s18, %s25
    %s79 = sor.u32 %s77, %s78
    %p80 = scmp.eq.s32.totalorder %s79, 0
    %s82 = sadd.s32 %s81, 1
    %s83 = scalar_select %p80, %s81, %s82
    %p86 = pneg %p80
    %p87 = scmp.eq.s32.totalorder %s10, 3
    %p88 = por %p86, %p87
    %p89 = scmp.ne.s32.totalorder %s81, %s84
    %p90 = scmp.eq.s32.totalorder %s10, 0
    %p91 = por %p89, %p90
    %p92 = scmp.ne.s32.totalorder %s81, %s84
    %p93 = scmp.eq.s32.totalorder %s15, 3
    %p94 = por %p92, %p93
    %p95 = scmp.ne.s32.totalorder %s84, %s85
    %p96 = scmp.eq.s32.totalorder %s15, 0
    %p97 = por %p95, %p96
    %p98 = scmp.ne.s32.totalorder %s84, %s85
    %p99 = scmp.eq.s32.totalorder %s16, 3
    %p100 = por %p98, %p99
    %p102 = scmp.ne.s32.totalorder %s85, %s101
    %p103 = scmp.eq.s32.totalorder %s16, 0
    %p104 = por %p102, %p103
    %s105 = ssub.s32 %s17, %s29
    %s106 = ssub.s32 %s18, %s25
    %s107 = sor.u32 %s105, %s106
    %p108 = scmp.eq.s32.totalorder %s107, 0
    %s110 = sadd.s32 %s109, 1
    %s111 = scalar_select %p108, %s109, %s110
    %p114 = pneg %p108
    %p115 = scmp.eq.s32.totalorder %s10, 3
    %p116 = por %p114, %p115
    %p117 = scmp.ne.s32.totalorder %s109, %s112
    %p118 = scmp.eq.s32.totalorder %s10, 0
    %p119 = por %p117, %p118
    %p120 = scmp.ne.s32.totalorder %s109, %s112
    %p121 = scmp.eq.s32.totalorder %s15, 3
    %p122 = por %p120, %p121
    %p123 = scmp.ne.s32.totalorder %s112, %s113
    %p124 = scmp.eq.s32.totalorder %s15, 0
    %p125 = por %p123, %p124
    %p126 = scmp.ne.s32.totalorder %s112, %s113
    %p127 = scmp.eq.s32.totalorder %s16, 3
    %p128 = por %p126, %p127
    %p130 = scmp.ne.s32.totalorder %s113, %s129
    %p131 = scmp.eq.s32.totalorder %s16, 0
    %p132 = por %p130, %p131
    %p133 = scmp.le.s32.totalorder 1, %s10
    %p134 = scmp.lt.s32.totalorder %s10, 5
    %p135 = pnand %p133, %p134
    %p136 = pneg %p135
    // Predicated region
    $region9: #{down_forward.3} parent=5 // pred_check
      _
    $region10: #{down_forward.3} parent=5 // pred_check_branch
      %138 = sbr.rel (%p135) target = $region12
    $region11: #{down_forward.3} parent=5 // pred_region
      %s139 = ssub.s32 %s10, 1
      // Predicated region
      $region13: #{down_forward.3} parent=11 // pred_check
        %p140 = pneg %p69
      $region14: #{down_forward.3} parent=11 // pred_check_branch
        %142 = sbr.rel (%p140) target = $region16
      $region15: #{down_forward.3} parent=11 // pred_region
        _
      $region16: #{down_forward.3} parent=11 // pred_fallthru
        _
    $region12: #{down_forward.3} parent=5 // pred_fallthru
      _
    %p143 = scmp.lt.s32.totalorder %s10, 4
    // Predicated region
    $region17: #{down_forward.3} parent=5 // pred_check
      %p144 = pneg %p143
    $region18: #{down_forward.3} parent=5 // pred_check_branch
      %146 = sbr.rel (%p144) target = $region20
    $region19: #{down_forward.3} parent=5 // pred_region
      // Predicated region
      $region21: #{down_forward.3} parent=19 // pred_check
        %p147 = pneg %p42
      $region22: #{down_forward.3} parent=19 // pred_check_branch
        %149 = sbr.rel (%p147) target = $region24
      $region23: #{down_forward.3} parent=19 // pred_region
        %p150 = scmp.lt.s32.totalorder %s17, 1
        %s151 = scalar_select %p150, %s17, 1
        %s152 = smul.addr %s151, 64
        %s153 = smul.addr %s152, 8
        %s154 = scalar_lea.vmem %s0, %s153
      $region24: #{down_forward.3} parent=19 // pred_fallthru
        _
    $region20: #{down_forward.3} parent=5 // pred_fallthru
      _
    %p155 = scmp.le.s32.totalorder 1, %s10
    %p156 = scmp.lt.s32.totalorder %s10, 5
    %p157 = pnand %p155, %p156
    %p158 = pneg %p157
    // Predicated region
    $region25: #{down_forward.3} parent=5 // pred_check
      _
    $region26: #{down_forward.3} parent=5 // pred_check_branch
      %160 = sbr.rel (%p157) target = $region28
    $region27: #{down_forward.3} parent=5 // pred_region
      %s161 = ssub.s32 %s10, 1
      %p162 = scmp.lt.s32.totalorder %s19, 1
      %s163 = scalar_select %p162, %s19, 1
      %s164 = smul.addr %s163, 64
      %s165 = smul.addr %s164, 8
      %s166 = scalar_lea.vmem %s0, %s165
      %p167 = pneg %p48
      %p168 = pneg %p45
      %p169 = pneg %p69
      %p170 = pneg %p66
      %p171 = pneg %p97
      %p172 = pneg %p94
      %s173 = smul.u32 16, %s20
      %p174 = scmp.lt.s32.totalorder %s19, 1
      %s175 = scalar_select %p174, %s19, 1
      %p176 = scmp.lt.s32.totalorder %s173, 31
      %s177 = scalar_select %p176, %s173, 31
      %s178 = smul.addr %s175, 32
      %s179 = sadd.s32 %s177, %s178
      %s180 = smul.addr %s179, 8
      %s181 = scalar_lea.vmem %s2, %s180
      %p182 = pneg %p125
      %p183 = pneg %p122
      %p184 = scmp.lt.s32.totalorder %s19, 1
      %s185 = scalar_select %p184, %s19, 1
      %p186 = scmp.lt.s32.totalorder %s20, 1
      %s187 = scalar_select %p186, %s20, 1
      %s188 = smul.addr %s185, 2
      %s189 = sadd.s32 %s187, %s188
      %s190 = smul.addr %s189, 2
      %s191 = scalar_lea.vmem %s3, %s190
      %p192 = scmp.lt.s32.totalorder %s19, 1
      %s193 = scalar_select %p192, %s19, 1
      %s194 = smul.addr %s193, 64
      %s195 = smul.addr %s194, 8
      %s196 = scalar_lea.vmem %s0, %s195
      %s197 = smul.u32 16, %s20
      %p198 = scmp.lt.s32.totalorder %s19, 1
      %s199 = scalar_select %p198, %s19, 1
      %p200 = scmp.lt.s32.totalorder %s197, 31
      %s201 = scalar_select %p200, %s197, 31
      %s202 = smul.addr %s199, 32
      %s203 = sadd.s32 %s201, %s202
      %s204 = smul.addr %s203, 8
      %s205 = scalar_lea.vmem %s2, %s204
      %s206 = smul.u32 16, %s20
      %p207 = scmp.lt.s32.totalorder %s19, 1
      %s208 = scalar_select %p207, %s19, 1
      %p209 = scmp.lt.s32.totalorder %s20, 1
      %s210 = scalar_select %p209, %s20, 1
      %s211 = smul.addr %s208, 2
      %s212 = sadd.s32 %s210, %s211
      %s213 = smul.addr %s212, 2
      %s214 = scalar_lea.vmem %s3, %s213
      %s216 = smul.u32 %s20, 256
      %s217 = scalar_lea.vmem %s196, %s216
      %v218 = vld [vmem:[%s217] sm:$0xff]
      %v219 = vld [vmem:[%s217 + $0x8] sm:$0xff]
      %v220 = vld [vmem:[%s217 + $0x10] sm:$0xff]
      %v221 = vld [vmem:[%s217 + $0x18] sm:$0xff]
      %v222 = vld [vmem:[%s217 + $0x20] sm:$0xff]
      %v223 = vld [vmem:[%s217 + $0x28] sm:$0xff]
      %v224 = vld [vmem:[%s217 + $0x30] sm:$0xff]
      %v225 = vld [vmem:[%s217 + $0x38] sm:$0xff]
      %v226 = vld [vmem:[%s217 + $0x40] sm:$0xff]
      %v227 = vld [vmem:[%s217 + $0x48] sm:$0xff]
      %v228 = vld [vmem:[%s217 + $0x50] sm:$0xff]
      %v229 = vld [vmem:[%s217 + $0x58] sm:$0xff]
      %v230 = vld [vmem:[%s217 + $0x60] sm:$0xff]
      %v231 = vld [vmem:[%s217 + $0x68] sm:$0xff]
      %v232 = vld [vmem:[%s217 + $0x70] sm:$0xff]
      %v233 = vld [vmem:[%s217 + $0x78] sm:$0xff]
      %v234 = vld [vmem:[%s217 + $0x80] sm:$0xff]
      %v235 = vld [vmem:[%s217 + $0x88] sm:$0xff]
      %v236 = vld [vmem:[%s217 + $0x90] sm:$0xff]
      %v237 = vld [vmem:[%s217 + $0x98] sm:$0xff]
      %v238 = vld [vmem:[%s217 + $0xa0] sm:$0xff]
      %v239 = vld [vmem:[%s217 + $0xa8] sm:$0xff]
      %v240 = vld [vmem:[%s217 + $0xb0] sm:$0xff]
      %v241 = vld [vmem:[%s217 + $0xb8] sm:$0xff]
      %v242 = vld [vmem:[%s217 + $0xc0] sm:$0xff]
      %v243 = vld [vmem:[%s217 + $0xc8] sm:$0xff]
      %v244 = vld [vmem:[%s217 + $0xd0] sm:$0xff]
      %v245 = vld [vmem:[%s217 + $0xd8] sm:$0xff]
      %v246 = vld [vmem:[%s217 + $0xe0] sm:$0xff]
      %v247 = vld [vmem:[%s217 + $0xe8] sm:$0xff]
      %v248 = vld [vmem:[%s217 + $0xf0] sm:$0xff]
      %v249 = vld [vmem:[%s217 + $0xf8] sm:$0xff]
      %v282 = vcombine.high %v218, %v218
      %v284 = vunpack.c.l.s4 1983009808
      %v285 = vunpack.c.0.s8 %v284
      %v286 = vlaneseq
      %v287 = vshrl.u32 %v286, 7
      %v288 = vsub.s32 %v285, %v287
      %v289 = vrot.slane %v218, %v288
      %v291 = vunpack.c.l.s4 1983009808
      %v292 = vunpack.c.0.s8 %v291
      %v293 = vlaneseq
      %v294 = vshrl.u32 %v293, 7
      %v295 = vsub.s32 %v292, %v294
      %v296 = vrot.slane %v282, %v295
      %v297 = vcombine.high %v289, %v289
      %v298 = vcombine.high %v296, %v296
      %v299 = vcombine.high %v219, %v219
      %v301 = vunpack.c.l.s4 1983009808
      %v302 = vunpack.c.0.s8 %v301
      %v303 = vlaneseq
      %v304 = vshrl.u32 %v303, 7
      %v305 = vsub.s32 %v302, %v304
      %v306 = vrot.slane %v219, %v305
      %v308 = vunpack.c.l.s4 1983009808
      %v309 = vunpack.c.0.s8 %v308
      %v310 = vlaneseq
      %v311 = vshrl.u32 %v310, 7
      %v312 = vsub.s32 %v309, %v311
      %v313 = vrot.slane %v299, %v312
      %v314 = vcombine.high %v306, %v306
      %v315 = vcombine.high %v313, %v313
      %v316 = vcombine.high %v220, %v220
      %v318 = vunpack.c.l.s4 1983009808
      %v319 = vunpack.c.0.s8 %v318
      %v320 = vlaneseq
      %v321 = vshrl.u32 %v320, 7
      %v322 = vsub.s32 %v319, %v321
      %v323 = vrot.slane %v220, %v322
      %v325 = vunpack.c.l.s4 1983009808
      %v326 = vunpack.c.0.s8 %v325
      %v327 = vlaneseq
      %v328 = vshrl.u32 %v327, 7
      %v329 = vsub.s32 %v326, %v328
      %v330 = vrot.slane %v316, %v329
      %v331 = vcombine.high %v323, %v323
      %v332 = vcombine.high %v330, %v330
      %v333 = vcombine.high %v221, %v221
      %v335 = vunpack.c.l.s4 1983009808
      %v336 = vunpack.c.0.s8 %v335
      %v337 = vlaneseq
      %v338 = vshrl.u32 %v337, 7
      %v339 = vsub.s32 %v336, %v338
      %v340 = vrot.slane %v221, %v339
      %v342 = vunpack.c.l.s4 1983009808
      %v343 = vunpack.c.0.s8 %v342
      %v344 = vlaneseq
      %v345 = vshrl.u32 %v344, 7
      %v346 = vsub.s32 %v343, %v345
      %v347 = vrot.slane %v333, %v346
      %v348 = vcombine.high %v340, %v340
      %v349 = vcombine.high %v347, %v347
      %v350 = vcombine.high %v222, %v222
      %v352 = vunpack.c.l.s4 1983009808
      %v353 = vunpack.c.0.s8 %v352
      %v354 = vlaneseq
      %v355 = vshrl.u32 %v354, 7
      %v356 = vsub.s32 %v353, %v355
      %v357 = vrot.slane %v222, %v356
      %v359 = vunpack.c.l.s4 1983009808
      %v360 = vunpack.c.0.s8 %v359
      %v361 = vlaneseq
      %v362 = vshrl.u32 %v361, 7
      %v363 = vsub.s32 %v360, %v362
      %v364 = vrot.slane %v350, %v363
      %v365 = vcombine.high %v357, %v357
      %v366 = vcombine.high %v364, %v364
      %v367 = vcombine.high %v223, %v223
      %v369 = vunpack.c.l.s4 1983009808
      %v370 = vunpack.c.0.s8 %v369
      %v371 = vlaneseq
      %v372 = vshrl.u32 %v371, 7
      %v373 = vsub.s32 %v370, %v372
      %v374 = vrot.slane %v223, %v373
      %v376 = vunpack.c.l.s4 1983009808
      %v377 = vunpack.c.0.s8 %v376
      %v378 = vlaneseq
      %v379 = vshrl.u32 %v378, 7
      %v380 = vsub.s32 %v377, %v379
      %v381 = vrot.slane %v367, %v380
      %v382 = vcombine.high %v374, %v374
      %v383 = vcombine.high %v381, %v381
      %v384 = vcombine.high %v224, %v224
      %v386 = vunpack.c.l.s4 1983009808
      %v387 = vunpack.c.0.s8 %v386
      %v388 = vlaneseq
      %v389 = vshrl.u32 %v388, 7
      %v390 = vsub.s32 %v387, %v389
      %v391 = vrot.slane %v224, %v390
      %v393 = vunpack.c.l.s4 1983009808
      %v394 = vunpack.c.0.s8 %v393
      %v395 = vlaneseq
      %v396 = vshrl.u32 %v395, 7
      %v397 = vsub.s32 %v394, %v396
      %v398 = vrot.slane %v384, %v397
      %v399 = vcombine.high %v391, %v391
      %v400 = vcombine.high %v398, %v398
      %v401 = vcombine.high %v225, %v225
      %v403 = vunpack.c.l.s4 1983009808
      %v404 = vunpack.c.0.s8 %v403
      %v405 = vlaneseq
      %v406 = vshrl.u32 %v405, 7
      %v407 = vsub.s32 %v404, %v406
      %v408 = vrot.slane %v225, %v407
      %v410 = vunpack.c.l.s4 1983009808
      %v411 = vunpack.c.0.s8 %v410
      %v412 = vlaneseq
      %v413 = vshrl.u32 %v412, 7
      %v414 = vsub.s32 %v411, %v413
      %v415 = vrot.slane %v401, %v414
      %v416 = vcombine.high %v408, %v408
      %v417 = vcombine.high %v415, %v415
      %v418 = vcombine.high %v226, %v226
      %v420 = vunpack.c.l.s4 1983009808
      %v421 = vunpack.c.0.s8 %v420
      %v422 = vlaneseq
      %v423 = vshrl.u32 %v422, 7
      %v424 = vsub.s32 %v421, %v423
      %v425 = vrot.slane %v226, %v424
      %v427 = vunpack.c.l.s4 1983009808
      %v428 = vunpack.c.0.s8 %v427
      %v429 = vlaneseq
      %v430 = vshrl.u32 %v429, 7
      %v431 = vsub.s32 %v428, %v430
      %v432 = vrot.slane %v418, %v431
      %v433 = vcombine.high %v425, %v425
      %v434 = vcombine.high %v432, %v432
      %v435 = vcombine.high %v227, %v227
      %v437 = vunpack.c.l.s4 1983009808
      %v438 = vunpack.c.0.s8 %v437
      %v439 = vlaneseq
      %v440 = vshrl.u32 %v439, 7
      %v441 = vsub.s32 %v438, %v440
      %v442 = vrot.slane %v227, %v441
      %v444 = vunpack.c.l.s4 1983009808
      %v445 = vunpack.c.0.s8 %v444
      %v446 = vlaneseq
      %v447 = vshrl.u32 %v446, 7
      %v448 = vsub.s32 %v445, %v447
      %v449 = vrot.slane %v435, %v448
      %v450 = vcombine.high %v442, %v442
      %v451 = vcombine.high %v449, %v449
      %v452 = vcombine.high %v228, %v228
      %v454 = vunpack.c.l.s4 1983009808
      %v455 = vunpack.c.0.s8 %v454
      %v456 = vlaneseq
      %v457 = vshrl.u32 %v456, 7
      %v458 = vsub.s32 %v455, %v457
      %v459 = vrot.slane %v228, %v458
      %v461 = vunpack.c.l.s4 1983009808
      %v462 = vunpack.c.0.s8 %v461
      %v463 = vlaneseq
      %v464 = vshrl.u32 %v463, 7
      %v465 = vsub.s32 %v462, %v464
      %v466 = vrot.slane %v452, %v465
      %v467 = vcombine.high %v459, %v459
      %v468 = vcombine.high %v466, %v466
      %v469 = vcombine.high %v229, %v229
      %v471 = vunpack.c.l.s4 1983009808
      %v472 = vunpack.c.0.s8 %v471
      %v473 = vlaneseq
      %v474 = vshrl.u32 %v473, 7
      %v475 = vsub.s32 %v472, %v474
      %v476 = vrot.slane %v229, %v475
      %v478 = vunpack.c.l.s4 1983009808
      %v479 = vunpack.c.0.s8 %v478
      %v480 = vlaneseq
      %v481 = vshrl.u32 %v480, 7
      %v482 = vsub.s32 %v479, %v481
      %v483 = vrot.slane %v469, %v482
      %v484 = vcombine.high %v476, %v476
      %v485 = vcombine.high %v483, %v483
      %v486 = vcombine.high %v230, %v230
      %v488 = vunpack.c.l.s4 1983009808
      %v489 = vunpack.c.0.s8 %v488
      %v490 = vlaneseq
      %v491 = vshrl.u32 %v490, 7
      %v492 = vsub.s32 %v489, %v491
      %v493 = vrot.slane %v230, %v492
      %v495 = vunpack.c.l.s4 1983009808
      %v496 = vunpack.c.0.s8 %v495
      %v497 = vlaneseq
      %v498 = vshrl.u32 %v497, 7
      %v499 = vsub.s32 %v496, %v498
      %v500 = vrot.slane %v486, %v499
      %v501 = vcombine.high %v493, %v493
      %v502 = vcombine.high %v500, %v500
      %v503 = vcombine.high %v231, %v231
      %v505 = vunpack.c.l.s4 1983009808
      %v506 = vunpack.c.0.s8 %v505
      %v507 = vlaneseq
      %v508 = vshrl.u32 %v507, 7
      %v509 = vsub.s32 %v506, %v508
      %v510 = vrot.slane %v231, %v509
      %v512 = vunpack.c.l.s4 1983009808
      %v513 = vunpack.c.0.s8 %v512
      %v514 = vlaneseq
      %v515 = vshrl.u32 %v514, 7
      %v516 = vsub.s32 %v513, %v515
      %v517 = vrot.slane %v503, %v516
      %v518 = vcombine.high %v510, %v510
      %v519 = vcombine.high %v517, %v517
      %v520 = vcombine.high %v232, %v232
      %v522 = vunpack.c.l.s4 1983009808
      %v523 = vunpack.c.0.s8 %v522
      %v524 = vlaneseq
      %v525 = vshrl.u32 %v524, 7
      %v526 = vsub.s32 %v523, %v525
      %v527 = vrot.slane %v232, %v526
      %v529 = vunpack.c.l.s4 1983009808
      %v530 = vunpack.c.0.s8 %v529
      %v531 = vlaneseq
      %v532 = vshrl.u32 %v531, 7
      %v533 = vsub.s32 %v530, %v532
      %v534 = vrot.slane %v520, %v533
      %v535 = vcombine.high %v527, %v527
      %v536 = vcombine.high %v534, %v534
      %v537 = vcombine.high %v233, %v233
      %v539 = vunpack.c.l.s4 1983009808
      %v540 = vunpack.c.0.s8 %v539
      %v541 = vlaneseq
      %v542 = vshrl.u32 %v541, 7
      %v543 = vsub.s32 %v540, %v542
      %v544 = vrot.slane %v233, %v543
      %v546 = vunpack.c.l.s4 1983009808
      %v547 = vunpack.c.0.s8 %v546
      %v548 = vlaneseq
      %v549 = vshrl.u32 %v548, 7
      %v550 = vsub.s32 %v547, %v549
      %v551 = vrot.slane %v537, %v550
      %v552 = vcombine.high %v544, %v544
      %v553 = vcombine.high %v551, %v551
      %v554 = vcombine.high %v234, %v234
      %v556 = vunpack.c.l.s4 1983009808
      %v557 = vunpack.c.0.s8 %v556
      %v558 = vlaneseq
      %v559 = vshrl.u32 %v558, 7
      %v560 = vsub.s32 %v557, %v559
      %v561 = vrot.slane %v234, %v560
      %v563 = vunpack.c.l.s4 1983009808
      %v564 = vunpack.c.0.s8 %v563
      %v565 = vlaneseq
      %v566 = vshrl.u32 %v565, 7
      %v567 = vsub.s32 %v564, %v566
      %v568 = vrot.slane %v554, %v567
      %v569 = vcombine.high %v561, %v561
      %v570 = vcombine.high %v568, %v568
      %v571 = vcombine.high %v235, %v235
      %v573 = vunpack.c.l.s4 1983009808
      %v574 = vunpack.c.0.s8 %v573
      %v575 = vlaneseq
      %v576 = vshrl.u32 %v575, 7
      %v577 = vsub.s32 %v574, %v576
      %v578 = vrot.slane %v235, %v577
      %v580 = vunpack.c.l.s4 1983009808
      %v581 = vunpack.c.0.s8 %v580
      %v582 = vlaneseq
      %v583 = vshrl.u32 %v582, 7
      %v584 = vsub.s32 %v581, %v583
      %v585 = vrot.slane %v571, %v584
      %v586 = vcombine.high %v578, %v578
      %v587 = vcombine.high %v585, %v585
      %v588 = vcombine.high %v236, %v236
      %v590 = vunpack.c.l.s4 1983009808
      %v591 = vunpack.c.0.s8 %v590
      %v592 = vlaneseq
      %v593 = vshrl.u32 %v592, 7
      %v594 = vsub.s32 %v591, %v593
      %v595 = vrot.slane %v236, %v594
      %v597 = vunpack.c.l.s4 1983009808
      %v598 = vunpack.c.0.s8 %v597
      %v599 = vlaneseq
      %v600 = vshrl.u32 %v599, 7
      %v601 = vsub.s32 %v598, %v600
      %v602 = vrot.slane %v588, %v601
      %v603 = vcombine.high %v595, %v595
      %v604 = vcombine.high %v602, %v602
      %v605 = vcombine.high %v237, %v237
      %v607 = vunpack.c.l.s4 1983009808
      %v608 = vunpack.c.0.s8 %v607
      %v609 = vlaneseq
      %v610 = vshrl.u32 %v609, 7
      %v611 = vsub.s32 %v608, %v610
      %v612 = vrot.slane %v237, %v611
      %v614 = vunpack.c.l.s4 1983009808
      %v615 = vunpack.c.0.s8 %v614
      %v616 = vlaneseq
      %v617 = vshrl.u32 %v616, 7
      %v618 = vsub.s32 %v615, %v617
      %v619 = vrot.slane %v605, %v618
      %v620 = vcombine.high %v612, %v612
      %v621 = vcombine.high %v619, %v619
      %v622 = vcombine.high %v238, %v238
      %v624 = vunpack.c.l.s4 1983009808
      %v625 = vunpack.c.0.s8 %v624
      %v626 = vlaneseq
      %v627 = vshrl.u32 %v626, 7
      %v628 = vsub.s32 %v625, %v627
      %v629 = vrot.slane %v238, %v628
      %v631 = vunpack.c.l.s4 1983009808
      %v632 = vunpack.c.0.s8 %v631
      %v633 = vlaneseq
      %v634 = vshrl.u32 %v633, 7
      %v635 = vsub.s32 %v632, %v634
      %v636 = vrot.slane %v622, %v635
      %v637 = vcombine.high %v629, %v629
      %v638 = vcombine.high %v636, %v636
      %v639 = vcombine.high %v239, %v239
      %v641 = vunpack.c.l.s4 1983009808
      %v642 = vunpack.c.0.s8 %v641
      %v643 = vlaneseq
      %v644 = vshrl.u32 %v643, 7
      %v645 = vsub.s32 %v642, %v644
      %v646 = vrot.slane %v239, %v645
      %v648 = vunpack.c.l.s4 1983009808
      %v649 = vunpack.c.0.s8 %v648
      %v650 = vlaneseq
      %v651 = vshrl.u32 %v650, 7
      %v652 = vsub.s32 %v649, %v651
      %v653 = vrot.slane %v639, %v652
      %v654 = vcombine.high %v646, %v646
      %v655 = vcombine.high %v653, %v653
      %v656 = vcombine.high %v240, %v240
      %v658 = vunpack.c.l.s4 1983009808
      %v659 = vunpack.c.0.s8 %v658
      %v660 = vlaneseq
      %v661 = vshrl.u32 %v660, 7
      %v662 = vsub.s32 %v659, %v661
      %v663 = vrot.slane %v240, %v662
      %v665 = vunpack.c.l.s4 1983009808
      %v666 = vunpack.c.0.s8 %v665
      %v667 = vlaneseq
      %v668 = vshrl.u32 %v667, 7
      %v669 = vsub.s32 %v666, %v668
      %v670 = vrot.slane %v656, %v669
      %v671 = vcombine.high %v663, %v663
      %v672 = vcombine.high %v670, %v670
      %v673 = vcombine.high %v241, %v241
      %v675 = vunpack.c.l.s4 1983009808
      %v676 = vunpack.c.0.s8 %v675
      %v677 = vlaneseq
      %v678 = vshrl.u32 %v677, 7
      %v679 = vsub.s32 %v676, %v678
      %v680 = vrot.slane %v241, %v679
      %v682 = vunpack.c.l.s4 1983009808
      %v683 = vunpack.c.0.s8 %v682
      %v684 = vlaneseq
      %v685 = vshrl.u32 %v684, 7
      %v686 = vsub.s32 %v683, %v685
      %v687 = vrot.slane %v673, %v686
      %v688 = vcombine.high %v680, %v680
      %v689 = vcombine.high %v687, %v687
      %v690 = vcombine.high %v242, %v242
      %v692 = vunpack.c.l.s4 1983009808
      %v693 = vunpack.c.0.s8 %v692
      %v694 = vlaneseq
      %v695 = vshrl.u32 %v694, 7
      %v696 = vsub.s32 %v693, %v695
      %v697 = vrot.slane %v242, %v696
      %v699 = vunpack.c.l.s4 1983009808
      %v700 = vunpack.c.0.s8 %v699
      %v701 = vlaneseq
      %v702 = vshrl.u32 %v701, 7
      %v703 = vsub.s32 %v700, %v702
      %v704 = vrot.slane %v690, %v703
      %v705 = vcombine.high %v697, %v697
      %v706 = vcombine.high %v704, %v704
      %v707 = vcombine.high %v243, %v243
      %v709 = vunpack.c.l.s4 1983009808
      %v710 = vunpack.c.0.s8 %v709
      %v711 = vlaneseq
      %v712 = vshrl.u32 %v711, 7
      %v713 = vsub.s32 %v710, %v712
      %v714 = vrot.slane %v243, %v713
      %v716 = vunpack.c.l.s4 1983009808
      %v717 = vunpack.c.0.s8 %v716
      %v718 = vlaneseq
      %v719 = vshrl.u32 %v718, 7
      %v720 = vsub.s32 %v717, %v719
      %v721 = vrot.slane %v707, %v720
      %v722 = vcombine.high %v714, %v714
      %v723 = vcombine.high %v721, %v721
      %v724 = vcombine.high %v244, %v244
      %v726 = vunpack.c.l.s4 1983009808
      %v727 = vunpack.c.0.s8 %v726
      %v728 = vlaneseq
      %v729 = vshrl.u32 %v728, 7
      %v730 = vsub.s32 %v727, %v729
      %v731 = vrot.slane %v244, %v730
      %v733 = vunpack.c.l.s4 1983009808
      %v734 = vunpack.c.0.s8 %v733
      %v735 = vlaneseq
      %v736 = vshrl.u32 %v735, 7
      %v737 = vsub.s32 %v734, %v736
      %v738 = vrot.slane %v724, %v737
      %v739 = vcombine.high %v731, %v731
      %v740 = vcombine.high %v738, %v738
      %v741 = vcombine.high %v245, %v245
      %v743 = vunpack.c.l.s4 1983009808
      %v744 = vunpack.c.0.s8 %v743
      %v745 = vlaneseq
      %v746 = vshrl.u32 %v745, 7
      %v747 = vsub.s32 %v744, %v746
      %v748 = vrot.slane %v245, %v747
      %v750 = vunpack.c.l.s4 1983009808
      %v751 = vunpack.c.0.s8 %v750
      %v752 = vlaneseq
      %v753 = vshrl.u32 %v752, 7
      %v754 = vsub.s32 %v751, %v753
      %v755 = vrot.slane %v741, %v754
      %v756 = vcombine.high %v748, %v748
      %v757 = vcombine.high %v755, %v755
      %v758 = vcombine.high %v246, %v246
      %v760 = vunpack.c.l.s4 1983009808
      %v761 = vunpack.c.0.s8 %v760
      %v762 = vlaneseq
      %v763 = vshrl.u32 %v762, 7
      %v764 = vsub.s32 %v761, %v763
      %v765 = vrot.slane %v246, %v764
      %v767 = vunpack.c.l.s4 1983009808
      %v768 = vunpack.c.0.s8 %v767
      %v769 = vlaneseq
      %v770 = vshrl.u32 %v769, 7
      %v771 = vsub.s32 %v768, %v770
      %v772 = vrot.slane %v758, %v771
      %v773 = vcombine.high %v765, %v765
      %v774 = vcombine.high %v772, %v772
      %v775 = vcombine.high %v247, %v247
      %v777 = vunpack.c.l.s4 1983009808
      %v778 = vunpack.c.0.s8 %v777
      %v779 = vlaneseq
      %v780 = vshrl.u32 %v779, 7
      %v781 = vsub.s32 %v778, %v780
      %v782 = vrot.slane %v247, %v781
      %v784 = vunpack.c.l.s4 1983009808
      %v785 = vunpack.c.0.s8 %v784
      %v786 = vlaneseq
      %v787 = vshrl.u32 %v786, 7
      %v788 = vsub.s32 %v785, %v787
      %v789 = vrot.slane %v775, %v788
      %v790 = vcombine.high %v782, %v782
      %v791 = vcombine.high %v789, %v789
      %v792 = vcombine.high %v248, %v248
      %v794 = vunpack.c.l.s4 1983009808
      %v795 = vunpack.c.0.s8 %v794
      %v796 = vlaneseq
      %v797 = vshrl.u32 %v796, 7
      %v798 = vsub.s32 %v795, %v797
      %v799 = vrot.slane %v248, %v798
      %v801 = vunpack.c.l.s4 1983009808
      %v802 = vunpack.c.0.s8 %v801
      %v803 = vlaneseq
      %v804 = vshrl.u32 %v803, 7
      %v805 = vsub.s32 %v802, %v804
      %v806 = vrot.slane %v792, %v805
      %v807 = vcombine.high %v799, %v799
      %v808 = vcombine.high %v806, %v806
      %v809 = vcombine.high %v249, %v249
      %v811 = vunpack.c.l.s4 1983009808
      %v812 = vunpack.c.0.s8 %v811
      %v813 = vlaneseq
      %v814 = vshrl.u32 %v813, 7
      %v815 = vsub.s32 %v812, %v814
      %v816 = vrot.slane %v249, %v815
      %v818 = vunpack.c.l.s4 1983009808
      %v819 = vunpack.c.0.s8 %v818
      %v820 = vlaneseq
      %v821 = vshrl.u32 %v820, 7
      %v822 = vsub.s32 %v819, %v821
      %v823 = vrot.slane %v809, %v822
      %v824 = vcombine.high %v816, %v816
      %v825 = vcombine.high %v823, %v823
      %vm954 = vcmask 1041408
      %v955 = vsel %vm954, %v289, -inf
      %v956 = vrot.slane %v955, 4
      %v957 = vmax.f32 %v955, %v956
      %v958 = vrot.slane %v957, 2
      %v959 = vmax.f32 %v957, %v958
      %v960 = vrot.slane %v959, 1
      %v961 = vmax.f32 %v959, %v960
      %v962 = vsel %vm954, %v297, -inf
      %v963 = vrot.slane %v962, 4
      %v964 = vmax.f32 %v962, %v963
      %v965 = vrot.slane %v964, 2
      %v966 = vmax.f32 %v964, %v965
      %v967 = vrot.slane %v966, 1
      %v968 = vmax.f32 %v966, %v967
      %v969 = vsel %vm954, %v296, -inf
      %v970 = vrot.slane %v969, 4
      %v971 = vmax.f32 %v969, %v970
      %v972 = vrot.slane %v971, 2
      %v973 = vmax.f32 %v971, %v972
      %v974 = vrot.slane %v973, 1
      %v975 = vmax.f32 %v973, %v974
      %v976 = vsel %vm954, %v298, -inf
      %v977 = vrot.slane %v976, 4
      %v978 = vmax.f32 %v976, %v977
      %v979 = vrot.slane %v978, 2
      %v980 = vmax.f32 %v978, %v979
      %v981 = vrot.slane %v980, 1
      %v982 = vmax.f32 %v980, %v981
      %v983 = vsel %vm954, %v306, -inf
      %v984 = vrot.slane %v983, 4
      %v985 = vmax.f32 %v983, %v984
      %v986 = vrot.slane %v985, 2
      %v987 = vmax.f32 %v985, %v986
      %v988 = vrot.slane %v987, 1
      %v989 = vmax.f32 %v987, %v988
      %v990 = vsel %vm954, %v314, -inf
      %v991 = vrot.slane %v990, 4
      %v992 = vmax.f32 %v990, %v991
      %v993 = vrot.slane %v992, 2
      %v994 = vmax.f32 %v992, %v993
      %v995 = vrot.slane %v994, 1
      %v996 = vmax.f32 %v994, %v995
      %v997 = vsel %vm954, %v313, -inf
      %v998 = vrot.slane %v997, 4
      %v999 = vmax.f32 %v997, %v998
      %v1000 = vrot.slane %v999, 2
      %v1001 = vmax.f32 %v999, %v1000
      %v1002 = vrot.slane %v1001, 1
      %v1003 = vmax.f32 %v1001, %v1002
      %v1004 = vsel %vm954, %v315, -inf
      %v1005 = vrot.slane %v1004, 4
      %v1006 = vmax.f32 %v1004, %v1005
      %v1007 = vrot.slane %v1006, 2
      %v1008 = vmax.f32 %v1006, %v1007
      %v1009 = vrot.slane %v1008, 1
      %v1010 = vmax.f32 %v1008, %v1009
      %v1011 = vsel %vm954, %v323, -inf
      %v1012 = vrot.slane %v1011, 4
      %v1013 = vmax.f32 %v1011, %v1012
      %v1014 = vrot.slane %v1013, 2
      %v1015 = vmax.f32 %v1013, %v1014
      %v1016 = vrot.slane %v1015, 1
      %v1017 = vmax.f32 %v1015, %v1016
      %v1018 = vsel %vm954, %v331, -inf
      %v1019 = vrot.slane %v1018, 4
      %v1020 = vmax.f32 %v1018, %v1019
      %v1021 = vrot.slane %v1020, 2
      %v1022 = vmax.f32 %v1020, %v1021
      %v1023 = vrot.slane %v1022, 1
      %v1024 = vmax.f32 %v1022, %v1023
      %v1025 = vsel %vm954, %v330, -inf
      %v1026 = vrot.slane %v1025, 4
      %v1027 = vmax.f32 %v1025, %v1026
      %v1028 = vrot.slane %v1027, 2
      %v1029 = vmax.f32 %v1027, %v1028
      %v1030 = vrot.slane %v1029, 1
      %v1031 = vmax.f32 %v1029, %v1030
      %v1032 = vsel %vm954, %v332, -inf
      %v1033 = vrot.slane %v1032, 4
      %v1034 = vmax.f32 %v1032, %v1033
      %v1035 = vrot.slane %v1034, 2
      %v1036 = vmax.f32 %v1034, %v1035
      %v1037 = vrot.slane %v1036, 1
      %v1038 = vmax.f32 %v1036, %v1037
      %v1039 = vsel %vm954, %v340, -inf
      %v1040 = vrot.slane %v1039, 4
      %v1041 = vmax.f32 %v1039, %v1040
      %v1042 = vrot.slane %v1041, 2
      %v1043 = vmax.f32 %v1041, %v1042
      %v1044 = vrot.slane %v1043, 1
      %v1045 = vmax.f32 %v1043, %v1044
      %v1046 = vsel %vm954, %v348, -inf
      %v1047 = vrot.slane %v1046, 4
      %v1048 = vmax.f32 %v1046, %v1047
      %v1049 = vrot.slane %v1048, 2
      %v1050 = vmax.f32 %v1048, %v1049
      %v1051 = vrot.slane %v1050, 1
      %v1052 = vmax.f32 %v1050, %v1051
      %v1053 = vsel %vm954, %v347, -inf
      %v1054 = vrot.slane %v1053, 4
      %v1055 = vmax.f32 %v1053, %v1054
      %v1056 = vrot.slane %v1055, 2
      %v1057 = vmax.f32 %v1055, %v1056
      %v1058 = vrot.slane %v1057, 1
      %v1059 = vmax.f32 %v1057, %v1058
      %v1060 = vsel %vm954, %v349, -inf
      %v1061 = vrot.slane %v1060, 4
      %v1062 = vmax.f32 %v1060, %v1061
      %v1063 = vrot.slane %v1062, 2
      %v1064 = vmax.f32 %v1062, %v1063
      %v1065 = vrot.slane %v1064, 1
      %v1066 = vmax.f32 %v1064, %v1065
      %v1067 = vsel %vm954, %v357, -inf
      %v1068 = vrot.slane %v1067, 4
      %v1069 = vmax.f32 %v1067, %v1068
      %v1070 = vrot.slane %v1069, 2
      %v1071 = vmax.f32 %v1069, %v1070
      %v1072 = vrot.slane %v1071, 1
      %v1073 = vmax.f32 %v1071, %v1072
      %v1074 = vsel %vm954, %v365, -inf
      %v1075 = vrot.slane %v1074, 4
      %v1076 = vmax.f32 %v1074, %v1075
      %v1077 = vrot.slane %v1076, 2
      %v1078 = vmax.f32 %v1076, %v1077
      %v1079 = vrot.slane %v1078, 1
      %v1080 = vmax.f32 %v1078, %v1079
      %v1081 = vsel %vm954, %v364, -inf
      %v1082 = vrot.slane %v1081, 4
      %v1083 = vmax.f32 %v1081, %v1082
      %v1084 = vrot.slane %v1083, 2
      %v1085 = vmax.f32 %v1083, %v1084
      %v1086 = vrot.slane %v1085, 1
      %v1087 = vmax.f32 %v1085, %v1086
      %v1088 = vsel %vm954, %v366, -inf
      %v1089 = vrot.slane %v1088, 4
      %v1090 = vmax.f32 %v1088, %v1089
      %v1091 = vrot.slane %v1090, 2
      %v1092 = vmax.f32 %v1090, %v1091
      %v1093 = vrot.slane %v1092, 1
      %v1094 = vmax.f32 %v1092, %v1093
      %v1095 = vsel %vm954, %v374, -inf
      %v1096 = vrot.slane %v1095, 4
      %v1097 = vmax.f32 %v1095, %v1096
      %v1098 = vrot.slane %v1097, 2
      %v1099 = vmax.f32 %v1097, %v1098
      %v1100 = vrot.slane %v1099, 1
      %v1101 = vmax.f32 %v1099, %v1100
      %v1102 = vsel %vm954, %v382, -inf
      %v1103 = vrot.slane %v1102, 4
      %v1104 = vmax.f32 %v1102, %v1103
      %v1105 = vrot.slane %v1104, 2
      %v1106 = vmax.f32 %v1104, %v1105
      %v1107 = vrot.slane %v1106, 1
      %v1108 = vmax.f32 %v1106, %v1107
      %v1109 = vsel %vm954, %v381, -inf
      %v1110 = vrot.slane %v1109, 4
      %v1111 = vmax.f32 %v1109, %v1110
      %v1112 = vrot.slane %v1111, 2
      %v1113 = vmax.f32 %v1111, %v1112
      %v1114 = vrot.slane %v1113, 1
      %v1115 = vmax.f32 %v1113, %v1114
      %v1116 = vsel %vm954, %v383, -inf
      %v1117 = vrot.slane %v1116, 4
      %v1118 = vmax.f32 %v1116, %v1117
      %v1119 = vrot.slane %v1118, 2
      %v1120 = vmax.f32 %v1118, %v1119
      %v1121 = vrot.slane %v1120, 1
      %v1122 = vmax.f32 %v1120, %v1121
      %v1123 = vsel %vm954, %v391, -inf
      %v1124 = vrot.slane %v1123, 4
      %v1125 = vmax.f32 %v1123, %v1124
      %v1126 = vrot.slane %v1125, 2
      %v1127 = vmax.f32 %v1125, %v1126
      %v1128 = vrot.slane %v1127, 1
      %v1129 = vmax.f32 %v1127, %v1128
      %v1130 = vsel %vm954, %v399, -inf
      %v1131 = vrot.slane %v1130, 4
      %v1132 = vmax.f32 %v1130, %v1131
      %v1133 = vrot.slane %v1132, 2
      %v1134 = vmax.f32 %v1132, %v1133
      %v1135 = vrot.slane %v1134, 1
      %v1136 = vmax.f32 %v1134, %v1135
      %v1137 = vsel %vm954, %v398, -inf
      %v1138 = vrot.slane %v1137, 4
      %v1139 = vmax.f32 %v1137, %v1138
      %v1140 = vrot.slane %v1139, 2
      %v1141 = vmax.f32 %v1139, %v1140
      %v1142 = vrot.slane %v1141, 1
      %v1143 = vmax.f32 %v1141, %v1142
      %v1144 = vsel %vm954, %v400, -inf
      %v1145 = vrot.slane %v1144, 4
      %v1146 = vmax.f32 %v1144, %v1145
      %v1147 = vrot.slane %v1146, 2
      %v1148 = vmax.f32 %v1146, %v1147
      %v1149 = vrot.slane %v1148, 1
      %v1150 = vmax.f32 %v1148, %v1149
      %v1151 = vsel %vm954, %v408, -inf
      %v1152 = vrot.slane %v1151, 4
      %v1153 = vmax.f32 %v1151, %v1152
      %v1154 = vrot.slane %v1153, 2
      %v1155 = vmax.f32 %v1153, %v1154
      %v1156 = vrot.slane %v1155, 1
      %v1157 = vmax.f32 %v1155, %v1156
      %v1158 = vsel %vm954, %v416, -inf
      %v1159 = vrot.slane %v1158, 4
      %v1160 = vmax.f32 %v1158, %v1159
      %v1161 = vrot.slane %v1160, 2
      %v1162 = vmax.f32 %v1160, %v1161
      %v1163 = vrot.slane %v1162, 1
      %v1164 = vmax.f32 %v1162, %v1163
      %v1165 = vsel %vm954, %v415, -inf
      %v1166 = vrot.slane %v1165, 4
      %v1167 = vmax.f32 %v1165, %v1166
      %v1168 = vrot.slane %v1167, 2
      %v1169 = vmax.f32 %v1167, %v1168
      %v1170 = vrot.slane %v1169, 1
      %v1171 = vmax.f32 %v1169, %v1170
      %v1172 = vsel %vm954, %v417, -inf
      %v1173 = vrot.slane %v1172, 4
      %v1174 = vmax.f32 %v1172, %v1173
      %v1175 = vrot.slane %v1174, 2
      %v1176 = vmax.f32 %v1174, %v1175
      %v1177 = vrot.slane %v1176, 1
      %v1178 = vmax.f32 %v1176, %v1177
      %v1179 = vsel %vm954, %v425, -inf
      %v1180 = vrot.slane %v1179, 4
      %v1181 = vmax.f32 %v1179, %v1180
      %v1182 = vrot.slane %v1181, 2
      %v1183 = vmax.f32 %v1181, %v1182
      %v1184 = vrot.slane %v1183, 1
      %v1185 = vmax.f32 %v1183, %v1184
      %v1186 = vsel %vm954, %v433, -inf
      %v1187 = vrot.slane %v1186, 4
      %v1188 = vmax.f32 %v1186, %v1187
      %v1189 = vrot.slane %v1188, 2
      %v1190 = vmax.f32 %v1188, %v1189
      %v1191 = vrot.slane %v1190, 1
      %v1192 = vmax.f32 %v1190, %v1191
      %v1193 = vsel %vm954, %v432, -inf
      %v1194 = vrot.slane %v1193, 4
      %v1195 = vmax.f32 %v1193, %v1194
      %v1196 = vrot.slane %v1195, 2
      %v1197 = vmax.f32 %v1195, %v1196
      %v1198 = vrot.slane %v1197, 1
      %v1199 = vmax.f32 %v1197, %v1198
      %v1200 = vsel %vm954, %v434, -inf
      %v1201 = vrot.slane %v1200, 4
      %v1202 = vmax.f32 %v1200, %v1201
      %v1203 = vrot.slane %v1202, 2
      %v1204 = vmax.f32 %v1202, %v1203
      %v1205 = vrot.slane %v1204, 1
      %v1206 = vmax.f32 %v1204, %v1205
      %v1207 = vsel %vm954, %v442, -inf
      %v1208 = vrot.slane %v1207, 4
      %v1209 = vmax.f32 %v1207, %v1208
      %v1210 = vrot.slane %v1209, 2
      %v1211 = vmax.f32 %v1209, %v1210
      %v1212 = vrot.slane %v1211, 1
      %v1213 = vmax.f32 %v1211, %v1212
      %v1214 = vsel %vm954, %v450, -inf
      %v1215 = vrot.slane %v1214, 4
      %v1216 = vmax.f32 %v1214, %v1215
      %v1217 = vrot.slane %v1216, 2
      %v1218 = vmax.f32 %v1216, %v1217
      %v1219 = vrot.slane %v1218, 1
      %v1220 = vmax.f32 %v1218, %v1219
      %v1221 = vsel %vm954, %v449, -inf
      %v1222 = vrot.slane %v1221, 4
      %v1223 = vmax.f32 %v1221, %v1222
      %v1224 = vrot.slane %v1223, 2
      %v1225 = vmax.f32 %v1223, %v1224
      %v1226 = vrot.slane %v1225, 1
      %v1227 = vmax.f32 %v1225, %v1226
      %v1228 = vsel %vm954, %v451, -inf
      %v1229 = vrot.slane %v1228, 4
      %v1230 = vmax.f32 %v1228, %v1229
      %v1231 = vrot.slane %v1230, 2
      %v1232 = vmax.f32 %v1230, %v1231
      %v1233 = vrot.slane %v1232, 1
      %v1234 = vmax.f32 %v1232, %v1233
      %v1235 = vsel %vm954, %v459, -inf
      %v1236 = vrot.slane %v1235, 4
      %v1237 = vmax.f32 %v1235, %v1236
      %v1238 = vrot.slane %v1237, 2
      %v1239 = vmax.f32 %v1237, %v1238
      %v1240 = vrot.slane %v1239, 1
      %v1241 = vmax.f32 %v1239, %v1240
      %v1242 = vsel %vm954, %v467, -inf
      %v1243 = vrot.slane %v1242, 4
      %v1244 = vmax.f32 %v1242, %v1243
      %v1245 = vrot.slane %v1244, 2
      %v1246 = vmax.f32 %v1244, %v1245
      %v1247 = vrot.slane %v1246, 1
      %v1248 = vmax.f32 %v1246, %v1247
      %v1249 = vsel %vm954, %v466, -inf
      %v1250 = vrot.slane %v1249, 4
      %v1251 = vmax.f32 %v1249, %v1250
      %v1252 = vrot.slane %v1251, 2
      %v1253 = vmax.f32 %v1251, %v1252
      %v1254 = vrot.slane %v1253, 1
      %v1255 = vmax.f32 %v1253, %v1254
      %v1256 = vsel %vm954, %v468, -inf
      %v1257 = vrot.slane %v1256, 4
      %v1258 = vmax.f32 %v1256, %v1257
      %v1259 = vrot.slane %v1258, 2
      %v1260 = vmax.f32 %v1258, %v1259
      %v1261 = vrot.slane %v1260, 1
      %v1262 = vmax.f32 %v1260, %v1261
      %v1263 = vsel %vm954, %v476, -inf
      %v1264 = vrot.slane %v1263, 4
      %v1265 = vmax.f32 %v1263, %v1264
      %v1266 = vrot.slane %v1265, 2
      %v1267 = vmax.f32 %v1265, %v1266
      %v1268 = vrot.slane %v1267, 1
      %v1269 = vmax.f32 %v1267, %v1268
      %v1270 = vsel %vm954, %v484, -inf
      %v1271 = vrot.slane %v1270, 4
      %v1272 = vmax.f32 %v1270, %v1271
      %v1273 = vrot.slane %v1272, 2
      %v1274 = vmax.f32 %v1272, %v1273
      %v1275 = vrot.slane %v1274, 1
      %v1276 = vmax.f32 %v1274, %v1275
      %v1277 = vsel %vm954, %v483, -inf
      %v1278 = vrot.slane %v1277, 4
      %v1279 = vmax.f32 %v1277, %v1278
      %v1280 = vrot.slane %v1279, 2
      %v1281 = vmax.f32 %v1279, %v1280
      %v1282 = vrot.slane %v1281, 1
      %v1283 = vmax.f32 %v1281, %v1282
      %v1284 = vsel %vm954, %v485, -inf
      %v1285 = vrot.slane %v1284, 4
      %v1286 = vmax.f32 %v1284, %v1285
      %v1287 = vrot.slane %v1286, 2
      %v1288 = vmax.f32 %v1286, %v1287
      %v1289 = vrot.slane %v1288, 1
      %v1290 = vmax.f32 %v1288, %v1289
      %v1291 = vsel %vm954, %v493, -inf
      %v1292 = vrot.slane %v1291, 4
      %v1293 = vmax.f32 %v1291, %v1292
      %v1294 = vrot.slane %v1293, 2
      %v1295 = vmax.f32 %v1293, %v1294
      %v1296 = vrot.slane %v1295, 1
      %v1297 = vmax.f32 %v1295, %v1296
      %v1298 = vsel %vm954, %v501, -inf
      %v1299 = vrot.slane %v1298, 4
      %v1300 = vmax.f32 %v1298, %v1299
      %v1301 = vrot.slane %v1300, 2
      %v1302 = vmax.f32 %v1300, %v1301
      %v1303 = vrot.slane %v1302, 1
      %v1304 = vmax.f32 %v1302, %v1303
      %v1305 = vsel %vm954, %v500, -inf
      %v1306 = vrot.slane %v1305, 4
      %v1307 = vmax.f32 %v1305, %v1306
      %v1308 = vrot.slane %v1307, 2
      %v1309 = vmax.f32 %v1307, %v1308
      %v1310 = vrot.slane %v1309, 1
      %v1311 = vmax.f32 %v1309, %v1310
      %v1312 = vsel %vm954, %v502, -inf
      %v1313 = vrot.slane %v1312, 4
      %v1314 = vmax.f32 %v1312, %v1313
      %v1315 = vrot.slane %v1314, 2
      %v1316 = vmax.f32 %v1314, %v1315
      %v1317 = vrot.slane %v1316, 1
      %v1318 = vmax.f32 %v1316, %v1317
      %v1319 = vsel %vm954, %v510, -inf
      %v1320 = vrot.slane %v1319, 4
      %v1321 = vmax.f32 %v1319, %v1320
      %v1322 = vrot.slane %v1321, 2
      %v1323 = vmax.f32 %v1321, %v1322
      %v1324 = vrot.slane %v1323, 1
      %v1325 = vmax.f32 %v1323, %v1324
      %v1326 = vsel %vm954, %v518, -inf
      %v1327 = vrot.slane %v1326, 4
      %v1328 = vmax.f32 %v1326, %v1327
      %v1329 = vrot.slane %v1328, 2
      %v1330 = vmax.f32 %v1328, %v1329
      %v1331 = vrot.slane %v1330, 1
      %v1332 = vmax.f32 %v1330, %v1331
      %v1333 = vsel %vm954, %v517, -inf
      %v1334 = vrot.slane %v1333, 4
      %v1335 = vmax.f32 %v1333, %v1334
      %v1336 = vrot.slane %v1335, 2
      %v1337 = vmax.f32 %v1335, %v1336
      %v1338 = vrot.slane %v1337, 1
      %v1339 = vmax.f32 %v1337, %v1338
      %v1340 = vsel %vm954, %v519, -inf
      %v1341 = vrot.slane %v1340, 4
      %v1342 = vmax.f32 %v1340, %v1341
      %v1343 = vrot.slane %v1342, 2
      %v1344 = vmax.f32 %v1342, %v1343
      %v1345 = vrot.slane %v1344, 1
      %v1346 = vmax.f32 %v1344, %v1345
      %v1347 = vsel %vm954, %v527, -inf
      %v1348 = vrot.slane %v1347, 4
      %v1349 = vmax.f32 %v1347, %v1348
      %v1350 = vrot.slane %v1349, 2
      %v1351 = vmax.f32 %v1349, %v1350
      %v1352 = vrot.slane %v1351, 1
      %v1353 = vmax.f32 %v1351, %v1352
      %v1354 = vsel %vm954, %v535, -inf
      %v1355 = vrot.slane %v1354, 4
      %v1356 = vmax.f32 %v1354, %v1355
      %v1357 = vrot.slane %v1356, 2
      %v1358 = vmax.f32 %v1356, %v1357
      %v1359 = vrot.slane %v1358, 1
      %v1360 = vmax.f32 %v1358, %v1359
      %v1361 = vsel %vm954, %v534, -inf
      %v1362 = vrot.slane %v1361, 4
      %v1363 = vmax.f32 %v1361, %v1362
      %v1364 = vrot.slane %v1363, 2
      %v1365 = vmax.f32 %v1363, %v1364
      %v1366 = vrot.slane %v1365, 1
      %v1367 = vmax.f32 %v1365, %v1366
      %v1368 = vsel %vm954, %v536, -inf
      %v1369 = vrot.slane %v1368, 4
      %v1370 = vmax.f32 %v1368, %v1369
      %v1371 = vrot.slane %v1370, 2
      %v1372 = vmax.f32 %v1370, %v1371
      %v1373 = vrot.slane %v1372, 1
      %v1374 = vmax.f32 %v1372, %v1373
      %v1375 = vsel %vm954, %v544, -inf
      %v1376 = vrot.slane %v1375, 4
      %v1377 = vmax.f32 %v1375, %v1376
      %v1378 = vrot.slane %v1377, 2
      %v1379 = vmax.f32 %v1377, %v1378
      %v1380 = vrot.slane %v1379, 1
      %v1381 = vmax.f32 %v1379, %v1380
      %v1382 = vsel %vm954, %v552, -inf
      %v1383 = vrot.slane %v1382, 4
      %v1384 = vmax.f32 %v1382, %v1383
      %v1385 = vrot.slane %v1384, 2
      %v1386 = vmax.f32 %v1384, %v1385
      %v1387 = vrot.slane %v1386, 1
      %v1388 = vmax.f32 %v1386, %v1387
      %v1389 = vsel %vm954, %v551, -inf
      %v1390 = vrot.slane %v1389, 4
      %v1391 = vmax.f32 %v1389, %v1390
      %v1392 = vrot.slane %v1391, 2
      %v1393 = vmax.f32 %v1391, %v1392
      %v1394 = vrot.slane %v1393, 1
      %v1395 = vmax.f32 %v1393, %v1394
      %v1396 = vsel %vm954, %v553, -inf
      %v1397 = vrot.slane %v1396, 4
      %v1398 = vmax.f32 %v1396, %v1397
      %v1399 = vrot.slane %v1398, 2
      %v1400 = vmax.f32 %v1398, %v1399
      %v1401 = vrot.slane %v1400, 1
      %v1402 = vmax.f32 %v1400, %v1401
      %v1403 = vsel %vm954, %v561, -inf
      %v1404 = vrot.slane %v1403, 4
      %v1405 = vmax.f32 %v1403, %v1404
      %v1406 = vrot.slane %v1405, 2
      %v1407 = vmax.f32 %v1405, %v1406
      %v1408 = vrot.slane %v1407, 1
      %v1409 = vmax.f32 %v1407, %v1408
      %v1410 = vsel %vm954, %v569, -inf
      %v1411 = vrot.slane %v1410, 4
      %v1412 = vmax.f32 %v1410, %v1411
      %v1413 = vrot.slane %v1412, 2
      %v1414 = vmax.f32 %v1412, %v1413
      %v1415 = vrot.slane %v1414, 1
      %v1416 = vmax.f32 %v1414, %v1415
      %v1417 = vsel %vm954, %v568, -inf
      %v1418 = vrot.slane %v1417, 4
      %v1419 = vmax.f32 %v1417, %v1418
      %v1420 = vrot.slane %v1419, 2
      %v1421 = vmax.f32 %v1419, %v1420
      %v1422 = vrot.slane %v1421, 1
      %v1423 = vmax.f32 %v1421, %v1422
      %v1424 = vsel %vm954, %v570, -inf
      %v1425 = vrot.slane %v1424, 4
      %v1426 = vmax.f32 %v1424, %v1425
      %v1427 = vrot.slane %v1426, 2
      %v1428 = vmax.f32 %v1426, %v1427
      %v1429 = vrot.slane %v1428, 1
      %v1430 = vmax.f32 %v1428, %v1429
      %v1431 = vsel %vm954, %v578, -inf
      %v1432 = vrot.slane %v1431, 4
      %v1433 = vmax.f32 %v1431, %v1432
      %v1434 = vrot.slane %v1433, 2
      %v1435 = vmax.f32 %v1433, %v1434
      %v1436 = vrot.slane %v1435, 1
      %v1437 = vmax.f32 %v1435, %v1436
      %v1438 = vsel %vm954, %v586, -inf
      %v1439 = vrot.slane %v1438, 4
      %v1440 = vmax.f32 %v1438, %v1439
      %v1441 = vrot.slane %v1440, 2
      %v1442 = vmax.f32 %v1440, %v1441
      %v1443 = vrot.slane %v1442, 1
      %v1444 = vmax.f32 %v1442, %v1443
      %v1445 = vsel %vm954, %v585, -inf
      %v1446 = vrot.slane %v1445, 4
      %v1447 = vmax.f32 %v1445, %v1446
      %v1448 = vrot.slane %v1447, 2
      %v1449 = vmax.f32 %v1447, %v1448
      %v1450 = vrot.slane %v1449, 1
      %v1451 = vmax.f32 %v1449, %v1450
      %v1452 = vsel %vm954, %v587, -inf
      %v1453 = vrot.slane %v1452, 4
      %v1454 = vmax.f32 %v1452, %v1453
      %v1455 = vrot.slane %v1454, 2
      %v1456 = vmax.f32 %v1454, %v1455
      %v1457 = vrot.slane %v1456, 1
      %v1458 = vmax.f32 %v1456, %v1457
      %v1459 = vsel %vm954, %v595, -inf
      %v1460 = vrot.slane %v1459, 4
      %v1461 = vmax.f32 %v1459, %v1460
      %v1462 = vrot.slane %v1461, 2
      %v1463 = vmax.f32 %v1461, %v1462
      %v1464 = vrot.slane %v1463, 1
      %v1465 = vmax.f32 %v1463, %v1464
      %v1466 = vsel %vm954, %v603, -inf
      %v1467 = vrot.slane %v1466, 4
      %v1468 = vmax.f32 %v1466, %v1467
      %v1469 = vrot.slane %v1468, 2
      %v1470 = vmax.f32 %v1468, %v1469
      %v1471 = vrot.slane %v1470, 1
      %v1472 = vmax.f32 %v1470, %v1471
      %v1473 = vsel %vm954, %v602, -inf
      %v1474 = vrot.slane %v1473, 4
      %v1475 = vmax.f32 %v1473, %v1474
      %v1476 = vrot.slane %v1475, 2
      %v1477 = vmax.f32 %v1475, %v1476
      %v1478 = vrot.slane %v1477, 1
      %v1479 = vmax.f32 %v1477, %v1478
      %v1480 = vsel %vm954, %v604, -inf
      %v1481 = vrot.slane %v1480, 4
      %v1482 = vmax.f32 %v1480, %v1481
      %v1483 = vrot.slane %v1482, 2
      %v1484 = vmax.f32 %v1482, %v1483
      %v1485 = vrot.slane %v1484, 1
      %v1486 = vmax.f32 %v1484, %v1485
      %v1487 = vsel %vm954, %v612, -inf
      %v1488 = vrot.slane %v1487, 4
      %v1489 = vmax.f32 %v1487, %v1488
      %v1490 = vrot.slane %v1489, 2
      %v1491 = vmax.f32 %v1489, %v1490
      %v1492 = vrot.slane %v1491, 1
      %v1493 = vmax.f32 %v1491, %v1492
      %v1494 = vsel %vm954, %v620, -inf
      %v1495 = vrot.slane %v1494, 4
      %v1496 = vmax.f32 %v1494, %v1495
      %v1497 = vrot.slane %v1496, 2
      %v1498 = vmax.f32 %v1496, %v1497
      %v1499 = vrot.slane %v1498, 1
      %v1500 = vmax.f32 %v1498, %v1499
      %v1501 = vsel %vm954, %v619, -inf
      %v1502 = vrot.slane %v1501, 4
      %v1503 = vmax.f32 %v1501, %v1502
      %v1504 = vrot.slane %v1503, 2
      %v1505 = vmax.f32 %v1503, %v1504
      %v1506 = vrot.slane %v1505, 1
      %v1507 = vmax.f32 %v1505, %v1506
      %v1508 = vsel %vm954, %v621, -inf
      %v1509 = vrot.slane %v1508, 4
      %v1510 = vmax.f32 %v1508, %v1509
      %v1511 = vrot.slane %v1510, 2
      %v1512 = vmax.f32 %v1510, %v1511
      %v1513 = vrot.slane %v1512, 1
      %v1514 = vmax.f32 %v1512, %v1513
      %v1515 = vsel %vm954, %v629, -inf
      %v1516 = vrot.slane %v1515, 4
      %v1517 = vmax.f32 %v1515, %v1516
      %v1518 = vrot.slane %v1517, 2
      %v1519 = vmax.f32 %v1517, %v1518
      %v1520 = vrot.slane %v1519, 1
      %v1521 = vmax.f32 %v1519, %v1520
      %v1522 = vsel %vm954, %v637, -inf
      %v1523 = vrot.slane %v1522, 4
      %v1524 = vmax.f32 %v1522, %v1523
      %v1525 = vrot.slane %v1524, 2
      %v1526 = vmax.f32 %v1524, %v1525
      %v1527 = vrot.slane %v1526, 1
      %v1528 = vmax.f32 %v1526, %v1527
      %v1529 = vsel %vm954, %v636, -inf
      %v1530 = vrot.slane %v1529, 4
      %v1531 = vmax.f32 %v1529, %v1530
      %v1532 = vrot.slane %v1531, 2
      %v1533 = vmax.f32 %v1531, %v1532
      %v1534 = vrot.slane %v1533, 1
      %v1535 = vmax.f32 %v1533, %v1534
      %v1536 = vsel %vm954, %v638, -inf
      %v1537 = vrot.slane %v1536, 4
      %v1538 = vmax.f32 %v1536, %v1537
      %v1539 = vrot.slane %v1538, 2
      %v1540 = vmax.f32 %v1538, %v1539
      %v1541 = vrot.slane %v1540, 1
      %v1542 = vmax.f32 %v1540, %v1541
      %v1543 = vsel %vm954, %v646, -inf
      %v1544 = vrot.slane %v1543, 4
      %v1545 = vmax.f32 %v1543, %v1544
      %v1546 = vrot.slane %v1545, 2
      %v1547 = vmax.f32 %v1545, %v1546
      %v1548 = vrot.slane %v1547, 1
      %v1549 = vmax.f32 %v1547, %v1548
      %v1550 = vsel %vm954, %v654, -inf
      %v1551 = vrot.slane %v1550, 4
      %v1552 = vmax.f32 %v1550, %v1551
      %v1553 = vrot.slane %v1552, 2
      %v1554 = vmax.f32 %v1552, %v1553
      %v1555 = vrot.slane %v1554, 1
      %v1556 = vmax.f32 %v1554, %v1555
      %v1557 = vsel %vm954, %v653, -inf
      %v1558 = vrot.slane %v1557, 4
      %v1559 = vmax.f32 %v1557, %v1558
      %v1560 = vrot.slane %v1559, 2
      %v1561 = vmax.f32 %v1559, %v1560
      %v1562 = vrot.slane %v1561, 1
      %v1563 = vmax.f32 %v1561, %v1562
      %v1564 = vsel %vm954, %v655, -inf
      %v1565 = vrot.slane %v1564, 4
      %v1566 = vmax.f32 %v1564, %v1565
      %v1567 = vrot.slane %v1566, 2
      %v1568 = vmax.f32 %v1566, %v1567
      %v1569 = vrot.slane %v1568, 1
      %v1570 = vmax.f32 %v1568, %v1569
      %v1571 = vsel %vm954, %v663, -inf
      %v1572 = vrot.slane %v1571, 4
      %v1573 = vmax.f32 %v1571, %v1572
      %v1574 = vrot.slane %v1573, 2
      %v1575 = vmax.f32 %v1573, %v1574
      %v1576 = vrot.slane %v1575, 1
      %v1577 = vmax.f32 %v1575, %v1576
      %v1578 = vsel %vm954, %v671, -inf
      %v1579 = vrot.slane %v1578, 4
      %v1580 = vmax.f32 %v1578, %v1579
      %v1581 = vrot.slane %v1580, 2
      %v1582 = vmax.f32 %v1580, %v1581
      %v1583 = vrot.slane %v1582, 1
      %v1584 = vmax.f32 %v1582, %v1583
      %v1585 = vsel %vm954, %v670, -inf
      %v1586 = vrot.slane %v1585, 4
      %v1587 = vmax.f32 %v1585, %v1586
      %v1588 = vrot.slane %v1587, 2
      %v1589 = vmax.f32 %v1587, %v1588
      %v1590 = vrot.slane %v1589, 1
      %v1591 = vmax.f32 %v1589, %v1590
      %v1592 = vsel %vm954, %v672, -inf
      %v1593 = vrot.slane %v1592, 4
      %v1594 = vmax.f32 %v1592, %v1593
      %v1595 = vrot.slane %v1594, 2
      %v1596 = vmax.f32 %v1594, %v1595
      %v1597 = vrot.slane %v1596, 1
      %v1598 = vmax.f32 %v1596, %v1597
      %v1599 = vsel %vm954, %v680, -inf
      %v1600 = vrot.slane %v1599, 4
      %v1601 = vmax.f32 %v1599, %v1600
      %v1602 = vrot.slane %v1601, 2
      %v1603 = vmax.f32 %v1601, %v1602
      %v1604 = vrot.slane %v1603, 1
      %v1605 = vmax.f32 %v1603, %v1604
      %v1606 = vsel %vm954, %v688, -inf
      %v1607 = vrot.slane %v1606, 4
      %v1608 = vmax.f32 %v1606, %v1607
      %v1609 = vrot.slane %v1608, 2
      %v1610 = vmax.f32 %v1608, %v1609
      %v1611 = vrot.slane %v1610, 1
      %v1612 = vmax.f32 %v1610, %v1611
      %v1613 = vsel %vm954, %v687, -inf
      %v1614 = vrot.slane %v1613, 4
      %v1615 = vmax.f32 %v1613, %v1614
      %v1616 = vrot.slane %v1615, 2
      %v1617 = vmax.f32 %v1615, %v1616
      %v1618 = vrot.slane %v1617, 1
      %v1619 = vmax.f32 %v1617, %v1618
      %v1620 = vsel %vm954, %v689, -inf
      %v1621 = vrot.slane %v1620, 4
      %v1622 = vmax.f32 %v1620, %v1621
      %v1623 = vrot.slane %v1622, 2
      %v1624 = vmax.f32 %v1622, %v1623
      %v1625 = vrot.slane %v1624, 1
      %v1626 = vmax.f32 %v1624, %v1625
      %v1627 = vsel %vm954, %v697, -inf
      %v1628 = vrot.slane %v1627, 4
      %v1629 = vmax.f32 %v1627, %v1628
      %v1630 = vrot.slane %v1629, 2
      %v1631 = vmax.f32 %v1629, %v1630
      %v1632 = vrot.slane %v1631, 1
      %v1633 = vmax.f32 %v1631, %v1632
      %v1634 = vsel %vm954, %v705, -inf
      %v1635 = vrot.slane %v1634, 4
      %v1636 = vmax.f32 %v1634, %v1635
      %v1637 = vrot.slane %v1636, 2
      %v1638 = vmax.f32 %v1636, %v1637
      %v1639 = vrot.slane %v1638, 1
      %v1640 = vmax.f32 %v1638, %v1639
      %v1641 = vsel %vm954, %v704, -inf
      %v1642 = vrot.slane %v1641, 4
      %v1643 = vmax.f32 %v1641, %v1642
      %v1644 = vrot.slane %v1643, 2
      %v1645 = vmax.f32 %v1643, %v1644
      %v1646 = vrot.slane %v1645, 1
      %v1647 = vmax.f32 %v1645, %v1646
      %v1648 = vsel %vm954, %v706, -inf
      %v1649 = vrot.slane %v1648, 4
      %v1650 = vmax.f32 %v1648, %v1649
      %v1651 = vrot.slane %v1650, 2
      %v1652 = vmax.f32 %v1650, %v1651
      %v1653 = vrot.slane %v1652, 1
      %v1654 = vmax.f32 %v1652, %v1653
      %v1655 = vsel %vm954, %v714, -inf
      %v1656 = vrot.slane %v1655, 4
      %v1657 = vmax.f32 %v1655, %v1656
      %v1658 = vrot.slane %v1657, 2
      %v1659 = vmax.f32 %v1657, %v1658
      %v1660 = vrot.slane %v1659, 1
      %v1661 = vmax.f32 %v1659, %v1660
      %v1662 = vsel %vm954, %v722, -inf
      %v1663 = vrot.slane %v1662, 4
      %v1664 = vmax.f32 %v1662, %v1663
      %v1665 = vrot.slane %v1664, 2
      %v1666 = vmax.f32 %v1664, %v1665
      %v1667 = vrot.slane %v1666, 1
      %v1668 = vmax.f32 %v1666, %v1667
      %v1669 = vsel %vm954, %v721, -inf
      %v1670 = vrot.slane %v1669, 4
      %v1671 = vmax.f32 %v1669, %v1670
      %v1672 = vrot.slane %v1671, 2
      %v1673 = vmax.f32 %v1671, %v1672
      %v1674 = vrot.slane %v1673, 1
      %v1675 = vmax.f32 %v1673, %v1674
      %v1676 = vsel %vm954, %v723, -inf
      %v1677 = vrot.slane %v1676, 4
      %v1678 = vmax.f32 %v1676, %v1677
      %v1679 = vrot.slane %v1678, 2
      %v1680 = vmax.f32 %v1678, %v1679
      %v1681 = vrot.slane %v1680, 1
      %v1682 = vmax.f32 %v1680, %v1681
      %v1683 = vsel %vm954, %v731, -inf
      %v1684 = vrot.slane %v1683, 4
      %v1685 = vmax.f32 %v1683, %v1684
      %v1686 = vrot.slane %v1685, 2
      %v1687 = vmax.f32 %v1685, %v1686
      %v1688 = vrot.slane %v1687, 1
      %v1689 = vmax.f32 %v1687, %v1688
      %v1690 = vsel %vm954, %v739, -inf
      %v1691 = vrot.slane %v1690, 4
      %v1692 = vmax.f32 %v1690, %v1691
      %v1693 = vrot.slane %v1692, 2
      %v1694 = vmax.f32 %v1692, %v1693
      %v1695 = vrot.slane %v1694, 1
      %v1696 = vmax.f32 %v1694, %v1695
      %v1697 = vsel %vm954, %v738, -inf
      %v1698 = vrot.slane %v1697, 4
      %v1699 = vmax.f32 %v1697, %v1698
      %v1700 = vrot.slane %v1699, 2
      %v1701 = vmax.f32 %v1699, %v1700
      %v1702 = vrot.slane %v1701, 1
      %v1703 = vmax.f32 %v1701, %v1702
      %v1704 = vsel %vm954, %v740, -inf
      %v1705 = vrot.slane %v1704, 4
      %v1706 = vmax.f32 %v1704, %v1705
      %v1707 = vrot.slane %v1706, 2
      %v1708 = vmax.f32 %v1706, %v1707
      %v1709 = vrot.slane %v1708, 1
      %v1710 = vmax.f32 %v1708, %v1709
      %v1711 = vsel %vm954, %v748, -inf
      %v1712 = vrot.slane %v1711, 4
      %v1713 = vmax.f32 %v1711, %v1712
      %v1714 = vrot.slane %v1713, 2
      %v1715 = vmax.f32 %v1713, %v1714
      %v1716 = vrot.slane %v1715, 1
      %v1717 = vmax.f32 %v1715, %v1716
      %v1718 = vsel %vm954, %v756, -inf
      %v1719 = vrot.slane %v1718, 4
      %v1720 = vmax.f32 %v1718, %v1719
      %v1721 = vrot.slane %v1720, 2
      %v1722 = vmax.f32 %v1720, %v1721
      %v1723 = vrot.slane %v1722, 1
      %v1724 = vmax.f32 %v1722, %v1723
      %v1725 = vsel %vm954, %v755, -inf
      %v1726 = vrot.slane %v1725, 4
      %v1727 = vmax.f32 %v1725, %v1726
      %v1728 = vrot.slane %v1727, 2
      %v1729 = vmax.f32 %v1727, %v1728
      %v1730 = vrot.slane %v1729, 1
      %v1731 = vmax.f32 %v1729, %v1730
      %v1732 = vsel %vm954, %v757, -inf
      %v1733 = vrot.slane %v1732, 4
      %v1734 = vmax.f32 %v1732, %v1733
      %v1735 = vrot.slane %v1734, 2
      %v1736 = vmax.f32 %v1734, %v1735
      %v1737 = vrot.slane %v1736, 1
      %v1738 = vmax.f32 %v1736, %v1737
      %v1739 = vsel %vm954, %v765, -inf
      %v1740 = vrot.slane %v1739, 4
      %v1741 = vmax.f32 %v1739, %v1740
      %v1742 = vrot.slane %v1741, 2
      %v1743 = vmax.f32 %v1741, %v1742
      %v1744 = vrot.slane %v1743, 1
      %v1745 = vmax.f32 %v1743, %v1744
      %v1746 = vsel %vm954, %v773, -inf
      %v1747 = vrot.slane %v1746, 4
      %v1748 = vmax.f32 %v1746, %v1747
      %v1749 = vrot.slane %v1748, 2
      %v1750 = vmax.f32 %v1748, %v1749
      %v1751 = vrot.slane %v1750, 1
      %v1752 = vmax.f32 %v1750, %v1751
      %v1753 = vsel %vm954, %v772, -inf
      %v1754 = vrot.slane %v1753, 4
      %v1755 = vmax.f32 %v1753, %v1754
      %v1756 = vrot.slane %v1755, 2
      %v1757 = vmax.f32 %v1755, %v1756
      %v1758 = vrot.slane %v1757, 1
      %v1759 = vmax.f32 %v1757, %v1758
      %v1760 = vsel %vm954, %v774, -inf
      %v1761 = vrot.slane %v1760, 4
      %v1762 = vmax.f32 %v1760, %v1761
      %v1763 = vrot.slane %v1762, 2
      %v1764 = vmax.f32 %v1762, %v1763
      %v1765 = vrot.slane %v1764, 1
      %v1766 = vmax.f32 %v1764, %v1765
      %v1767 = vsel %vm954, %v782, -inf
      %v1768 = vrot.slane %v1767, 4
      %v1769 = vmax.f32 %v1767, %v1768
      %v1770 = vrot.slane %v1769, 2
      %v1771 = vmax.f32 %v1769, %v1770
      %v1772 = vrot.slane %v1771, 1
      %v1773 = vmax.f32 %v1771, %v1772
      %v1774 = vsel %vm954, %v790, -inf
      %v1775 = vrot.slane %v1774, 4
      %v1776 = vmax.f32 %v1774, %v1775
      %v1777 = vrot.slane %v1776, 2
      %v1778 = vmax.f32 %v1776, %v1777
      %v1779 = vrot.slane %v1778, 1
      %v1780 = vmax.f32 %v1778, %v1779
      %v1781 = vsel %vm954, %v789, -inf
      %v1782 = vrot.slane %v1781, 4
      %v1783 = vmax.f32 %v1781, %v1782
      %v1784 = vrot.slane %v1783, 2
      %v1785 = vmax.f32 %v1783, %v1784
      %v1786 = vrot.slane %v1785, 1
      %v1787 = vmax.f32 %v1785, %v1786
      %v1788 = vsel %vm954, %v791, -inf
      %v1789 = vrot.slane %v1788, 4
      %v1790 = vmax.f32 %v1788, %v1789
      %v1791 = vrot.slane %v1790, 2
      %v1792 = vmax.f32 %v1790, %v1791
      %v1793 = vrot.slane %v1792, 1
      %v1794 = vmax.f32 %v1792, %v1793
      %v1795 = vsel %vm954, %v799, -inf
      %v1796 = vrot.slane %v1795, 4
      %v1797 = vmax.f32 %v1795, %v1796
      %v1798 = vrot.slane %v1797, 2
      %v1799 = vmax.f32 %v1797, %v1798
      %v1800 = vrot.slane %v1799, 1
      %v1801 = vmax.f32 %v1799, %v1800
      %v1802 = vsel %vm954, %v807, -inf
      %v1803 = vrot.slane %v1802, 4
      %v1804 = vmax.f32 %v1802, %v1803
      %v1805 = vrot.slane %v1804, 2
      %v1806 = vmax.f32 %v1804, %v1805
      %v1807 = vrot.slane %v1806, 1
      %v1808 = vmax.f32 %v1806, %v1807
      %v1809 = vsel %vm954, %v806, -inf
      %v1810 = vrot.slane %v1809, 4
      %v1811 = vmax.f32 %v1809, %v1810
      %v1812 = vrot.slane %v1811, 2
      %v1813 = vmax.f32 %v1811, %v1812
      %v1814 = vrot.slane %v1813, 1
      %v1815 = vmax.f32 %v1813, %v1814
      %v1816 = vsel %vm954, %v808, -inf
      %v1817 = vrot.slane %v1816, 4
      %v1818 = vmax.f32 %v1816, %v1817
      %v1819 = vrot.slane %v1818, 2
      %v1820 = vmax.f32 %v1818, %v1819
      %v1821 = vrot.slane %v1820, 1
      %v1822 = vmax.f32 %v1820, %v1821
      %v1823 = vsel %vm954, %v816, -inf
      %v1824 = vrot.slane %v1823, 4
      %v1825 = vmax.f32 %v1823, %v1824
      %v1826 = vrot.slane %v1825, 2
      %v1827 = vmax.f32 %v1825, %v1826
      %v1828 = vrot.slane %v1827, 1
      %v1829 = vmax.f32 %v1827, %v1828
      %v1830 = vsel %vm954, %v824, -inf
      %v1831 = vrot.slane %v1830, 4
      %v1832 = vmax.f32 %v1830, %v1831
      %v1833 = vrot.slane %v1832, 2
      %v1834 = vmax.f32 %v1832, %v1833
      %v1835 = vrot.slane %v1834, 1
      %v1836 = vmax.f32 %v1834, %v1835
      %v1837 = vsel %vm954, %v823, -inf
      %v1838 = vrot.slane %v1837, 4
      %v1839 = vmax.f32 %v1837, %v1838
      %v1840 = vrot.slane %v1839, 2
      %v1841 = vmax.f32 %v1839, %v1840
      %v1842 = vrot.slane %v1841, 1
      %v1843 = vmax.f32 %v1841, %v1842
      %v1844 = vsel %vm954, %v825, -inf
      %v1845 = vrot.slane %v1844, 4
      %v1846 = vmax.f32 %v1844, %v1845
      %v1847 = vrot.slane %v1846, 2
      %v1848 = vmax.f32 %v1846, %v1847
      %v1849 = vrot.slane %v1848, 1
      %v1850 = vmax.f32 %v1848, %v1849
      %s1851 = ssub.s32 %s216, 2
      %p1852 = scmp.gt.s32.totalorder %s1851, 0
      %s1853 = scalar_select %p1852, %s1851, 0
      %s1854 = scalar_lea.vmem %s196, %s1853
      %v1855 = vld [vmem:[%s1854] sm:$0x3]
      %v1856 = vsel %vm954, %v1855, -inf
      %v1857 = vrot.slane %v1856, 4
      %v1858 = vmax.f32 %v1856, %v1857
      %v1859 = vrot.slane %v1858, 2
      %v1860 = vmax.f32 %v1858, %v1859
      %v1861 = vrot.slane %v1860, 1
      %v1862 = vmax.f32 %v1860, %v1861
      %p1863 = scmp.eq.s32.totalorder %s20, 0
      %s1864 = scalar_select %p1863, 1, 0
      %v1865 = vstv %s1864
      %vm1866 = vcmp.eq.s32.totalorder %v1865, 1
      %v1867 = vsel %vm1866, 0.0, %v1862
      %s1868 = sadd.s32 %s216, 256
      %p1869 = scmp.lt.s32.totalorder %s1868, 510
      %s1870 = scalar_select %p1869, %s1868, 510
      %s1871 = scalar_lea.vmem %s196, %s1870
      %v1872 = vld [vmem:[%s1871] sm:$0x3]
      %v1873 = vsel %vm954, %v1872, -inf
      %v1874 = vrot.slane %v1873, 4
      %v1875 = vmax.f32 %v1873, %v1874
      %v1876 = vrot.slane %v1875, 2
      %v1877 = vmax.f32 %v1875, %v1876
      %v1878 = vrot.slane %v1877, 1
      %v1879 = vmax.f32 %v1877, %v1878
      %p1880 = scmp.eq.s32.totalorder %s20, 1
      %s1881 = scalar_select %p1880, 1, 0
      %v1882 = vstv %s1881
      %vm1883 = vcmp.eq.s32.totalorder %v1882, 1
      %v1884 = vsel %vm1883, 0.0, %v1879
      %v1885 = vlaneseq
      %v1886 = vshrl.u32 %v1885, 7
      %v1887 = vadd.s32 %v1886, 8
      %v1888 = vadd.s32 %v1886, 16
      %v1889 = vadd.s32 %v1886, 24
      %v1890 = vadd.s32 %v1886, 32
      %v1891 = vadd.s32 %v1886, 40
      %v1892 = vadd.s32 %v1886, 48
      %v1893 = vadd.s32 %v1886, 56
      %v1894 = vadd.s32 %v1886, 64
      %v1895 = vadd.s32 %v1886, 72
      %v1896 = vadd.s32 %v1886, 80
      %v1897 = vadd.s32 %v1886, 88
      %v1898 = vadd.s32 %v1886, 96
      %v1899 = vadd.s32 %v1886, 104
      %v1900 = vadd.s32 %v1886, 112
      %v1901 = vadd.s32 %v1886, 120
      %vm1902 = vcmp.eq.s32.totalorder %v1886, 0
      %vm1903 = vcmp.eq.s32.totalorder %v1887, 0
      %vm1904 = vcmp.eq.s32.totalorder %v1888, 0
      %vm1905 = vcmp.eq.s32.totalorder %v1889, 0
      %vm1906 = vcmp.eq.s32.totalorder %v1890, 0
      %vm1907 = vcmp.eq.s32.totalorder %v1891, 0
      %vm1908 = vcmp.eq.s32.totalorder %v1892, 0
      %vm1909 = vcmp.eq.s32.totalorder %v1893, 0
      %vm1910 = vcmp.eq.s32.totalorder %v1894, 0
      %vm1911 = vcmp.eq.s32.totalorder %v1895, 0
      %vm1912 = vcmp.eq.s32.totalorder %v1896, 0
      %vm1913 = vcmp.eq.s32.totalorder %v1897, 0
      %vm1914 = vcmp.eq.s32.totalorder %v1898, 0
      %vm1915 = vcmp.eq.s32.totalorder %v1899, 0
      %vm1916 = vcmp.eq.s32.totalorder %v1900, 0
      %vm1917 = vcmp.eq.s32.totalorder %v1901, 0
      %vm2046 = vcmask 1041409
      %v2047 = vsel %vm2046, %v968, %v961
      %vm2048 = vcmask 1042434
      %v2049 = vsel %vm2048, %v975, %v2047
      %vm2050 = vcmask 1043459
      %v2051 = vsel %vm2050, %v982, %v2049
      %vm2052 = vcmask 1044484
      %v2053 = vsel %vm2052, %v989, %v2051
      %vm2054 = vcmask 1045509
      %v2055 = vsel %vm2054, %v996, %v2053
      %vm2056 = vcmask 1046534
      %v2057 = vsel %vm2056, %v1003, %v2055
      %vm2058 = vcmask 1047559
      %v2059 = vsel %vm2058, %v1010, %v2057
      %v2060 = vsel %vm2046, %v1024, %v1017
      %v2061 = vsel %vm2048, %v1031, %v2060
      %v2062 = vsel %vm2050, %v1038, %v2061
      %v2063 = vsel %vm2052, %v1045, %v2062
      %v2064 = vsel %vm2054, %v1052, %v2063
      %v2065 = vsel %vm2056, %v1059, %v2064
      %v2066 = vsel %vm2058, %v1066, %v2065
      %v2067 = vsel %vm2046, %v1080, %v1073
      %v2068 = vsel %vm2048, %v1087, %v2067
      %v2069 = vsel %vm2050, %v1094, %v2068
      %v2070 = vsel %vm2052, %v1101, %v2069
      %v2071 = vsel %vm2054, %v1108, %v2070
      %v2072 = vsel %vm2056, %v1115, %v2071
      %v2073 = vsel %vm2058, %v1122, %v2072
      %v2074 = vsel %vm2046, %v1136, %v1129
      %v2075 = vsel %vm2048, %v1143, %v2074
      %v2076 = vsel %vm2050, %v1150, %v2075
      %v2077 = vsel %vm2052, %v1157, %v2076
      %v2078 = vsel %vm2054, %v1164, %v2077
      %v2079 = vsel %vm2056, %v1171, %v2078
      %v2080 = vsel %vm2058, %v1178, %v2079
      %v2081 = vsel %vm2046, %v1192, %v1185
      %v2082 = vsel %vm2048, %v1199, %v2081
      %v2083 = vsel %vm2050, %v1206, %v2082
      %v2084 = vsel %vm2052, %v1213, %v2083
      %v2085 = vsel %vm2054, %v1220, %v2084
      %v2086 = vsel %vm2056, %v1227, %v2085
      %v2087 = vsel %vm2058, %v1234, %v2086
      %v2088 = vsel %vm2046, %v1248, %v1241
      %v2089 = vsel %vm2048, %v1255, %v2088
      %v2090 = vsel %vm2050, %v1262, %v2089
      %v2091 = vsel %vm2052, %v1269, %v2090
      %v2092 = vsel %vm2054, %v1276, %v2091
      %v2093 = vsel %vm2056, %v1283, %v2092
      %v2094 = vsel %vm2058, %v1290, %v2093
      %v2095 = vsel %vm2046, %v1304, %v1297
      %v2096 = vsel %vm2048, %v1311, %v2095
      %v2097 = vsel %vm2050, %v1318, %v2096
      %v2098 = vsel %vm2052, %v1325, %v2097
      %v2099 = vsel %vm2054, %v1332, %v2098
      %v2100 = vsel %vm2056, %v1339, %v2099
      %v2101 = vsel %vm2058, %v1346, %v2100
      %v2102 = vsel %vm2046, %v1360, %v1353
      %v2103 = vsel %vm2048, %v1367, %v2102
      %v2104 = vsel %vm2050, %v1374, %v2103
      %v2105 = vsel %vm2052, %v1381, %v2104
      %v2106 = vsel %vm2054, %v1388, %v2105
      %v2107 = vsel %vm2056, %v1395, %v2106
      %v2108 = vsel %vm2058, %v1402, %v2107
      %v2109 = vsel %vm2046, %v1416, %v1409
      %v2110 = vsel %vm2048, %v1423, %v2109
      %v2111 = vsel %vm2050, %v1430, %v2110
      %v2112 = vsel %vm2052, %v1437, %v2111
      %v2113 = vsel %vm2054, %v1444, %v2112
      %v2114 = vsel %vm2056, %v1451, %v2113
      %v2115 = vsel %vm2058, %v1458, %v2114
      %v2116 = vsel %vm2046, %v1472, %v1465
      %v2117 = vsel %vm2048, %v1479, %v2116
      %v2118 = vsel %vm2050, %v1486, %v2117
      %v2119 = vsel %vm2052, %v1493, %v2118
      %v2120 = vsel %vm2054, %v1500, %v2119
      %v2121 = vsel %vm2056, %v1507, %v2120
      %v2122 = vsel %vm2058, %v1514, %v2121
      %v2123 = vsel %vm2046, %v1528, %v1521
      %v2124 = vsel %vm2048, %v1535, %v2123
      %v2125 = vsel %vm2050, %v1542, %v2124
      %v2126 = vsel %vm2052, %v1549, %v2125
      %v2127 = vsel %vm2054, %v1556, %v2126
      %v2128 = vsel %vm2056, %v1563, %v2127
      %v2129 = vsel %vm2058, %v1570, %v2128
      %v2130 = vsel %vm2046, %v1584, %v1577
      %v2131 = vsel %vm2048, %v1591, %v2130
      %v2132 = vsel %vm2050, %v1598, %v2131
      %v2133 = vsel %vm2052, %v1605, %v2132
      %v2134 = vsel %vm2054, %v1612, %v2133
      %v2135 = vsel %vm2056, %v1619, %v2134
      %v2136 = vsel %vm2058, %v1626, %v2135
      %v2137 = vsel %vm2046, %v1640, %v1633
      %v2138 = vsel %vm2048, %v1647, %v2137
      %v2139 = vsel %vm2050, %v1654, %v2138
      %v2140 = vsel %vm2052, %v1661, %v2139
      %v2141 = vsel %vm2054, %v1668, %v2140
      %v2142 = vsel %vm2056, %v1675, %v2141
      %v2143 = vsel %vm2058, %v1682, %v2142
      %v2144 = vsel %vm2046, %v1696, %v1689
      %v2145 = vsel %vm2048, %v1703, %v2144
      %v2146 = vsel %vm2050, %v1710, %v2145
      %v2147 = vsel %vm2052, %v1717, %v2146
      %v2148 = vsel %vm2054, %v1724, %v2147
      %v2149 = vsel %vm2056, %v1731, %v2148
      %v2150 = vsel %vm2058, %v1738, %v2149
      %v2151 = vsel %vm2046, %v1752, %v1745
      %v2152 = vsel %vm2048, %v1759, %v2151
      %v2153 = vsel %vm2050, %v1766, %v2152
      %v2154 = vsel %vm2052, %v1773, %v2153
      %v2155 = vsel %vm2054, %v1780, %v2154
      %v2156 = vsel %vm2056, %v1787, %v2155
      %v2157 = vsel %vm2058, %v1794, %v2156
      %v2158 = vsel %vm2046, %v1808, %v1801
      %v2159 = vsel %vm2048, %v1815, %v2158
      %v2160 = vsel %vm2050, %v1822, %v2159
      %v2161 = vsel %vm2052, %v1829, %v2160
      %v2162 = vsel %vm2054, %v1836, %v2161
      %v2163 = vsel %vm2056, %v1843, %v2162
      %v2164 = vsel %vm2058, %v1850, %v2163
      %v2181 = vrot.slane %v2059, 7
      %v2182 = vrot.slane %v2066, 7
      %v2183 = vrot.slane %v2073, 7
      %v2184 = vrot.slane %v2080, 7
      %v2185 = vrot.slane %v2087, 7
      %v2186 = vrot.slane %v2094, 7
      %v2187 = vrot.slane %v2101, 7
      %v2188 = vrot.slane %v2108, 7
      %v2189 = vrot.slane %v2115, 7
      %v2190 = vrot.slane %v2122, 7
      %v2191 = vrot.slane %v2129, 7
      %v2192 = vrot.slane %v2136, 7
      %v2193 = vrot.slane %v2143, 7
      %v2194 = vrot.slane %v2150, 7
      %v2195 = vrot.slane %v2157, 7
      %v2196 = vrot.slane %v2164, 7
      %vm2197 = vcmp.lt.s32.totalorder %v1886, 1
      %v2198 = vsel %vm2197, %v2195, %v2196
      %v2199 = vsel %vm2197, %v2194, %v2195
      %v2200 = vsel %vm2197, %v2193, %v2194
      %v2201 = vsel %vm2197, %v2192, %v2193
      %v2202 = vsel %vm2197, %v2191, %v2192
      %v2203 = vsel %vm2197, %v2190, %v2191
      %v2204 = vsel %vm2197, %v2189, %v2190
      %v2205 = vsel %vm2197, %v2188, %v2189
      %v2206 = vsel %vm2197, %v2187, %v2188
      %v2207 = vsel %vm2197, %v2186, %v2187
      %v2208 = vsel %vm2197, %v2185, %v2186
      %v2209 = vsel %vm2197, %v2184, %v2185
      %v2210 = vsel %vm2197, %v2183, %v2184
      %v2211 = vsel %vm2197, %v2182, %v2183
      %v2212 = vsel %vm2197, %v2181, %v2182
      %v2213 = vsel %vm2197, %v2196, %v2181
      %v2214 = vsel %vm1902, 1, 0
      %v2215 = vsel %vm1903, 1, 0
      %v2216 = vsel %vm1904, 1, 0
      %v2217 = vsel %vm1905, 1, 0
      %v2218 = vsel %vm1906, 1, 0
      %v2219 = vsel %vm1907, 1, 0
      %v2220 = vsel %vm1908, 1, 0
      %v2221 = vsel %vm1909, 1, 0
      %v2222 = vsel %vm1910, 1, 0
      %v2223 = vsel %vm1911, 1, 0
      %v2224 = vsel %vm1912, 1, 0
      %v2225 = vsel %vm1913, 1, 0
      %v2226 = vsel %vm1914, 1, 0
      %v2227 = vsel %vm1915, 1, 0
      %v2228 = vsel %vm1916, 1, 0
      %v2229 = vsel %vm1917, 1, 0
      %vm2230 = vcmp.eq.s32.totalorder %v2214, 1
      %vm2231 = vcmp.eq.s32.totalorder %v2215, 1
      %vm2232 = vcmp.eq.s32.totalorder %v2216, 1
      %vm2233 = vcmp.eq.s32.totalorder %v2217, 1
      %vm2234 = vcmp.eq.s32.totalorder %v2218, 1
      %vm2235 = vcmp.eq.s32.totalorder %v2219, 1
      %vm2236 = vcmp.eq.s32.totalorder %v2220, 1
      %vm2237 = vcmp.eq.s32.totalorder %v2221, 1
      %vm2238 = vcmp.eq.s32.totalorder %v2222, 1
      %vm2239 = vcmp.eq.s32.totalorder %v2223, 1
      %vm2240 = vcmp.eq.s32.totalorder %v2224, 1
      %vm2241 = vcmp.eq.s32.totalorder %v2225, 1
      %vm2242 = vcmp.eq.s32.totalorder %v2226, 1
      %vm2243 = vcmp.eq.s32.totalorder %v2227, 1
      %vm2244 = vcmp.eq.s32.totalorder %v2228, 1
      %vm2245 = vcmp.eq.s32.totalorder %v2229, 1
      %v2246 = vsel %vm2230, %v1867, %v2213
      %v2247 = vsel %vm2231, %v1867, %v2212
      %v2248 = vsel %vm2232, %v1867, %v2211
      %v2249 = vsel %vm2233, %v1867, %v2210
      %v2250 = vsel %vm2234, %v1867, %v2209
      %v2251 = vsel %vm2235, %v1867, %v2208
      %v2252 = vsel %vm2236, %v1867, %v2207
      %v2253 = vsel %vm2237, %v1867, %v2206
      %v2254 = vsel %vm2238, %v1867, %v2205
      %v2255 = vsel %vm2239, %v1867, %v2204
      %v2256 = vsel %vm2240, %v1867, %v2203
      %v2257 = vsel %vm2241, %v1867, %v2202
      %v2258 = vsel %vm2242, %v1867, %v2201
      %v2259 = vsel %vm2243, %v1867, %v2200
      %v2260 = vsel %vm2244, %v1867, %v2199
      %v2261 = vsel %vm2245, %v1867, %v2198
      %vm2262 = vcmp.eq.s32.totalorder %v1886, 127
      %vm2263 = vcmp.eq.s32.totalorder %v1887, 127
      %vm2264 = vcmp.eq.s32.totalorder %v1888, 127
      %vm2265 = vcmp.eq.s32.totalorder %v1889, 127
      %vm2266 = vcmp.eq.s32.totalorder %v1890, 127
      %vm2267 = vcmp.eq.s32.totalorder %v1891, 127
      %vm2268 = vcmp.eq.s32.totalorder %v1892, 127
      %vm2269 = vcmp.eq.s32.totalorder %v1893, 127
      %vm2270 = vcmp.eq.s32.totalorder %v1894, 127
      %vm2271 = vcmp.eq.s32.totalorder %v1895, 127
      %vm2272 = vcmp.eq.s32.totalorder %v1896, 127
      %vm2273 = vcmp.eq.s32.totalorder %v1897, 127
      %vm2274 = vcmp.eq.s32.totalorder %v1898, 127
      %vm2275 = vcmp.eq.s32.totalorder %v1899, 127
      %vm2276 = vcmp.eq.s32.totalorder %v1900, 127
      %vm2277 = vcmp.eq.s32.totalorder %v1901, 127
      %v2278 = vrot.slane %v2059, 1
      %v2279 = vrot.slane %v2066, 1
      %v2280 = vrot.slane %v2073, 1
      %v2281 = vrot.slane %v2080, 1
      %v2282 = vrot.slane %v2087, 1
      %v2283 = vrot.slane %v2094, 1
      %v2284 = vrot.slane %v2101, 1
      %v2285 = vrot.slane %v2108, 1
      %v2286 = vrot.slane %v2115, 1
      %v2287 = vrot.slane %v2122, 1
      %v2288 = vrot.slane %v2129, 1
      %v2289 = vrot.slane %v2136, 1
      %v2290 = vrot.slane %v2143, 1
      %v2291 = vrot.slane %v2150, 1
      %v2292 = vrot.slane %v2157, 1
      %v2293 = vrot.slane %v2164, 1
      %vm2294 = vcmp.lt.s32.totalorder %v1886, 7
      %v2295 = vsel %vm2294, %v2292, %v2293
      %v2296 = vsel %vm2294, %v2291, %v2292
      %v2297 = vsel %vm2294, %v2290, %v2291
      %v2298 = vsel %vm2294, %v2289, %v2290
      %v2299 = vsel %vm2294, %v2288, %v2289
      %v2300 = vsel %vm2294, %v2287, %v2288
      %v2301 = vsel %vm2294, %v2286, %v2287
      %v2302 = vsel %vm2294, %v2285, %v2286
      %v2303 = vsel %vm2294, %v2284, %v2285
      %v2304 = vsel %vm2294, %v2283, %v2284
      %v2305 = vsel %vm2294, %v2282, %v2283
      %v2306 = vsel %vm2294, %v2281, %v2282
      %v2307 = vsel %vm2294, %v2280, %v2281
      %v2308 = vsel %vm2294, %v2279, %v2280
      %v2309 = vsel %vm2294, %v2278, %v2279
      %v2310 = vsel %vm2294, %v2293, %v2278
      %v2311 = vsel %vm2262, 1, 0
      %v2312 = vsel %vm2263, 1, 0
      %v2313 = vsel %vm2264, 1, 0
      %v2314 = vsel %vm2265, 1, 0
      %v2315 = vsel %vm2266, 1, 0
      %v2316 = vsel %vm2267, 1, 0
      %v2317 = vsel %vm2268, 1, 0
      %v2318 = vsel %vm2269, 1, 0
      %v2319 = vsel %vm2270, 1, 0
      %v2320 = vsel %vm2271, 1, 0
      %v2321 = vsel %vm2272, 1, 0
      %v2322 = vsel %vm2273, 1, 0
      %v2323 = vsel %vm2274, 1, 0
      %v2324 = vsel %vm2275, 1, 0
      %v2325 = vsel %vm2276, 1, 0
      %v2326 = vsel %vm2277, 1, 0
      %vm2327 = vcmp.eq.s32.totalorder %v2311, 1
      %vm2328 = vcmp.eq.s32.totalorder %v2312, 1
      %vm2329 = vcmp.eq.s32.totalorder %v2313, 1
      %vm2330 = vcmp.eq.s32.totalorder %v2314, 1
      %vm2331 = vcmp.eq.s32.totalorder %v2315, 1
      %vm2332 = vcmp.eq.s32.totalorder %v2316, 1
      %vm2333 = vcmp.eq.s32.totalorder %v2317, 1
      %vm2334 = vcmp.eq.s32.totalorder %v2318, 1
      %vm2335 = vcmp.eq.s32.totalorder %v2319, 1
      %vm2336 = vcmp.eq.s32.totalorder %v2320, 1
      %vm2337 = vcmp.eq.s32.totalorder %v2321, 1
      %vm2338 = vcmp.eq.s32.totalorder %v2322, 1
      %vm2339 = vcmp.eq.s32.totalorder %v2323, 1
      %vm2340 = vcmp.eq.s32.totalorder %v2324, 1
      %vm2341 = vcmp.eq.s32.totalorder %v2325, 1
      %vm2342 = vcmp.eq.s32.totalorder %v2326, 1
      %v2343 = vsel %vm2327, %v1884, %v2309
      %v2344 = vsel %vm2328, %v1884, %v2308
      %v2345 = vsel %vm2329, %v1884, %v2307
      %v2346 = vsel %vm2330, %v1884, %v2306
      %v2347 = vsel %vm2331, %v1884, %v2305
      %v2348 = vsel %vm2332, %v1884, %v2304
      %v2349 = vsel %vm2333, %v1884, %v2303
      %v2350 = vsel %vm2334, %v1884, %v2302
      %v2351 = vsel %vm2335, %v1884, %v2301
      %v2352 = vsel %vm2336, %v1884, %v2300
      %v2353 = vsel %vm2337, %v1884, %v2299
      %v2354 = vsel %vm2338, %v1884, %v2298
      %v2355 = vsel %vm2339, %v1884, %v2297
      %v2356 = vsel %vm2340, %v1884, %v2296
      %v2357 = vsel %vm2341, %v1884, %v2295
      %v2358 = vsel %vm2342, %v1884, %v2310
      %v2359 = vpack.c.bf16 %v2247, %v2246
      %v2360 = vpack.c.bf16 %v2249, %v2248
      %v2361 = vpack.c.bf16 %v2251, %v2250
      %v2362 = vpack.c.bf16 %v2253, %v2252
      %v2363 = vpack.c.bf16 %v2255, %v2254
      %v2364 = vpack.c.bf16 %v2257, %v2256
      %v2365 = vpack.c.bf16 %v2259, %v2258
      %v2366 = vpack.c.bf16 %v2261, %v2260
      %v2367 = vpack.c.bf16 %v961, %v961
      %v2368 = vpack.c.bf16 %v968, %v968
      %v2369 = vpack.c.bf16 %v975, %v975
      %v2370 = vpack.c.bf16 %v982, %v982
      %v2371 = vpack.c.bf16 %v989, %v989
      %v2372 = vpack.c.bf16 %v996, %v996
      %v2373 = vpack.c.bf16 %v1003, %v1003
      %v2374 = vpack.c.bf16 %v1010, %v1010
      %v2375 = vpack.c.bf16 %v1017, %v1017
      %v2376 = vpack.c.bf16 %v1024, %v1024
      %v2377 = vpack.c.bf16 %v1031, %v1031
      %v2378 = vpack.c.bf16 %v1038, %v1038
      %v2379 = vpack.c.bf16 %v1045, %v1045
      %v2380 = vpack.c.bf16 %v1052, %v1052
      %v2381 = vpack.c.bf16 %v1059, %v1059
      %v2382 = vpack.c.bf16 %v1066, %v1066
      %v2383 = vpack.c.bf16 %v1073, %v1073
      %v2384 = vpack.c.bf16 %v1080, %v1080
      %v2385 = vpack.c.bf16 %v1087, %v1087
      %v2386 = vpack.c.bf16 %v1094, %v1094
      %v2387 = vpack.c.bf16 %v1101, %v1101
      %v2388 = vpack.c.bf16 %v1108, %v1108
      %v2389 = vpack.c.bf16 %v1115, %v1115
      %v2390 = vpack.c.bf16 %v1122, %v1122
      %v2391 = vpack.c.bf16 %v1129, %v1129
      %v2392 = vpack.c.bf16 %v1136, %v1136
      %v2393 = vpack.c.bf16 %v1143, %v1143
      %v2394 = vpack.c.bf16 %v1150, %v1150
      %v2395 = vpack.c.bf16 %v1157, %v1157
      %v2396 = vpack.c.bf16 %v1164, %v1164
      %v2397 = vpack.c.bf16 %v1171, %v1171
      %v2398 = vpack.c.bf16 %v1178, %v1178
      %v2399 = vpack.c.bf16 %v1185, %v1185
      %v2400 = vpack.c.bf16 %v1192, %v1192
      %v2401 = vpack.c.bf16 %v1199, %v1199
      %v2402 = vpack.c.bf16 %v1206, %v1206
      %v2403 = vpack.c.bf16 %v1213, %v1213
      %v2404 = vpack.c.bf16 %v1220, %v1220
      %v2405 = vpack.c.bf16 %v1227, %v1227
      %v2406 = vpack.c.bf16 %v1234, %v1234
      %v2407 = vpack.c.bf16 %v1241, %v1241
      %v2408 = vpack.c.bf16 %v1248, %v1248
      %v2409 = vpack.c.bf16 %v1255, %v1255
      %v2410 = vpack.c.bf16 %v1262, %v1262
      %v2411 = vpack.c.bf16 %v1269, %v1269
      %v2412 = vpack.c.bf16 %v1276, %v1276
      %v2413 = vpack.c.bf16 %v1283, %v1283
      %v2414 = vpack.c.bf16 %v1290, %v1290
      %v2415 = vpack.c.bf16 %v1297, %v1297
      %v2416 = vpack.c.bf16 %v1304, %v1304
      %v2417 = vpack.c.bf16 %v1311, %v1311
      %v2418 = vpack.c.bf16 %v1318, %v1318
      %v2419 = vpack.c.bf16 %v1325, %v1325
      %v2420 = vpack.c.bf16 %v1332, %v1332
      %v2421 = vpack.c.bf16 %v1339, %v1339
      %v2422 = vpack.c.bf16 %v1346, %v1346
      %v2423 = vpack.c.bf16 %v1353, %v1353
      %v2424 = vpack.c.bf16 %v1360, %v1360
      %v2425 = vpack.c.bf16 %v1367, %v1367
      %v2426 = vpack.c.bf16 %v1374, %v1374
      %v2427 = vpack.c.bf16 %v1381, %v1381
      %v2428 = vpack.c.bf16 %v1388, %v1388
      %v2429 = vpack.c.bf16 %v1395, %v1395
      %v2430 = vpack.c.bf16 %v1402, %v1402
      %v2431 = vpack.c.bf16 %v1409, %v1409
      %v2432 = vpack.c.bf16 %v1416, %v1416
      %v2433 = vpack.c.bf16 %v1423, %v1423
      %v2434 = vpack.c.bf16 %v1430, %v1430
      %v2435 = vpack.c.bf16 %v1437, %v1437
      %v2436 = vpack.c.bf16 %v1444, %v1444
      %v2437 = vpack.c.bf16 %v1451, %v1451
      %v2438 = vpack.c.bf16 %v1458, %v1458
      %v2439 = vpack.c.bf16 %v1465, %v1465
      %v2440 = vpack.c.bf16 %v1472, %v1472
      %v2441 = vpack.c.bf16 %v1479, %v1479
      %v2442 = vpack.c.bf16 %v1486, %v1486
      %v2443 = vpack.c.bf16 %v1493, %v1493
      %v2444 = vpack.c.bf16 %v1500, %v1500
      %v2445 = vpack.c.bf16 %v1507, %v1507
      %v2446 = vpack.c.bf16 %v1514, %v1514
      %v2447 = vpack.c.bf16 %v1521, %v1521
      %v2448 = vpack.c.bf16 %v1528, %v1528
      %v2449 = vpack.c.bf16 %v1535, %v1535
      %v2450 = vpack.c.bf16 %v1542, %v1542
      %v2451 = vpack.c.bf16 %v1549, %v1549
      %v2452 = vpack.c.bf16 %v1556, %v1556
      %v2453 = vpack.c.bf16 %v1563, %v1563
      %v2454 = vpack.c.bf16 %v1570, %v1570
      %v2455 = vpack.c.bf16 %v1577, %v1577
      %v2456 = vpack.c.bf16 %v1584, %v1584
      %v2457 = vpack.c.bf16 %v1591, %v1591
      %v2458 = vpack.c.bf16 %v1598, %v1598
      %v2459 = vpack.c.bf16 %v1605, %v1605
      %v2460 = vpack.c.bf16 %v1612, %v1612
      %v2461 = vpack.c.bf16 %v1619, %v1619
      %v2462 = vpack.c.bf16 %v1626, %v1626
      %v2463 = vpack.c.bf16 %v1633, %v1633
      %v2464 = vpack.c.bf16 %v1640, %v1640
      %v2465 = vpack.c.bf16 %v1647, %v1647
      %v2466 = vpack.c.bf16 %v1654, %v1654
      %v2467 = vpack.c.bf16 %v1661, %v1661
      %v2468 = vpack.c.bf16 %v1668, %v1668
      %v2469 = vpack.c.bf16 %v1675, %v1675
      %v2470 = vpack.c.bf16 %v1682, %v1682
      %v2471 = vpack.c.bf16 %v1689, %v1689
      %v2472 = vpack.c.bf16 %v1696, %v1696
      %v2473 = vpack.c.bf16 %v1703, %v1703
      %v2474 = vpack.c.bf16 %v1710, %v1710
      %v2475 = vpack.c.bf16 %v1717, %v1717
      %v2476 = vpack.c.bf16 %v1724, %v1724
      %v2477 = vpack.c.bf16 %v1731, %v1731
      %v2478 = vpack.c.bf16 %v1738, %v1738
      %v2479 = vpack.c.bf16 %v1745, %v1745
      %v2480 = vpack.c.bf16 %v1752, %v1752
      %v2481 = vpack.c.bf16 %v1759, %v1759
      %v2482 = vpack.c.bf16 %v1766, %v1766
      %v2483 = vpack.c.bf16 %v1773, %v1773
      %v2484 = vpack.c.bf16 %v1780, %v1780
      %v2485 = vpack.c.bf16 %v1787, %v1787
      %v2486 = vpack.c.bf16 %v1794, %v1794
      %v2487 = vpack.c.bf16 %v1801, %v1801
      %v2488 = vpack.c.bf16 %v1808, %v1808
      %v2489 = vpack.c.bf16 %v1815, %v1815
      %v2490 = vpack.c.bf16 %v1822, %v1822
      %v2491 = vpack.c.bf16 %v1829, %v1829
      %v2492 = vpack.c.bf16 %v1836, %v1836
      %v2493 = vpack.c.bf16 %v1843, %v1843
      %v2494 = vpack.c.bf16 %v1850, %v1850
      %v2495 = vpack.c.bf16 %v2344, %v2343
      %v2496 = vpack.c.bf16 %v2346, %v2345
      %v2497 = vpack.c.bf16 %v2348, %v2347
      %v2498 = vpack.c.bf16 %v2350, %v2349
      %v2499 = vpack.c.bf16 %v2352, %v2351
      %v2500 = vpack.c.bf16 %v2354, %v2353
      %v2501 = vpack.c.bf16 %v2356, %v2355
      %v2502 = vpack.c.bf16 %v2358, %v2357
      %v2631 = vunpack.c.l.b16 %v2367
      %v2632 = vunpack.c.l.b16 %v2368
      %v2633 = vunpack.c.l.b16 %v2369
      %v2634 = vunpack.c.l.b16 %v2370
      %v2635 = vunpack.c.l.b16 %v2371
      %v2636 = vunpack.c.l.b16 %v2372
      %v2637 = vunpack.c.l.b16 %v2373
      %v2638 = vunpack.c.l.b16 %v2374
      %v2639 = vunpack.c.l.b16 %v2375
      %v2640 = vunpack.c.l.b16 %v2376
      %v2641 = vunpack.c.l.b16 %v2377
      %v2642 = vunpack.c.l.b16 %v2378
      %v2643 = vunpack.c.l.b16 %v2379
      %v2644 = vunpack.c.l.b16 %v2380
      %v2645 = vunpack.c.l.b16 %v2381
      %v2646 = vunpack.c.l.b16 %v2382
      %v2647 = vunpack.c.l.b16 %v2383
      %v2648 = vunpack.c.l.b16 %v2384
      %v2649 = vunpack.c.l.b16 %v2385
      %v2650 = vunpack.c.l.b16 %v2386
      %v2651 = vunpack.c.l.b16 %v2387
      %v2652 = vunpack.c.l.b16 %v2388
      %v2653 = vunpack.c.l.b16 %v2389
      %v2654 = vunpack.c.l.b16 %v2390
      %v2655 = vunpack.c.l.b16 %v2391
      %v2656 = vunpack.c.l.b16 %v2392
      %v2657 = vunpack.c.l.b16 %v2393
      %v2658 = vunpack.c.l.b16 %v2394
      %v2659 = vunpack.c.l.b16 %v2395
      %v2660 = vunpack.c.l.b16 %v2396
      %v2661 = vunpack.c.l.b16 %v2397
      %v2662 = vunpack.c.l.b16 %v2398
      %v2663 = vunpack.c.l.b16 %v2399
      %v2664 = vunpack.c.l.b16 %v2400
      %v2665 = vunpack.c.l.b16 %v2401
      %v2666 = vunpack.c.l.b16 %v2402
      %v2667 = vunpack.c.l.b16 %v2403
      %v2668 = vunpack.c.l.b16 %v2404
      %v2669 = vunpack.c.l.b16 %v2405
      %v2670 = vunpack.c.l.b16 %v2406
      %v2671 = vunpack.c.l.b16 %v2407
      %v2672 = vunpack.c.l.b16 %v2408
      %v2673 = vunpack.c.l.b16 %v2409
      %v2674 = vunpack.c.l.b16 %v2410
      %v2675 = vunpack.c.l.b16 %v2411
      %v2676 = vunpack.c.l.b16 %v2412
      %v2677 = vunpack.c.l.b16 %v2413
      %v2678 = vunpack.c.l.b16 %v2414
      %v2679 = vunpack.c.l.b16 %v2415
      %v2680 = vunpack.c.l.b16 %v2416
      %v2681 = vunpack.c.l.b16 %v2417
      %v2682 = vunpack.c.l.b16 %v2418
      %v2683 = vunpack.c.l.b16 %v2419
      %v2684 = vunpack.c.l.b16 %v2420
      %v2685 = vunpack.c.l.b16 %v2421
      %v2686 = vunpack.c.l.b16 %v2422
      %v2687 = vunpack.c.l.b16 %v2423
      %v2688 = vunpack.c.l.b16 %v2424
      %v2689 = vunpack.c.l.b16 %v2425
      %v2690 = vunpack.c.l.b16 %v2426
      %v2691 = vunpack.c.l.b16 %v2427
      %v2692 = vunpack.c.l.b16 %v2428
      %v2693 = vunpack.c.l.b16 %v2429
      %v2694 = vunpack.c.l.b16 %v2430
      %v2695 = vunpack.c.l.b16 %v2431
      %v2696 = vunpack.c.l.b16 %v2432
      %v2697 = vunpack.c.l.b16 %v2433
      %v2698 = vunpack.c.l.b16 %v2434
      %v2699 = vunpack.c.l.b16 %v2435
      %v2700 = vunpack.c.l.b16 %v2436
      %v2701 = vunpack.c.l.b16 %v2437
      %v2702 = vunpack.c.l.b16 %v2438
      %v2703 = vunpack.c.l.b16 %v2439
      %v2704 = vunpack.c.l.b16 %v2440
      %v2705 = vunpack.c.l.b16 %v2441
      %v2706 = vunpack.c.l.b16 %v2442
      %v2707 = vunpack.c.l.b16 %v2443
      %v2708 = vunpack.c.l.b16 %v2444
      %v2709 = vunpack.c.l.b16 %v2445
      %v2710 = vunpack.c.l.b16 %v2446
      %v2711 = vunpack.c.l.b16 %v2447
      %v2712 = vunpack.c.l.b16 %v2448
      %v2713 = vunpack.c.l.b16 %v2449
      %v2714 = vunpack.c.l.b16 %v2450
      %v2715 = vunpack.c.l.b16 %v2451
      %v2716 = vunpack.c.l.b16 %v2452
      %v2717 = vunpack.c.l.b16 %v2453
      %v2718 = vunpack.c.l.b16 %v2454
      %v2719 = vunpack.c.l.b16 %v2455
      %v2720 = vunpack.c.l.b16 %v2456
      %v2721 = vunpack.c.l.b16 %v2457
      %v2722 = vunpack.c.l.b16 %v2458
      %v2723 = vunpack.c.l.b16 %v2459
      %v2724 = vunpack.c.l.b16 %v2460
      %v2725 = vunpack.c.l.b16 %v2461
      %v2726 = vunpack.c.l.b16 %v2462
      %v2727 = vunpack.c.l.b16 %v2463
      %v2728 = vunpack.c.l.b16 %v2464
      %v2729 = vunpack.c.l.b16 %v2465
      %v2730 = vunpack.c.l.b16 %v2466
      %v2731 = vunpack.c.l.b16 %v2467
      %v2732 = vunpack.c.l.b16 %v2468
      %v2733 = vunpack.c.l.b16 %v2469
      %v2734 = vunpack.c.l.b16 %v2470
      %v2735 = vunpack.c.l.b16 %v2471
      %v2736 = vunpack.c.l.b16 %v2472
      %v2737 = vunpack.c.l.b16 %v2473
      %v2738 = vunpack.c.l.b16 %v2474
      %v2739 = vunpack.c.l.b16 %v2475
      %v2740 = vunpack.c.l.b16 %v2476
      %v2741 = vunpack.c.l.b16 %v2477
      %v2742 = vunpack.c.l.b16 %v2478
      %v2743 = vunpack.c.l.b16 %v2479
      %v2744 = vunpack.c.l.b16 %v2480
      %v2745 = vunpack.c.l.b16 %v2481
      %v2746 = vunpack.c.l.b16 %v2482
      %v2747 = vunpack.c.l.b16 %v2483
      %v2748 = vunpack.c.l.b16 %v2484
      %v2749 = vunpack.c.l.b16 %v2485
      %v2750 = vunpack.c.l.b16 %v2486
      %v2751 = vunpack.c.l.b16 %v2487
      %v2752 = vunpack.c.l.b16 %v2488
      %v2753 = vunpack.c.l.b16 %v2489
      %v2754 = vunpack.c.l.b16 %v2490
      %v2755 = vunpack.c.l.b16 %v2491
      %v2756 = vunpack.c.l.b16 %v2492
      %v2757 = vunpack.c.l.b16 %v2493
      %v2758 = vunpack.c.l.b16 %v2494
      %v2759 = vsel %vm2046, %v2632, %v2631
      %v2760 = vsel %vm2048, %v2633, %v2759
      %v2761 = vsel %vm2050, %v2634, %v2760
      %v2762 = vsel %vm2052, %v2635, %v2761
      %v2763 = vsel %vm2054, %v2636, %v2762
      %v2764 = vsel %vm2056, %v2637, %v2763
      %v2765 = vsel %vm2058, %v2638, %v2764
      %v2766 = vsel %vm2046, %v2640, %v2639
      %v2767 = vsel %vm2048, %v2641, %v2766
      %v2768 = vsel %vm2050, %v2642, %v2767
      %v2769 = vsel %vm2052, %v2643, %v2768
      %v2770 = vsel %vm2054, %v2644, %v2769
      %v2771 = vsel %vm2056, %v2645, %v2770
      %v2772 = vsel %vm2058, %v2646, %v2771
      %v2773 = vsel %vm2046, %v2648, %v2647
      %v2774 = vsel %vm2048, %v2649, %v2773
      %v2775 = vsel %vm2050, %v2650, %v2774
      %v2776 = vsel %vm2052, %v2651, %v2775
      %v2777 = vsel %vm2054, %v2652, %v2776
      %v2778 = vsel %vm2056, %v2653, %v2777
      %v2779 = vsel %vm2058, %v2654, %v2778
      %v2780 = vsel %vm2046, %v2656, %v2655
      %v2781 = vsel %vm2048, %v2657, %v2780
      %v2782 = vsel %vm2050, %v2658, %v2781
      %v2783 = vsel %vm2052, %v2659, %v2782
      %v2784 = vsel %vm2054, %v2660, %v2783
      %v2785 = vsel %vm2056, %v2661, %v2784
      %v2786 = vsel %vm2058, %v2662, %v2785
      %v2787 = vsel %vm2046, %v2664, %v2663
      %v2788 = vsel %vm2048, %v2665, %v2787
      %v2789 = vsel %vm2050, %v2666, %v2788
      %v2790 = vsel %vm2052, %v2667, %v2789
      %v2791 = vsel %vm2054, %v2668, %v2790
      %v2792 = vsel %vm2056, %v2669, %v2791
      %v2793 = vsel %vm2058, %v2670, %v2792
      %v2794 = vsel %vm2046, %v2672, %v2671
      %v2795 = vsel %vm2048, %v2673, %v2794
      %v2796 = vsel %vm2050, %v2674, %v2795
      %v2797 = vsel %vm2052, %v2675, %v2796
      %v2798 = vsel %vm2054, %v2676, %v2797
      %v2799 = vsel %vm2056, %v2677, %v2798
      %v2800 = vsel %vm2058, %v2678, %v2799
      %v2801 = vsel %vm2046, %v2680, %v2679
      %v2802 = vsel %vm2048, %v2681, %v2801
      %v2803 = vsel %vm2050, %v2682, %v2802
      %v2804 = vsel %vm2052, %v2683, %v2803
      %v2805 = vsel %vm2054, %v2684, %v2804
      %v2806 = vsel %vm2056, %v2685, %v2805
      %v2807 = vsel %vm2058, %v2686, %v2806
      %v2808 = vsel %vm2046, %v2688, %v2687
      %v2809 = vsel %vm2048, %v2689, %v2808
      %v2810 = vsel %vm2050, %v2690, %v2809
      %v2811 = vsel %vm2052, %v2691, %v2810
      %v2812 = vsel %vm2054, %v2692, %v2811
      %v2813 = vsel %vm2056, %v2693, %v2812
      %v2814 = vsel %vm2058, %v2694, %v2813
      %v2815 = vsel %vm2046, %v2696, %v2695
      %v2816 = vsel %vm2048, %v2697, %v2815
      %v2817 = vsel %vm2050, %v2698, %v2816
      %v2818 = vsel %vm2052, %v2699, %v2817
      %v2819 = vsel %vm2054, %v2700, %v2818
      %v2820 = vsel %vm2056, %v2701, %v2819
      %v2821 = vsel %vm2058, %v2702, %v2820
      %v2822 = vsel %vm2046, %v2704, %v2703
      %v2823 = vsel %vm2048, %v2705, %v2822
      %v2824 = vsel %vm2050, %v2706, %v2823
      %v2825 = vsel %vm2052, %v2707, %v2824
      %v2826 = vsel %vm2054, %v2708, %v2825
      %v2827 = vsel %vm2056, %v2709, %v2826
      %v2828 = vsel %vm2058, %v2710, %v2827
      %v2829 = vsel %vm2046, %v2712, %v2711
      %v2830 = vsel %vm2048, %v2713, %v2829
      %v2831 = vsel %vm2050, %v2714, %v2830
      %v2832 = vsel %vm2052, %v2715, %v2831
      %v2833 = vsel %vm2054, %v2716, %v2832
      %v2834 = vsel %vm2056, %v2717, %v2833
      %v2835 = vsel %vm2058, %v2718, %v2834
      %v2836 = vsel %vm2046, %v2720, %v2719
      %v2837 = vsel %vm2048, %v2721, %v2836
      %v2838 = vsel %vm2050, %v2722, %v2837
      %v2839 = vsel %vm2052, %v2723, %v2838
      %v2840 = vsel %vm2054, %v2724, %v2839
      %v2841 = vsel %vm2056, %v2725, %v2840
      %v2842 = vsel %vm2058, %v2726, %v2841
      %v2843 = vsel %vm2046, %v2728, %v2727
      %v2844 = vsel %vm2048, %v2729, %v2843
      %v2845 = vsel %vm2050, %v2730, %v2844
      %v2846 = vsel %vm2052, %v2731, %v2845
      %v2847 = vsel %vm2054, %v2732, %v2846
      %v2848 = vsel %vm2056, %v2733, %v2847
      %v2849 = vsel %vm2058, %v2734, %v2848
      %v2850 = vsel %vm2046, %v2736, %v2735
      %v2851 = vsel %vm2048, %v2737, %v2850
      %v2852 = vsel %vm2050, %v2738, %v2851
      %v2853 = vsel %vm2052, %v2739, %v2852
      %v2854 = vsel %vm2054, %v2740, %v2853
      %v2855 = vsel %vm2056, %v2741, %v2854
      %v2856 = vsel %vm2058, %v2742, %v2855
      %v2857 = vsel %vm2046, %v2744, %v2743
      %v2858 = vsel %vm2048, %v2745, %v2857
      %v2859 = vsel %vm2050, %v2746, %v2858
      %v2860 = vsel %vm2052, %v2747, %v2859
      %v2861 = vsel %vm2054, %v2748, %v2860
      %v2862 = vsel %vm2056, %v2749, %v2861
      %v2863 = vsel %vm2058, %v2750, %v2862
      %v2864 = vsel %vm2046, %v2752, %v2751
      %v2865 = vsel %vm2048, %v2753, %v2864
      %v2866 = vsel %vm2050, %v2754, %v2865
      %v2867 = vsel %vm2052, %v2755, %v2866
      %v2868 = vsel %vm2054, %v2756, %v2867
      %v2869 = vsel %vm2056, %v2757, %v2868
      %v2870 = vsel %vm2058, %v2758, %v2869
      %v2871 = vpack.c.b16 %v2772, %v2765
      %v2872 = vpack.c.b16 %v2786, %v2779
      %v2873 = vpack.c.b16 %v2800, %v2793
      %v2874 = vpack.c.b16 %v2814, %v2807
      %v2875 = vpack.c.b16 %v2828, %v2821
      %v2876 = vpack.c.b16 %v2842, %v2835
      %v2877 = vpack.c.b16 %v2856, %v2849
      %v2878 = vpack.c.b16 %v2870, %v2863
      %v2887 = vld [vmem:[%s1] sm:$0xf]
      %v2888 = vld [vmem:[%s1 + $0x4] sm:$0xf]
      %v2889 = vld [vmem:[%s1 + $0x8] sm:$0xf]
      %v2890 = vld [vmem:[%s1 + $0xc] sm:$0xf]
      %v2891 = vld [vmem:[%s1 + $0x10] sm:$0xf]
      %v2892 = vld [vmem:[%s1 + $0x14] sm:$0xf]
      %v2893 = vld [vmem:[%s1 + $0x18] sm:$0xf]
      %v2894 = vld [vmem:[%s1 + $0x1c] sm:$0xf]
      %v2895 = vld [vmem:[%s1 + $0x20] sm:$0xf]
      %v2896 = vld [vmem:[%s1 + $0x24] sm:$0xf]
      %v2897 = vld [vmem:[%s1 + $0x28] sm:$0xf]
      %v2898 = vld [vmem:[%s1 + $0x2c] sm:$0xf]
      %v2899 = vld [vmem:[%s1 + $0x30] sm:$0xf]
      %v2900 = vld [vmem:[%s1 + $0x34] sm:$0xf]
      %v2901 = vld [vmem:[%s1 + $0x38] sm:$0xf]
      %v2902 = vld [vmem:[%s1 + $0x3c] sm:$0xf]
      %v2903 = vld [vmem:[%s1 + $0x40] sm:$0xf]
      %v2904 = vld [vmem:[%s1 + $0x44] sm:$0xf]
      %v2905 = vld [vmem:[%s1 + $0x48] sm:$0xf]
      %v2906 = vld [vmem:[%s1 + $0x4c] sm:$0xf]
      %v2907 = vld [vmem:[%s1 + $0x50] sm:$0xf]
      %v2908 = vld [vmem:[%s1 + $0x54] sm:$0xf]
      %v2909 = vld [vmem:[%s1 + $0x58] sm:$0xf]
      %v2910 = vld [vmem:[%s1 + $0x5c] sm:$0xf]
      %v2911 = vld [vmem:[%s1 + $0x60] sm:$0xf]
      %v2912 = vld [vmem:[%s1 + $0x64] sm:$0xf]
      %v2913 = vld [vmem:[%s1 + $0x68] sm:$0xf]
      %v2914 = vld [vmem:[%s1 + $0x6c] sm:$0xf]
      %v2915 = vld [vmem:[%s1 + $0x70] sm:$0xf]
      %v2916 = vld [vmem:[%s1 + $0x74] sm:$0xf]
      %v2917 = vld [vmem:[%s1 + $0x78] sm:$0xf]
      %v2918 = vld [vmem:[%s1 + $0x7c] sm:$0xf]
      %v2919 = vld [vmem:[%s1 + $0x80] sm:$0xf]
      %v2920 = vld [vmem:[%s1 + $0x84] sm:$0xf]
      %v2921 = vld [vmem:[%s1 + $0x88] sm:$0xf]
      %v2922 = vld [vmem:[%s1 + $0x8c] sm:$0xf]
      %v2923 = vld [vmem:[%s1 + $0x90] sm:$0xf]
      %v2924 = vld [vmem:[%s1 + $0x94] sm:$0xf]
      %v2925 = vld [vmem:[%s1 + $0x98] sm:$0xf]
      %v2926 = vld [vmem:[%s1 + $0x9c] sm:$0xf]
      %v2927 = vld [vmem:[%s1 + $0xa0] sm:$0xf]
      %v2928 = vld [vmem:[%s1 + $0xa4] sm:$0xf]
      %v2929 = vld [vmem:[%s1 + $0xa8] sm:$0xf]
      %v2930 = vld [vmem:[%s1 + $0xac] sm:$0xf]
      %v2931 = vld [vmem:[%s1 + $0xb0] sm:$0xf]
      %v2932 = vld [vmem:[%s1 + $0xb4] sm:$0xf]
      %v2933 = vld [vmem:[%s1 + $0xb8] sm:$0xf]
      %v2934 = vld [vmem:[%s1 + $0xbc] sm:$0xf]
      %v2983 = vunpack.c.l.b16 %v2887
      %v2984 = vunpack.c.l.b16 %v2888
      %v2985 = vunpack.c.l.b16 %v2889
      %v2986 = vunpack.c.l.b16 %v2890
      %v2987 = vunpack.c.l.b16 %v2891
      %v2988 = vunpack.c.l.b16 %v2892
      %v2989 = vunpack.c.l.b16 %v2893
      %v2990 = vunpack.c.l.b16 %v2894
      %v2991 = vunpack.c.l.b16 %v2895
      %v2992 = vunpack.c.l.b16 %v2896
      %v2993 = vunpack.c.l.b16 %v2897
      %v2994 = vunpack.c.l.b16 %v2898
      %v2995 = vunpack.c.l.b16 %v2899
      %v2996 = vunpack.c.l.b16 %v2900
      %v2997 = vunpack.c.l.b16 %v2901
      %v2998 = vunpack.c.l.b16 %v2902
      %v2999 = vunpack.c.l.b16 %v2903
      %v3000 = vunpack.c.l.b16 %v2904
      %v3001 = vunpack.c.l.b16 %v2905
      %v3002 = vunpack.c.l.b16 %v2906
      %v3003 = vunpack.c.l.b16 %v2907
      %v3004 = vunpack.c.l.b16 %v2908
      %v3005 = vunpack.c.l.b16 %v2909
      %v3006 = vunpack.c.l.b16 %v2910
      %v3007 = vunpack.c.l.b16 %v2911
      %v3008 = vunpack.c.l.b16 %v2912
      %v3009 = vunpack.c.l.b16 %v2913
      %v3010 = vunpack.c.l.b16 %v2914
      %v3011 = vunpack.c.l.b16 %v2915
      %v3012 = vunpack.c.l.b16 %v2916
      %v3013 = vunpack.c.l.b16 %v2917
      %v3014 = vunpack.c.l.b16 %v2918
      %v3015 = vunpack.c.l.b16 %v2919
      %v3016 = vunpack.c.l.b16 %v2920
      %v3017 = vunpack.c.l.b16 %v2921
      %v3018 = vunpack.c.l.b16 %v2922
      %v3019 = vunpack.c.l.b16 %v2923
      %v3020 = vunpack.c.l.b16 %v2924
      %v3021 = vunpack.c.l.b16 %v2925
      %v3022 = vunpack.c.l.b16 %v2926
      %v3023 = vunpack.c.l.b16 %v2927
      %v3024 = vunpack.c.l.b16 %v2928
      %v3025 = vunpack.c.l.b16 %v2929
      %v3026 = vunpack.c.l.b16 %v2930
      %v3027 = vunpack.c.l.b16 %v2931
      %v3028 = vunpack.c.l.b16 %v2932
      %v3029 = vunpack.c.l.b16 %v2933
      %v3030 = vunpack.c.l.b16 %v2934
      %v3031 = vpack.c.b16 %v2984, %v2983
      %v3032 = vpack.c.b16 %v2986, %v2985
      %v3033 = vpack.c.b16 %v2988, %v2987
      %v3034 = vpack.c.b16 %v2990, %v2989
      %v3035 = vpack.c.b16 %v2992, %v2991
      %v3036 = vpack.c.b16 %v2994, %v2993
      %v3037 = vpack.c.b16 %v2996, %v2995
      %v3038 = vpack.c.b16 %v2998, %v2997
      %v3039 = vpack.c.b16 %v3000, %v2999
      %v3040 = vpack.c.b16 %v3002, %v3001
      %v3041 = vpack.c.b16 %v3004, %v3003
      %v3042 = vpack.c.b16 %v3006, %v3005
      %v3043 = vpack.c.b16 %v3008, %v3007
      %v3044 = vpack.c.b16 %v3010, %v3009
      %v3045 = vpack.c.b16 %v3012, %v3011
      %v3046 = vpack.c.b16 %v3014, %v3013
      %v3047 = vpack.c.b16 %v3016, %v3015
      %v3048 = vpack.c.b16 %v3018, %v3017
      %v3049 = vpack.c.b16 %v3020, %v3019
      %v3050 = vpack.c.b16 %v3022, %v3021
      %v3051 = vpack.c.b16 %v3024, %v3023
      %v3052 = vpack.c.b16 %v3026, %v3025
      %v3053 = vpack.c.b16 %v3028, %v3027
      %v3054 = vpack.c.b16 %v3030, %v3029
      %3079 = vmatprep.subr.bf16.mxu0 0
      %3080 = vmatpush1.bf16.msra.mxu0 %v3031
      %3081 = vmatprep.subr.bf16.mxu0 0
      %3082 = vmatpush1.bf16.msra.mxu0 %v3032
      %3083 = vmatprep.subr.bf16.mxu0 0
      %3084 = vmatpush1.bf16.msra.mxu0 %v3033
      %3085 = vmatprep.subr.bf16.mxu0 0
      %3086 = vmatpush1.bf16.msra.mxu0 %v3034
      %3087 = vmatprep.subr.bf16.mxu0 0
      %3088 = vmatpush1.bf16.msra.mxu0 %v3035
      %3089 = vmatprep.subr.bf16.mxu0 0
      %3090 = vmatpush1.bf16.msra.mxu0 %v3036
      %3091 = vmatprep.subr.bf16.mxu0 0
      %3092 = vmatpush1.bf16.msra.mxu0 %v3037
      %3093 = vmatprep.subr.bf16.mxu0 0
      %3094 = vmatpush1.bf16.msra.mxu0 %v3038
      %3095 = vmatprep.subr.bf16.mxu0 0
      %3096 = vmatpush1.bf16.msra.mxu0 %v3039
      %3097 = vmatprep.subr.bf16.mxu0 0
      %3098 = vmatpush1.bf16.msra.mxu0 %v3040
      %3099 = vmatprep.subr.bf16.mxu0 0
      %3100 = vmatpush1.bf16.msra.mxu0 %v3041
      %3101 = vmatprep.subr.bf16.mxu0 0
      %3102 = vmatpush1.bf16.msra.mxu0 %v3042
      %3103 = vmatprep.subr.bf16.mxu0 0
      %3104 = vmatpush1.bf16.msra.mxu0 %v3043
      %3105 = vmatprep.subr.bf16.mxu0 0
      %3106 = vmatpush1.bf16.msra.mxu0 %v3044
      %3107 = vmatprep.subr.bf16.mxu0 0
      %3108 = vmatpush1.bf16.msra.mxu0 %v3045
      %3109 = vmatprep.subr.bf16.mxu0 0
      %3110 = vmatpush1.bf16.msra.mxu0 %v3046
      %3111 = vmatprep.mubr.bf16.mxu0 %v2871
      %3112 = vmatmul.mubr.bf16.gmra.mrb[0].mxu0 %v2359
      %v3113 = vpop.f32.mrb[0].mxu0
      %v3114 = vadd.f32 0.0, %v3113
      %v3115 = vpop.f32.mrb[0].mxu0
      %v3116 = vpop.f32.mrb[0].mxu0
      %v3117 = vadd.f32 0.0, %v3116
      %v3118 = vpop.f32.mrb[0].mxu0
      %3119 = vmatprep.mubr.bf16.mxu0 %v2872
      %3120 = vmatmul.mubr.bf16.gmra.mrb[0].mxu0 %v2360
      %v3121 = vpop.f32.mrb[0].mxu0
      %v3122 = vadd.f32 0.0, %v3121
      %v3123 = vpop.f32.mrb[0].mxu0
      %v3124 = vpop.f32.mrb[0].mxu0
      %v3125 = vadd.f32 0.0, %v3124
      %v3126 = vpop.f32.mrb[0].mxu0
      %3127 = vmatprep.mubr.bf16.mxu0 %v2873
      %3128 = vmatmul.mubr.bf16.gmra.mrb[0].mxu0 %v2361
      %v3129 = vpop.f32.mrb[0].mxu0
      %v3130 = vadd.f32 0.0, %v3129
      %v3131 = vpop.f32.mrb[0].mxu0
      %v3132 = vpop.f32.mrb[0].mxu0
      %v3133 = vadd.f32 0.0, %v3132
      %v3134 = vpop.f32.mrb[0].mxu0
      %3135 = vmatprep.mubr.bf16.mxu0 %v2874
      %3136 = vmatmul.mubr.bf16.gmra.mrb[0].mxu0 %v2362
      %v3137 = vpop.f32.mrb[0].mxu0
      %v3138 = vadd.f32 0.0, %v3137
      %v3139 = vpop.f32.mrb[0].mxu0
      %v3140 = vpop.f32.mrb[0].mxu0
      %v3141 = vadd.f32 0.0, %v3140
      %v3142 = vpop.f32.mrb[0].mxu0
      %3143 = vmatprep.mubr.bf16.mxu0 %v2875
      %3144 = vmatmul.mubr.bf16.gmra.mrb[0].mxu0 %v2363
      %v3145 = vpop.f32.mrb[0].mxu0
      %v3146 = vadd.f32 0.0, %v3145
      %v3147 = vpop.f32.mrb[0].mxu0
      %v3148 = vpop.f32.mrb[0].mxu0
      %v3149 = vadd.f32 0.0, %v3148
      %v3150 = vpop.f32.mrb[0].mxu0
      %3151 = vmatprep.mubr.bf16.mxu0 %v2876
      %3152 = vmatmul.mubr.bf16.gmra.mrb[0].mxu0 %v2364
      %v3153 = vpop.f32.mrb[0].mxu0
      %v3154 = vadd.f32 0.0, %v3153
      %v3155 = vpop.f32.mrb[0].mxu0
      %v3156 = vpop.f32.mrb[0].mxu0
      %v3157 = vadd.f32 0.0, %v3156
      %v3158 = vpop.f32.mrb[0].mxu0
      %3159 = vmatprep.mubr.bf16.mxu0 %v2877
      %3160 = vmatmul.mubr.bf16.gmra.mrb[0].mxu0 %v2365
      %v3161 = vpop.f32.mrb[0].mxu0
      %v3162 = vadd.f32 0.0, %v3161
      %v3163 = vpop.f32.mrb[0].mxu0
      %v3164 = vpop.f32.mrb[0].mxu0
      %v3165 = vadd.f32 0.0, %v3164
      %v3166 = vpop.f32.mrb[0].mxu0
      %3167 = vmatprep.mubr.bf16.mxu0 %v2878
      %3168 = vmatmul.mubr.bf16.gmra.mrb[0].mxu0 %v2366
      %v3169 = vpop.f32.mrb[0].mxu0
      %v3170 = vadd.f32 0.0, %v3169
      %v3171 = vpop.f32.mrb[0].mxu0
      %v3172 = vpop.f32.mrb[0].mxu0
      %v3173 = vadd.f32 0.0, %v3172
      %v3174 = vpop.f32.mrb[0].mxu0
      %3175 = vdwg.mxu0
      %3176 = vmatprep.subr.bf16.mxu0 0
      %3177 = vmatpush1.bf16.msra.mxu0 %v3047
      %3178 = vmatprep.subr.bf16.mxu0 0
      %3179 = vmatpush1.bf16.msra.mxu0 %v3048
      %3180 = vmatprep.subr.bf16.mxu0 0
      %3181 = vmatpush1.bf16.msra.mxu0 %v3049
      %3182 = vmatprep.subr.bf16.mxu0 0
      %3183 = vmatpush1.bf16.msra.mxu0 %v3050
      %3184 = vmatprep.subr.bf16.mxu0 0
      %3185 = vmatpush1.bf16.msra.mxu0 %v3051
      %3186 = vmatprep.subr.bf16.mxu0 0
      %3187 = vmatpush1.bf16.msra.mxu0 %v3052
      %3188 = vmatprep.subr.bf16.mxu0 0
      %3189 = vmatpush1.bf16.msra.mxu0 %v3053
      %3190 = vmatprep.subr.bf16.mxu0 0
      %3191 = vmatpush1.bf16.msra.mxu0 %v3054
      %3192 = vmatprep.subr.bf16.mxu0 0
      %3193 = vmatpush1.bf16.msra.mxu0 0
      %3194 = vmatprep.subr.bf16.mxu0 0
      %3195 = vmatpush1.bf16.msra.mxu0 0
      %3196 = vmatprep.subr.bf16.mxu0 0
      %3197 = vmatpush1.bf16.msra.mxu0 0
      %3198 = vmatprep.subr.bf16.mxu0 0
      %3199 = vmatpush1.bf16.msra.mxu0 0
      %3200 = vmatprep.subr.bf16.mxu0 0
      %3201 = vmatpush1.bf16.msra.mxu0 0
      %3202 = vmatprep.subr.bf16.mxu0 0
      %3203 = vmatpush1.bf16.msra.mxu0 0
      %3204 = vmatprep.subr.bf16.mxu0 0
      %3205 = vmatpush1.bf16.msra.mxu0 0
      %3206 = vmatprep.subr.bf16.mxu0 0
      %3207 = vmatpush1.bf16.msra.mxu0 0
      %3208 = vmatprep.mubr.bf16.mxu0 0
      %3209 = vmatmul.mubr.bf16.gmra.mrb[0].mxu0 %v2495
      %v3210 = vpop.f32.mrb[0].mxu0
      %v3211 = vadd.f32 %v3114, %v3210
      %v3212 = vpop.f32.mrb[0].mxu0
      %v3213 = vpop.f32.mrb[0].mxu0
      %v3214 = vadd.f32 %v3117, %v3213
      %v3215 = vpop.f32.mrb[0].mxu0
      %3216 = vmatprep.mubr.bf16.mxu0 0
      %3217 = vmatmul.mubr.bf16.gmra.mrb[0].mxu0 %v2496
      %v3218 = vpop.f32.mrb[0].mxu0
      %v3219 = vadd.f32 %v3122, %v3218
      %v3220 = vpop.f32.mrb[0].mxu0
      %v3221 = vpop.f32.mrb[0].mxu0
      %v3222 = vadd.f32 %v3125, %v3221
      %v3223 = vpop.f32.mrb[0].mxu0
      %3224 = vmatprep.mubr.bf16.mxu0 0
      %3225 = vmatmul.mubr.bf16.gmra.mrb[0].mxu0 %v2497
      %v3226 = vpop.f32.mrb[0].mxu0
      %v3227 = vadd.f32 %v3130, %v3226
      %v3228 = vpop.f32.mrb[0].mxu0
      %v3229 = vpop.f32.mrb[0].mxu0
      %v3230 = vadd.f32 %v3133, %v3229
      %v3231 = vpop.f32.mrb[0].mxu0
      %3232 = vmatprep.mubr.bf16.mxu0 0
      %3233 = vmatmul.mubr.bf16.gmra.mrb[0].mxu0 %v2498
      %v3234 = vpop.f32.mrb[0].mxu0
      %v3235 = vadd.f32 %v3138, %v3234
      %v3236 = vpop.f32.mrb[0].mxu0
      %v3237 = vpop.f32.mrb[0].mxu0
      %v3238 = vadd.f32 %v3141, %v3237
      %v3239 = vpop.f32.mrb[0].mxu0
      %3240 = vmatprep.mubr.bf16.mxu0 0
      %3241 = vmatmul.mubr.bf16.gmra.mrb[0].mxu0 %v2499
      %v3242 = vpop.f32.mrb[0].mxu0
      %v3243 = vadd.f32 %v3146, %v3242
      %v3244 = vpop.f32.mrb[0].mxu0
      %v3245 = vpop.f32.mrb[0].mxu0
      %v3246 = vadd.f32 %v3149, %v3245
      %v3247 = vpop.f32.mrb[0].mxu0
      %3248 = vmatprep.mubr.bf16.mxu0 0
      %3249 = vmatmul.mubr.bf16.gmra.mrb[0].mxu0 %v2500
      %v3250 = vpop.f32.mrb[0].mxu0
      %v3251 = vadd.f32 %v3154, %v3250
      %v3252 = vpop.f32.mrb[0].mxu0
      %v3253 = vpop.f32.mrb[0].mxu0
      %v3254 = vadd.f32 %v3157, %v3253
      %v3255 = vpop.f32.mrb[0].mxu0
      %3256 = vmatprep.mubr.bf16.mxu0 0
      %3257 = vmatmul.mubr.bf16.gmra.mrb[0].mxu0 %v2501
      %v3258 = vpop.f32.mrb[0].mxu0
      %v3259 = vadd.f32 %v3162, %v3258
      %v3260 = vpop.f32.mrb[0].mxu0
      %v3261 = vpop.f32.mrb[0].mxu0
      %v3262 = vadd.f32 %v3165, %v3261
      %v3263 = vpop.f32.mrb[0].mxu0
      %3264 = vmatprep.mubr.bf16.mxu0 0
      %3265 = vmatmul.mubr.bf16.gmra.mrb[0].mxu0 %v2502
      %v3266 = vpop.f32.mrb[0].mxu0
      %v3267 = vadd.f32 %v3170, %v3266
      %v3268 = vpop.f32.mrb[0].mxu0
      %v3269 = vpop.f32.mrb[0].mxu0
      %v3270 = vadd.f32 %v3173, %v3269
      %v3271 = vpop.f32.mrb[0].mxu0
      %3272 = vdwg.mxu0
      %3273 = vst [vmem:[%s205] sm:$0xff] %v3211
      %3274 = vst [vmem:[%s205 + $0x8] sm:$0xff] %v3214
      %3275 = vst [vmem:[%s205 + $0x10] sm:$0xff] %v3219
      %3276 = vst [vmem:[%s205 + $0x18] sm:$0xff] %v3222
      %3277 = vst [vmem:[%s205 + $0x20] sm:$0xff] %v3227
      %3278 = vst [vmem:[%s205 + $0x28] sm:$0xff] %v3230
      %3279 = vst [vmem:[%s205 + $0x30] sm:$0xff] %v3235
      %3280 = vst [vmem:[%s205 + $0x38] sm:$0xff] %v3238
      %3281 = vst [vmem:[%s205 + $0x40] sm:$0xff] %v3243
      %3282 = vst [vmem:[%s205 + $0x48] sm:$0xff] %v3246
      %3283 = vst [vmem:[%s205 + $0x50] sm:$0xff] %v3251
      %3284 = vst [vmem:[%s205 + $0x58] sm:$0xff] %v3254
      %3285 = vst [vmem:[%s205 + $0x60] sm:$0xff] %v3259
      %3286 = vst [vmem:[%s205 + $0x68] sm:$0xff] %v3262
      %3287 = vst [vmem:[%s205 + $0x70] sm:$0xff] %v3267
      %3288 = vst [vmem:[%s205 + $0x78] sm:$0xff] %v3270
      %v3289 = vadd.f32 %v3211, %v3214
      %v3290 = vadd.f32 %v3289, %v3219
      %v3291 = vadd.f32 %v3290, %v3222
      %v3292 = vadd.f32 %v3291, %v3227
      %v3293 = vadd.f32 %v3292, %v3230
      %v3294 = vadd.f32 %v3293, %v3235
      %v3295 = vadd.f32 %v3294, %v3238
      %v3296 = vadd.f32 %v3295, %v3243
      %v3297 = vadd.f32 %v3296, %v3246
      %v3298 = vadd.f32 %v3297, %v3251
      %v3299 = vadd.f32 %v3298, %v3254
      %v3300 = vadd.f32 %v3299, %v3259
      %v3301 = vadd.f32 %v3300, %v3262
      %v3302 = vadd.f32 %v3301, %v3267
      %v3303 = vadd.f32 %v3302, %v3270
      %v3304 = vrot.slane %v3303, 4
      %v3305 = vadd.f32 %v3303, %v3304
      %v3306 = vrot.slane %v3305, 2
      %v3307 = vadd.f32 %v3305, %v3306
      %v3308 = vrot.slane %v3307, 1
      %v3309 = vadd.f32 %v3307, %v3308
      %v3310 = vmul.f32 %v3211, %v3211
      %v3311 = vmul.f32 %v3214, %v3214
      %v3312 = vmul.f32 %v3219, %v3219
      %v3313 = vmul.f32 %v3222, %v3222
      %v3314 = vmul.f32 %v3227, %v3227
      %v3315 = vmul.f32 %v3230, %v3230
      %v3316 = vmul.f32 %v3235, %v3235
      %v3317 = vmul.f32 %v3238, %v3238
      %v3318 = vmul.f32 %v3243, %v3243
      %v3319 = vmul.f32 %v3246, %v3246
      %v3320 = vmul.f32 %v3251, %v3251
      %v3321 = vmul.f32 %v3254, %v3254
      %v3322 = vmul.f32 %v3259, %v3259
      %v3323 = vmul.f32 %v3262, %v3262
      %v3324 = vmul.f32 %v3267, %v3267
      %v3325 = vmul.f32 %v3270, %v3270
      %v3326 = vadd.f32 %v3310, %v3311
      %v3327 = vadd.f32 %v3326, %v3312
      %v3328 = vadd.f32 %v3327, %v3313
      %v3329 = vadd.f32 %v3328, %v3314
      %v3330 = vadd.f32 %v3329, %v3315
      %v3331 = vadd.f32 %v3330, %v3316
      %v3332 = vadd.f32 %v3331, %v3317
      %v3333 = vadd.f32 %v3332, %v3318
      %v3334 = vadd.f32 %v3333, %v3319
      %v3335 = vadd.f32 %v3334, %v3320
      %v3336 = vadd.f32 %v3335, %v3321
      %v3337 = vadd.f32 %v3336, %v3322
      %v3338 = vadd.f32 %v3337, %v3323
      %v3339 = vadd.f32 %v3338, %v3324
      %v3340 = vadd.f32 %v3339, %v3325
      %v3341 = vrot.slane %v3340, 4
      %v3342 = vadd.f32 %v3340, %v3341
      %v3343 = vrot.slane %v3342, 2
      %v3344 = vadd.f32 %v3342, %v3343
      %v3345 = vrot.slane %v3344, 1
      %v3346 = vadd.f32 %v3344, %v3345
      %vm3347 = vcmask 1040384
      %v3348 = vsel %vm3347, %v3309, %v3346
      %3349 = vst [vmem:[%s214] sm:$0x3] %v3348
      %s3350 = smul.u32 16, %s20
      %p3351 = scmp.lt.s32.totalorder %s19, 1
      %s3352 = scalar_select %p3351, %s19, 1
      %p3353 = scmp.lt.s32.totalorder %s3350, 31
      %s3354 = scalar_select %p3353, %s3350, 31
      %s3355 = smul.addr %s3352, 32
      %s3356 = sadd.s32 %s3354, %s3355
      %s3357 = smul.addr %s3356, 8
      %s3358 = scalar_lea.vmem %s2, %s3357
      %p3359 = scmp.lt.s32.totalorder %s19, 1
      %s3360 = scalar_select %p3359, %s19, 1
      %p3361 = scmp.lt.s32.totalorder %s20, 1
      %s3362 = scalar_select %p3361, %s20, 1
      %s3363 = smul.addr %s3360, 2
      %s3364 = sadd.s32 %s3362, %s3363
      %s3365 = smul.addr %s3364, 2
      %s3366 = scalar_lea.vmem %s3, %s3365
      // Predicated region
      $region29: #{down_forward.3} parent=27 // pred_check
        %p3367 = pneg %p94
      $region30: #{down_forward.3} parent=27 // pred_check_branch
        %3369 = sbr.rel (%p3367) target = $region32
      $region31: #{down_forward.3} parent=27 // pred_region
        %s3370 = smul.u32 16, %s20
      $region32: #{down_forward.3} parent=27 // pred_fallthru
        _
      // Predicated region
      $region33: #{down_forward.3} parent=27 // pred_check
        %p3371 = pneg %p122
      $region34: #{down_forward.3} parent=27 // pred_check_branch
        %3373 = sbr.rel (%p3371) target = $region36
      $region35: #{down_forward.3} parent=27 // pred_region
        _
      $region36: #{down_forward.3} parent=27 // pred_fallthru
        _
    $region28: #{down_forward.3} parent=5 // pred_fallthru
      _
    %p3374 = scmp.le.s32.totalorder 2, %s10
    // Predicated region
    $region37: #{down_forward.3} parent=5 // pred_check
      %p3375 = pneg %p3374
    $region38: #{down_forward.3} parent=5 // pred_check_branch
      %3377 = sbr.rel (%p3375) target = $region40
    $region39: #{down_forward.3} parent=5 // pred_region
      %s3378 = ssub.s32 %s10, 2
      // Predicated region
      $region41: #{down_forward.3} parent=39 // pred_check
        %p3379 = pneg %p100
      $region42: #{down_forward.3} parent=39 // pred_check_branch
        %3381 = sbr.rel (%p3379) target = $region44
      $region43: #{down_forward.3} parent=39 // pred_region
        %s3382 = smul.u32 16, %s22
        %p3383 = scmp.lt.s32.totalorder %s21, 1
        %s3384 = scalar_select %p3383, %s21, 1
        %p3385 = scmp.lt.s32.totalorder %s3382, 31
        %s3386 = scalar_select %p3385, %s3382, 31
        %s3387 = smul.addr %s3384, 32
        %s3388 = sadd.s32 %s3386, %s3387
        %s3389 = smul.addr %s3388, 8
        %s3390 = scalar_lea.vmem %s2, %s3389
      $region44: #{down_forward.3} parent=39 // pred_fallthru
        _
      // Predicated region
      $region45: #{down_forward.3} parent=39 // pred_check
        %p3391 = pneg %p128
      $region46: #{down_forward.3} parent=39 // pred_check_branch
        %3393 = sbr.rel (%p3391) target = $region48
      $region47: #{down_forward.3} parent=39 // pred_region
        %p3394 = scmp.lt.s32.totalorder %s21, 1
        %s3395 = scalar_select %p3394, %s21, 1
        %p3396 = scmp.lt.s32.totalorder %s22, 1
        %s3397 = scalar_select %p3396, %s22, 1
        %s3398 = smul.addr %s3395, 2
        %s3399 = sadd.s32 %s3397, %s3398
        %s3400 = smul.addr %s3399, 2
        %s3401 = scalar_lea.vmem %s3, %s3400
      $region48: #{down_forward.3} parent=39 // pred_fallthru
        _
    $region40: #{down_forward.3} parent=5 // pred_fallthru
      _
  $region6: #{down_forward.3} parent=0 // loop_footer
    %s14 = sadd.s32 1, %s10
  $region7: #{down_forward.3} parent=0 // loop_footer_branch
    %9 = sbr.rel target = $region3
  $region8: #{down_forward.3} parent=0 // loop_exit
    _

</llo_original>
